<compile_context>
chip_gen: v7x
topology: tpu7x:2x2x1
jax: 0.10.0
libtpu: 0.0.40
codegen_flags: <defaults>
</compile_context>

<pallas_src>
import math
from functools import partial
from typing import NamedTuple

import jax
import jax.numpy as jnp
from jax.experimental import pallas as pl
from jax.experimental.pallas import tpu as pltpu

BN_EPS = 1e-5


def _round_up(x, m):
    return ((x + m - 1) // m) * m


# ----------------------------------------------------------------------------
# Fused Pallas kernels:  out = maybe_relu(A @ W + bias [+ residual])
#   A (M,K) bf16, W (K,N) bf16 (BN scale pre-folded), bias (1,N) f32,
#   residual (M,N) bf16 (optional, widened to f32 for the add).
# ----------------------------------------------------------------------------
def _make_mm_kernel_1k(relu: bool, has_res: bool):
    """Single reduction step: no scratch accumulator, no init/finalize phases."""
    def kernel(*refs):
        if has_res:
            a_ref, w_ref, b_ref, r_ref, o_ref = refs
        else:
            a_ref, w_ref, b_ref, o_ref = refs
        acc = jnp.dot(a_ref[...], w_ref[...], preferred_element_type=jnp.float32)
        r = acc + b_ref[...]
        if has_res:
            r = r + r_ref[...].astype(jnp.float32)
        if relu:
            r = jnp.maximum(r, 0.0)
        o_ref[...] = r.astype(o_ref.dtype)
    return kernel


def _make_mm_kernel_multik(relu: bool, has_res: bool):
    """K-tiled reduction with an f32 VMEM accumulator (K innermost, 'arbitrary')."""
    def kernel(*refs):
        if has_res:
            a_ref, w_ref, b_ref, r_ref, o_ref, acc_ref = refs
        else:
            a_ref, w_ref, b_ref, o_ref, acc_ref = refs

        @pl.when(pl.program_id(2) == 0)
        def _():
            acc_ref[...] = jnp.zeros_like(acc_ref)

        acc_ref[...] += jnp.dot(a_ref[...], w_ref[...],
                                preferred_element_type=jnp.float32)

        @pl.when(pl.program_id(2) == pl.num_programs(2) - 1)
        def _():
            r = acc_ref[...] + b_ref[...]
            if has_res:
                r = r + r_ref[...].astype(jnp.float32)
            if relu:
                r = jnp.maximum(r, 0.0)
            o_ref[...] = r.astype(o_ref.dtype)
    return kernel


def _pick_tiles(Mp, Np, K):
    # tm: biggest candidate dividing Mp, preferring >=2 M tiles so the "parallel"
    # grid axis can be sharded across TensorCores (v7x). Allow 1024 when N is small.
    tm_cands = [1024, 512, 256, 128] if Np <= 256 else [512, 256, 128]
    tm = None
    for t in tm_cands:
        if Mp % t == 0 and Mp // t >= 2:
            tm = t
            break
    if tm is None:
        for t in tm_cands:
            if Mp % t == 0:
                tm = t
                break
    if tm is None:
        tm = Mp
    # tn: full N when it fits (lane-dense epilogue store, no N loop); else 128-mult.
    if Np <= 512:
        tn = Np
    else:
        tn = next((t for t in (512, 256, 128) if Np % t == 0), Np)
    # tk: single reduction step whenever the A slab comfortably fits VMEM
    # (all convs in this block); otherwise a 128-multiple divisor.
    if K <= 2048:
        tk = K
    else:
        tk = next((t for t in (1024, 512, 384, 256, 128) if K % t == 0), K)
    return tm, tn, tk


def fused_matmul(a, w, bias, residual=None, relu=True, out_dtype=jnp.bfloat16):
    """a:(M,K); w:(K,N) bf16 (BN-scale folded); bias:(1,N) f32; residual:(M,N)."""
    M, K = a.shape
    Kw, Np = w.shape
    assert K == Kw, (K, Kw)
    Mp = _round_up(M, 16)                 # bf16 sublane alignment; demo shapes need no pad
    tm, tn, tk = _pick_tiles(Mp, Np, K)

    a = a.astype(jnp.bfloat16)
    if Mp != M:
        a = jnp.pad(a, ((0, Mp - M), (0, 0)))
    has_res = residual is not None
    if has_res:
        residual = residual.astype(jnp.bfloat16)   # bf16 stream, widened in-kernel
        if Mp != M:
            residual = jnp.pad(residual, ((0, Mp - M), (0, 0)))

    if K // tk == 1:
        grid = (Mp // tm, Np // tn)
        in_specs = [pl.BlockSpec((tm, K), lambda i, j: (i, 0)),
                    pl.BlockSpec((K, tn), lambda i, j: (0, j)),
                    pl.BlockSpec((1, tn), lambda i, j: (0, j))]
        if has_res:
            in_specs.append(pl.BlockSpec((tm, tn), lambda i, j: (i, j)))
        out_specs = pl.BlockSpec((tm, tn), lambda i, j: (i, j))
        kernel = _make_mm_kernel_1k(relu, has_res)
        scratch = []
        dims = ("parallel", "parallel")
    else:
        grid = (Mp // tm, Np // tn, K // tk)
        in_specs = [pl.BlockSpec((tm, tk), lambda i, j, k: (i, k)),
                    pl.BlockSpec((tk, tn), lambda i, j, k: (k, j)),
                    pl.BlockSpec((1, tn), lambda i, j, k: (0, j))]
        if has_res:
            in_specs.append(pl.BlockSpec((tm, tn), lambda i, j, k: (i, j)))
        out_specs = pl.BlockSpec((tm, tn), lambda i, j, k: (i, j))
        kernel = _make_mm_kernel_multik(relu, has_res)
        scratch = [pltpu.VMEM((tm, tn), jnp.float32)]
        dims = ("parallel", "parallel", "arbitrary")

    args = [a, w, bias] + ([residual] if has_res else [])
    out = pl.pallas_call(
        kernel,
        out_shape=jax.ShapeDtypeStruct((Mp, Np), out_dtype),
        grid_spec=pltpu.PrefetchScalarGridSpec(
            num_scalar_prefetch=0,
            grid=grid,
            in_specs=in_specs,
            out_specs=out_specs,
            scratch_shapes=scratch,
        ),
        compiler_params=pltpu.CompilerParams(
            dimension_semantics=dims,
            vmem_limit_bytes=32 * 1024 * 1024,
        ),
    )(*args)
    return out[:M] if Mp != M else out


# ----------------------------------------------------------------------------
# Glue (fused by XLA inside the single jit around the whole forward)
# ----------------------------------------------------------------------------
def _im2col3x3(x, stride):
    # x: (n,h,w,c) bf16 with REAL channels (no lane pad): the 9 taps are concatenated
    # contiguously so K = 9*c with no interleaved zero padding or wasted MXU work.
    # TODO(synk): for large feature maps, an in-kernel tap-accumulation conv2
    # (shifted-window DMA + 9 accumulating matmuls) would avoid materializing this
    # 9x-expanded matrix in HBM entirely.
    n, h, w, c = x.shape
    xp = jnp.pad(x, ((0, 0), (1, 1), (1, 1), (0, 0)))
    ho = (h + 2 - 3) // stride + 1
    wo = (w + 2 - 3) // stride + 1
    cols = [xp[:, i:i + stride * ho:stride, j:j + stride * wo:stride, :]
            for i in range(3) for j in range(3)]
    cols = jnp.concatenate(cols, axis=-1)
    return cols.reshape(n * ho * wo, 9 * c), ho, wo


# ----------------------------------------------------------------------------
# Parameters: deterministic synthetic weights, eval-mode BN folded into the
# weight matrix (scale) and a bias vector; packed once to (K, Cout) bf16.
# ----------------------------------------------------------------------------
class BottleneckCfg(NamedTuple):
    inplanes: int
    planes: int
    stride: int = 1
    expansion: int = 4


def _conv_bn_params(key, kh, kw, cin, cout):
    k_w, k_g, k_b = jax.random.split(key, 3)
    std = math.sqrt(2.0 / (kh * kw * cin))
    w = std * jax.random.normal(k_w, (kh, kw, cin, cout), jnp.float32)
    gamma = 1.0 + 0.1 * jax.random.normal(k_g, (cout,), jnp.float32)
    beta = 0.1 * jax.random.normal(k_b, (cout,), jnp.float32)
    mean = jnp.zeros((cout,), jnp.float32)    # eval-mode running stats (synthetic)
    var = jnp.ones((cout,), jnp.float32)
    scale = gamma / jnp.sqrt(var + BN_EPS)
    bias = beta - mean * scale
    # Fold BN scale into the weight columns; pack tap-major (matches im2col order).
    w_packed = (w * scale).reshape(kh * kw * cin, cout).astype(jnp.bfloat16)
    return w_packed, bias.reshape(1, cout).astype(jnp.float32)


def build_bottleneck_params(key, cfg: BottleneckCfg):
    keys = jax.random.split(key, 4)
    p = {}
    p["conv1_w"], p["conv1_b"] = _conv_bn_params(keys[0], 1, 1, cfg.inplanes, cfg.planes)
    p["conv2_w"], p["conv2_b"] = _conv_bn_params(keys[1], 3, 3, cfg.planes, cfg.planes)
    p["conv3_w"], p["conv3_b"] = _conv_bn_params(keys[2], 1, 1, cfg.planes,
                                                 cfg.planes * cfg.expansion)
    if cfg.stride != 1 or cfg.inplanes != cfg.planes * cfg.expansion:
        # downsample = Conv2d(1x1, stride) + BN, as in HRNet's _make_layer
        p["down_w"], p["down_b"] = _conv_bn_params(keys[3], 1, 1, cfg.inplanes,
                                                   cfg.planes * cfg.expansion)
    return p


# ----------------------------------------------------------------------------
# Bottleneck forward (matches the PyTorch module, eval-mode BN)
# ----------------------------------------------------------------------------
def bottleneck_forward(cfg: BottleneckCfg, params, x_nchw):
    n, cin, h, w = x_nchw.shape
    assert cin == cfg.inplanes
    cout = cfg.planes * cfg.expansion

    x = jnp.transpose(x_nchw, (0, 2, 3, 1)).astype(jnp.bfloat16)   # NCHW -> NHWC, bf16 once
    a0 = x.reshape(n * h * w, cin)

    # conv1 (1x1) + BN + ReLU  -> bf16 intermediate
    y = fused_matmul(a0, params["conv1_w"], params["conv1_b"], relu=True)
    y = y.reshape(n, h, w, cfg.planes)

    # conv2 (3x3, stride, pad=1) + BN + ReLU  -> bf16 intermediate
    cols, ho, wo = _im2col3x3(y, cfg.stride)
    y2 = fused_matmul(cols, params["conv2_w"], params["conv2_b"], relu=True)

    # residual branch (bf16 stream)
    if "down_w" in params:
        xs = x[:, ::cfg.stride, ::cfg.stride, :] if cfg.stride > 1 else x
        res = fused_matmul(xs.reshape(n * ho * wo, cin),
                           params["down_w"], params["down_b"], relu=False)
    else:
        res = a0   # identity (stride==1 and inplanes == planes*expansion)

    # conv3 (1x1) + BN + residual add + final ReLU, fused in one kernel epilogue
    out = fused_matmul(y2, params["conv3_w"], params["conv3_b"],
                       residual=res, relu=True, out_dtype=jnp.float32)
    out = out.reshape(n, ho, wo, cout)
    return jnp.transpose(out, (0, 3, 1, 2))   # back to NCHW


# ----------------------------------------------------------------------------
# Pure-JAX reference (same bf16-quantized weights/input, f32 math throughout)
# ----------------------------------------------------------------------------
def _ref_forward(cfg: BottleneckCfg, params, x_nchw):
    x = jnp.transpose(x_nchw, (0, 2, 3, 1)).astype(jnp.bfloat16).astype(jnp.float32)

    def conv_bn(h_in, wp, bp, kh, cin, cout, stride, relu):
        wf = wp.astype(jnp.float32).reshape(kh, kh, cin, cout)
        pad = ((1, 1), (1, 1)) if kh == 3 else ((0, 0), (0, 0))
        y = jax.lax.conv_general_dilated(
            h_in, wf, window_strides=(stride, stride), padding=pad,
            dimension_numbers=("NHWC", "HWIO", "NHWC"))
        y = y + bp.reshape(1, 1, 1, cout)
        return jnp.maximum(y, 0.0) if relu else y

    mid, out_c = cfg.planes, cfg.planes * cfg.expansion
    y = conv_bn(x, params["conv1_w"], params["conv1_b"], 1, cfg.inplanes, mid, 1, True)
    y = conv_bn(y, params["conv2_w"], params["conv2_b"], 3, mid, mid, cfg.stride, True)
    y = conv_bn(y, params["conv3_w"], params["conv3_b"], 1, mid, out_c, 1, False)
    if "down_w" in params:
        res = conv_bn(x, params["down_w"], params["down_b"], 1, cfg.inplanes, out_c,
                      cfg.stride, False)
    else:
        res = x
    out = jnp.maximum(y + res, 0.0)
    return jnp.transpose(out, (0, 3, 1, 2))


if __name__ == "__main__":
    # HRNet layer1-style Bottleneck: inplanes=64, planes=64 (-> 256 out), stride=1,
    # with a 1x1+BN downsample on the residual, at a small 16x16 resolution.
    cfg = BottleneckCfg(inplanes=64, planes=64, stride=1)
    key = jax.random.PRNGKey(0)
    params = build_bottleneck_params(jax.random.fold_in(key, 1), cfg)
    x = jax.random.normal(jax.random.fold_in(key, 2),
                          (2, cfg.inplanes, 16, 16), jnp.float32)

    fwd = jax.jit(partial(bottleneck_forward, cfg))   # jit the whole forward
    out = jax.block_until_ready(fwd(params, x))

    assert out.shape == (2, cfg.planes * cfg.expansion, 16, 16), out.shape
    assert bool(jnp.all(jnp.isfinite(out)))

    # Tolerance check against a pure-JAX f32 reference (bf16 operand quantization
    # and bf16 intermediate activations cause small, bounded differences).
    ref = jax.block_until_ready(jax.jit(partial(_ref_forward, cfg))(params, x))
    max_err = float(jnp.max(jnp.abs(out - ref)))
    mean_err = float(jnp.mean(jnp.abs(out - ref)))
    assert max_err < 0.25 and mean_err < 0.02, (max_err, mean_err)

    print("KERNEL_OK")
</pallas_src>

<mosaic_0001>
module attributes {stable_mosaic.version = 11 : i64} {
  func.func @kernel(%arg0: i32, %arg1: i32, %arg2: memref<256x64xbf16, #tpu.memory_space<vmem>>, %arg3: memref<64x64xbf16, #tpu.memory_space<vmem>>, %arg4: memref<1x64xf32, #tpu.memory_space<vmem>>, %arg5: memref<256x64xbf16, #tpu.memory_space<vmem>>) attributes {dimension_semantics = [#tpu.dimension_semantics<parallel>, #tpu.dimension_semantics<parallel>], iteration_bounds = array<i64: 2, 1>, scalar_prefetch = 0 : i64, scratch_operands = 0 : i64, tpu.core_type = #tpu.core_type<tc>, window_params = [{transform_indices = @transform_0, window_bounds = array<i64: 256, 64>}, {transform_indices = @transform_1, window_bounds = array<i64: 64, 64>}, {transform_indices = @transform_2, window_bounds = array<i64: 1, 64>}, {transform_indices = @transform_3, window_bounds = array<i64: 256, 64>}]} {
    %c0 = arith.constant 0 : index
    %c0_0 = arith.constant 0 : index
    %0 = vector.load %arg2[%c0, %c0_0] : memref<256x64xbf16, #tpu.memory_space<vmem>>, vector<256x64xbf16>
    %c0_1 = arith.constant 0 : index
    %c0_2 = arith.constant 0 : index
    %1 = vector.load %arg3[%c0_1, %c0_2] : memref<64x64xbf16, #tpu.memory_space<vmem>>, vector<64x64xbf16>
    %cst = arith.constant dense<0.000000e+00> : vector<256x64xf32>
    %2 = tpu.matmul %0, %1, %cst {dimension_numbers = #tpu.dot_dimension_numbers<[1], [0], [0], [1], [0, 0, 1, 1], [], []>} : vector<256x64xbf16>, vector<64x64xbf16>, vector<256x64xf32> -> vector<256x64xf32>
    %c0_3 = arith.constant 0 : index
    %c0_4 = arith.constant 0 : index
    %3 = vector.load %arg4[%c0_3, %c0_4] : memref<1x64xf32, #tpu.memory_space<vmem>>, vector<1x64xf32>
    %4 = vector.broadcast %3 : vector<1x64xf32> to vector<256x64xf32>
    %5 = arith.addf %2, %4 : vector<256x64xf32>
    %cst_5 = arith.constant 0.000000e+00 : f32
    %6 = vector.broadcast %cst_5 : f32 to vector<256x64xf32>
    %7 = arith.maximumf %5, %6 : vector<256x64xf32>
    %8 = arith.truncf %7 : vector<256x64xf32> to vector<256x64xbf16>
    %c0_6 = arith.constant 0 : index
    %c0_7 = arith.constant 0 : index
    %9 = vector.load %arg5[%c0_6, %c0_7] : memref<256x64xbf16, #tpu.memory_space<vmem>>, vector<256x64xbf16>
    tpu.vector_store %arg5[%c0_6, %c0_7], %8 {strides = array<i32>} : memref<256x64xbf16, #tpu.memory_space<vmem>>, vector<256x64xbf16>,
    return
  }
  func.func @transform_0(%arg0: i32, %arg1: i32) -> (i32, i32) {
    %c0_i32 = arith.constant 0 : i32
    %c0_i32_0 = arith.constant 0 : i32
    return %arg0, %c0_i32 : i32, i32
  }
  func.func @transform_1(%arg0: i32, %arg1: i32) -> (i32, i32) {
    %c0_i32 = arith.constant 0 : i32
    %c0_i32_0 = arith.constant 0 : i32
    return %c0_i32, %arg1 : i32, i32
  }
  func.func @transform_2(%arg0: i32, %arg1: i32) -> (i32, i32) {
    %c0_i32 = arith.constant 0 : i32
    %c0_i32_0 = arith.constant 0 : i32
    return %c0_i32, %arg1 : i32, i32
  }
  func.func @transform_3(%arg0: i32, %arg1: i32) -> (i32, i32) {
    %c0_i32 = arith.constant 0 : i32
    return %arg0, %arg1 : i32, i32
  }
}

module attributes {stable_mosaic.version = 11 : i64} {
  func.func @kernel(%arg0: i32, %arg1: i32, %arg2: memref<256x576xbf16, #tpu.memory_space<vmem>>, %arg3: memref<576x64xbf16, #tpu.memory_space<vmem>>, %arg4: memref<1x64xf32, #tpu.memory_space<vmem>>, %arg5: memref<256x64xbf16, #tpu.memory_space<vmem>>) attributes {dimension_semantics = [#tpu.dimension_semantics<parallel>, #tpu.dimension_semantics<parallel>], iteration_bounds = array<i64: 2, 1>, scalar_prefetch = 0 : i64, scratch_operands = 0 : i64, tpu.core_type = #tpu.core_type<tc>, window_params = [{transform_indices = @transform_0, window_bounds = array<i64: 256, 576>}, {transform_indices = @transform_1, window_bounds = array<i64: 576, 64>}, {transform_indices = @transform_2, window_bounds = array<i64: 1, 64>}, {transform_indices = @transform_3, window_bounds = array<i64: 256, 64>}]} {
    %c0 = arith.constant 0 : index
    %c0_0 = arith.constant 0 : index
    %0 = vector.load %arg2[%c0, %c0_0] : memref<256x576xbf16, #tpu.memory_space<vmem>>, vector<256x576xbf16>
    %c0_1 = arith.constant 0 : index
    %c0_2 = arith.constant 0 : index
    %1 = vector.load %arg3[%c0_1, %c0_2] : memref<576x64xbf16, #tpu.memory_space<vmem>>, vector<576x64xbf16>
    %cst = arith.constant dense<0.000000e+00> : vector<256x64xf32>
    %2 = tpu.matmul %0, %1, %cst {dimension_numbers = #tpu.dot_dimension_numbers<[1], [0], [0], [1], [0, 0, 1, 1], [], []>} : vector<256x576xbf16>, vector<576x64xbf16>, vector<256x64xf32> -> vector<256x64xf32>
    %c0_3 = arith.constant 0 : index
    %c0_4 = arith.constant 0 : index
    %3 = vector.load %arg4[%c0_3, %c0_4] : memref<1x64xf32, #tpu.memory_space<vmem>>, vector<1x64xf32>
    %4 = vector.broadcast %3 : vector<1x64xf32> to vector<256x64xf32>
    %5 = arith.addf %2, %4 : vector<256x64xf32>
    %cst_5 = arith.constant 0.000000e+00 : f32
    %6 = vector.broadcast %cst_5 : f32 to vector<256x64xf32>
    %7 = arith.maximumf %5, %6 : vector<256x64xf32>
    %8 = arith.truncf %7 : vector<256x64xf32> to vector<256x64xbf16>
    %c0_6 = arith.constant 0 : index
    %c0_7 = arith.constant 0 : index
    %9 = vector.load %arg5[%c0_6, %c0_7] : memref<256x64xbf16, #tpu.memory_space<vmem>>, vector<256x64xbf16>
    tpu.vector_store %arg5[%c0_6, %c0_7], %8 {strides = array<i32>} : memref<256x64xbf16, #tpu.memory_space<vmem>>, vector<256x64xbf16>,
    return
  }
  func.func @transform_0(%arg0: i32, %arg1: i32) -> (i32, i32) {
    %c0_i32 = arith.constant 0 : i32
    %c0_i32_0 = arith.constant 0 : i32
    return %arg0, %c0_i32 : i32, i32
  }
  func.func @transform_1(%arg0: i32, %arg1: i32) -> (i32, i32) {
    %c0_i32 = arith.constant 0 : i32
    %c0_i32_0 = arith.constant 0 : i32
    return %c0_i32, %arg1 : i32, i32
  }
  func.func @transform_2(%arg0: i32, %arg1: i32) -> (i32, i32) {
    %c0_i32 = arith.constant 0 : i32
    %c0_i32_0 = arith.constant 0 : i32
    return %c0_i32, %arg1 : i32, i32
  }
  func.func @transform_3(%arg0: i32, %arg1: i32) -> (i32, i32) {
    %c0_i32 = arith.constant 0 : i32
    return %arg0, %arg1 : i32, i32
  }
}

module attributes {stable_mosaic.version = 11 : i64} {
  func.func @kernel(%arg0: i32, %arg1: i32, %arg2: memref<256x64xbf16, #tpu.memory_space<vmem>>, %arg3: memref<64x256xbf16, #tpu.memory_space<vmem>>, %arg4: memref<1x256xf32, #tpu.memory_space<vmem>>, %arg5: memref<256x256xbf16, #tpu.memory_space<vmem>>) attributes {dimension_semantics = [#tpu.dimension_semantics<parallel>, #tpu.dimension_semantics<parallel>], iteration_bounds = array<i64: 2, 1>, scalar_prefetch = 0 : i64, scratch_operands = 0 : i64, tpu.core_type = #tpu.core_type<tc>, window_params = [{transform_indices = @transform_0, window_bounds = array<i64: 256, 64>}, {transform_indices = @transform_1, window_bounds = array<i64: 64, 256>}, {transform_indices = @transform_2, window_bounds = array<i64: 1, 256>}, {transform_indices = @transform_3, window_bounds = array<i64: 256, 256>}]} {
    %c0 = arith.constant 0 : index
    %c0_0 = arith.constant 0 : index
    %0 = vector.load %arg2[%c0, %c0_0] : memref<256x64xbf16, #tpu.memory_space<vmem>>, vector<256x64xbf16>
    %c0_1 = arith.constant 0 : index
    %c0_2 = arith.constant 0 : index
    %1 = vector.load %arg3[%c0_1, %c0_2] : memref<64x256xbf16, #tpu.memory_space<vmem>>, vector<64x256xbf16>
    %cst = arith.constant dense<0.000000e+00> : vector<256x256xf32>
    %2 = tpu.matmul %0, %1, %cst {dimension_numbers = #tpu.dot_dimension_numbers<[1], [0], [0], [1], [0, 0, 1, 1], [], []>} : vector<256x64xbf16>, vector<64x256xbf16>, vector<256x256xf32> -> vector<256x256xf32>
    %c0_3 = arith.constant 0 : index
    %c0_4 = arith.constant 0 : index
    %3 = vector.load %arg4[%c0_3, %c0_4] : memref<1x256xf32, #tpu.memory_space<vmem>>, vector<1x256xf32>
    %4 = vector.broadcast %3 : vector<1x256xf32> to vector<256x256xf32>
    %5 = arith.addf %2, %4 : vector<256x256xf32>
    %6 = arith.truncf %5 : vector<256x256xf32> to vector<256x256xbf16>
    %c0_5 = arith.constant 0 : index
    %c0_6 = arith.constant 0 : index
    %7 = vector.load %arg5[%c0_5, %c0_6] : memref<256x256xbf16, #tpu.memory_space<vmem>>, vector<256x256xbf16>
    tpu.vector_store %arg5[%c0_5, %c0_6], %6 {strides = array<i32>} : memref<256x256xbf16, #tpu.memory_space<vmem>>, vector<256x256xbf16>,
    return
  }
  func.func @transform_0(%arg0: i32, %arg1: i32) -> (i32, i32) {
    %c0_i32 = arith.constant 0 : i32
    %c0_i32_0 = arith.constant 0 : i32
    return %arg0, %c0_i32 : i32, i32
  }
  func.func @transform_1(%arg0: i32, %arg1: i32) -> (i32, i32) {
    %c0_i32 = arith.constant 0 : i32
    %c0_i32_0 = arith.constant 0 : i32
    return %c0_i32, %arg1 : i32, i32
  }
  func.func @transform_2(%arg0: i32, %arg1: i32) -> (i32, i32) {
    %c0_i32 = arith.constant 0 : i32
    %c0_i32_0 = arith.constant 0 : i32
    return %c0_i32, %arg1 : i32, i32
  }
  func.func @transform_3(%arg0: i32, %arg1: i32) -> (i32, i32) {
    %c0_i32 = arith.constant 0 : i32
    return %arg0, %arg1 : i32, i32
  }
}

module attributes {stable_mosaic.version = 11 : i64} {
  func.func @kernel(%arg0: i32, %arg1: i32, %arg2: memref<256x64xbf16, #tpu.memory_space<vmem>>, %arg3: memref<64x256xbf16, #tpu.memory_space<vmem>>, %arg4: memref<1x256xf32, #tpu.memory_space<vmem>>, %arg5: memref<256x256xbf16, #tpu.memory_space<vmem>>, %arg6: memref<256x256xf32, #tpu.memory_space<vmem>>) attributes {dimension_semantics = [#tpu.dimension_semantics<parallel>, #tpu.dimension_semantics<parallel>], iteration_bounds = array<i64: 2, 1>, scalar_prefetch = 0 : i64, scratch_operands = 0 : i64, tpu.core_type = #tpu.core_type<tc>, window_params = [{transform_indices = @transform_0, window_bounds = array<i64: 256, 64>}, {transform_indices = @transform_1, window_bounds = array<i64: 64, 256>}, {transform_indices = @transform_2, window_bounds = array<i64: 1, 256>}, {transform_indices = @transform_3, window_bounds = array<i64: 256, 256>}, {transform_indices = @transform_4, window_bounds = array<i64: 256, 256>}]} {
    %c0 = arith.constant 0 : index
    %c0_0 = arith.constant 0 : index
    %0 = vector.load %arg2[%c0, %c0_0] : memref<256x64xbf16, #tpu.memory_space<vmem>>, vector<256x64xbf16>
    %c0_1 = arith.constant 0 : index
    %c0_2 = arith.constant 0 : index
    %1 = vector.load %arg3[%c0_1, %c0_2] : memref<64x256xbf16, #tpu.memory_space<vmem>>, vector<64x256xbf16>
    %cst = arith.constant dense<0.000000e+00> : vector<256x256xf32>
    %2 = tpu.matmul %0, %1, %cst {dimension_numbers = #tpu.dot_dimension_numbers<[1], [0], [0], [1], [0, 0, 1, 1], [], []>} : vector<256x64xbf16>, vector<64x256xbf16>, vector<256x256xf32> -> vector<256x256xf32>
    %c0_3 = arith.constant 0 : index
    %c0_4 = arith.constant 0 : index
    %3 = vector.load %arg4[%c0_3, %c0_4] : memref<1x256xf32, #tpu.memory_space<vmem>>, vector<1x256xf32>
    %4 = vector.broadcast %3 : vector<1x256xf32> to vector<256x256xf32>
    %5 = arith.addf %2, %4 : vector<256x256xf32>
    %c0_5 = arith.constant 0 : index
    %c0_6 = arith.constant 0 : index
    %6 = vector.load %arg5[%c0_5, %c0_6] : memref<256x256xbf16, #tpu.memory_space<vmem>>, vector<256x256xbf16>
    %7 = arith.extf %6 : vector<256x256xbf16> to vector<256x256xf32>
    %8 = arith.addf %5, %7 : vector<256x256xf32>
    %cst_7 = arith.constant 0.000000e+00 : f32
    %9 = vector.broadcast %cst_7 : f32 to vector<256x256xf32>
    %10 = arith.maximumf %8, %9 : vector<256x256xf32>
    %c0_8 = arith.constant 0 : index
    %c0_9 = arith.constant 0 : index
    %11 = vector.load %arg6[%c0_8, %c0_9] : memref<256x256xf32, #tpu.memory_space<vmem>>, vector<256x256xf32>
    tpu.vector_store %arg6[%c0_8, %c0_9], %10 {strides = array<i32>} : memref<256x256xf32, #tpu.memory_space<vmem>>, vector<256x256xf32>,
    return
  }
  func.func @transform_0(%arg0: i32, %arg1: i32) -> (i32, i32) {
    %c0_i32 = arith.constant 0 : i32
    %c0_i32_0 = arith.constant 0 : i32
    return %arg0, %c0_i32 : i32, i32
  }
  func.func @transform_1(%arg0: i32, %arg1: i32) -> (i32, i32) {
    %c0_i32 = arith.constant 0 : i32
    %c0_i32_0 = arith.constant 0 : i32
    return %c0_i32, %arg1 : i32, i32
  }
  func.func @transform_2(%arg0: i32, %arg1: i32) -> (i32, i32) {
    %c0_i32 = arith.constant 0 : i32
    %c0_i32_0 = arith.constant 0 : i32
    return %c0_i32, %arg1 : i32, i32
  }
  func.func @transform_3(%arg0: i32, %arg1: i32) -> (i32, i32) {
    %c0_i32 = arith.constant 0 : i32
    return %arg0, %arg1 : i32, i32
  }
  func.func @transform_4(%arg0: i32, %arg1: i32) -> (i32, i32) {
    %c0_i32 = arith.constant 0 : i32
    return %arg0, %arg1 : i32, i32
  }
}

</mosaic_0001>

<llo_original>
// kernel: bottleneck_forward.4
$region0: #{bottleneck_forward.4}
  #allocation0 [shape = 'u32[]', space=smem, size = 0x4, offset = 0x4, fixed_abs, tag = 'smem constant byte address 0x4 - core index']
  #allocation1 [shape = 'u32[144,128]{1,0:T(1,128)}', space=vmem, size = 0x12000, scoped, tag = 'internal scratch']
  %s0 = inlined_call_operand.vmem [shape: bf16[512,64], index: 0, kind: input, shape index: {}]
  %s1 = inlined_call_operand.vmem [shape: bf16[64,64], index: 1, kind: input, shape index: {}]
  %s2 = inlined_call_operand.vmem [shape: f32[1,64], index: 2, kind: input, shape index: {}]
  %s3 = inlined_call_operand.vmem [shape: bf16[512,64], index: 3, kind: output, shape index: {}]
  %s4 = sld [smem:[#allocation0]]
  $region45: #{bottleneck_forward.4} parent=0
    _
  %s6 = ssub.s32 1, %s4
  %s7 = scalar_select 0, %s6, %s4
  loop: start=0, step=1, limit=4
  $region2: #{bottleneck_forward.4} parent=0 // loop_pre_header
    _
  $region3: #{bottleneck_forward.4} parent=0 // loop_header
    %s9 = sphi 0, %s13
    %p10 = scmp.ge.s32.totalorder %s9, 4
    %s16 = sphi 0, %s28
    %s17 = sphi 0, %s24
    %s18 = sphi 0, %s16
    %s19 = sphi 0, %s17
    %s20 = sphi 0, %s18
    %s21 = sphi 0, %s19
    %s31 = sphi 0, %s33
    %s34 = sphi 0, %s31
    %s35 = sphi 0, %s34
    %s51 = sphi 0, %s35
    %s57 = sphi 0, %s59
    %s60 = sphi 0, %s57
    %s61 = sphi 0, %s60
    %s77 = sphi 0, %s61
    %s83 = sphi 0, %s85
    %s86 = sphi 0, %s83
    %s87 = sphi 0, %s86
    %s103 = sphi 0, %s87
    %s111 = sphi 0, %s113
    %s114 = sphi 0, %s111
    %s115 = sphi 0, %s114
    %s131 = sphi 0, %s115
  $region4: #{bottleneck_forward.4} parent=0 // loop_header_branch
    %12 = sbr.rel (%p10) target = $region8
  $region5: #{bottleneck_forward.4} parent=0 // loop_body
    %s14 = ssub.s32 %s9, 1
    %s15 = ssub.s32 %s9, 2
    %s22 = sadd.s32 1, %s17
    %p23 = scmp.ge.s32.totalorder %s22, 1
    %s24 = scalar_select %p23, 0, %s22
    %s25 = sadd.s32 1, %s16
    %s26 = scalar_select %p23, %s25, %s16
    %p27 = scmp.ge.s32.totalorder %s26, 2
    %s28 = scalar_select %p27, 0, %s26
    %s29 = ssub.s32 %s16, %s28
    %p30 = scmp.eq.s32.totalorder %s29, 0
    %s32 = sadd.s32 %s31, 1
    %s33 = scalar_select %p30, %s31, %s32
    %p36 = pneg %p30
    %p37 = scmp.eq.s32.totalorder %s9, 1
    %p38 = por %p36, %p37
    %p39 = scmp.ne.s32.totalorder %s31, %s34
    %p40 = scmp.eq.s32.totalorder %s9, 0
    %p41 = por %p39, %p40
    %p42 = scmp.ne.s32.totalorder %s31, %s34
    %p43 = scmp.eq.s32.totalorder %s14, 1
    %p44 = por %p42, %p43
    %p45 = scmp.ne.s32.totalorder %s34, %s35
    %p46 = scmp.eq.s32.totalorder %s14, 0
    %p47 = por %p45, %p46
    %p48 = scmp.ne.s32.totalorder %s34, %s35
    %p49 = scmp.eq.s32.totalorder %s15, 1
    %p50 = por %p48, %p49
    %p52 = scmp.ne.s32.totalorder %s35, %s51
    %p53 = scmp.eq.s32.totalorder %s15, 0
    %p54 = por %p52, %p53
    %s55 = ssub.s32 %s17, %s24
    %p56 = scmp.eq.s32.totalorder %s55, 0
    %s58 = sadd.s32 %s57, 1
    %s59 = scalar_select %p56, %s57, %s58
    %p62 = pneg %p56
    %p63 = scmp.eq.s32.totalorder %s9, 1
    %p64 = por %p62, %p63
    %p65 = scmp.ne.s32.totalorder %s57, %s60
    %p66 = scmp.eq.s32.totalorder %s9, 0
    %p67 = por %p65, %p66
    %p68 = scmp.ne.s32.totalorder %s57, %s60
    %p69 = scmp.eq.s32.totalorder %s14, 1
    %p70 = por %p68, %p69
    %p71 = scmp.ne.s32.totalorder %s60, %s61
    %p72 = scmp.eq.s32.totalorder %s14, 0
    %p73 = por %p71, %p72
    %p74 = scmp.ne.s32.totalorder %s60, %s61
    %p75 = scmp.eq.s32.totalorder %s15, 1
    %p76 = por %p74, %p75
    %p78 = scmp.ne.s32.totalorder %s61, %s77
    %p79 = scmp.eq.s32.totalorder %s15, 0
    %p80 = por %p78, %p79
    %s81 = ssub.s32 %s17, %s24
    %p82 = scmp.eq.s32.totalorder %s81, 0
    %s84 = sadd.s32 %s83, 1
    %s85 = scalar_select %p82, %s83, %s84
    %p88 = pneg %p82
    %p89 = scmp.eq.s32.totalorder %s9, 1
    %p90 = por %p88, %p89
    %p91 = scmp.ne.s32.totalorder %s83, %s86
    %p92 = scmp.eq.s32.totalorder %s9, 0
    %p93 = por %p91, %p92
    %p94 = scmp.ne.s32.totalorder %s83, %s86
    %p95 = scmp.eq.s32.totalorder %s14, 1
    %p96 = por %p94, %p95
    %p97 = scmp.ne.s32.totalorder %s86, %s87
    %p98 = scmp.eq.s32.totalorder %s14, 0
    %p99 = por %p97, %p98
    %p100 = scmp.ne.s32.totalorder %s86, %s87
    %p101 = scmp.eq.s32.totalorder %s15, 1
    %p102 = por %p100, %p101
    %p104 = scmp.ne.s32.totalorder %s87, %s103
    %p105 = scmp.eq.s32.totalorder %s15, 0
    %p106 = por %p104, %p105
    %s107 = ssub.s32 %s16, %s28
    %s108 = ssub.s32 %s17, %s24
    %s109 = sor.u32 %s107, %s108
    %p110 = scmp.eq.s32.totalorder %s109, 0
    %s112 = sadd.s32 %s111, 1
    %s113 = scalar_select %p110, %s111, %s112
    %p116 = pneg %p110
    %p117 = scmp.eq.s32.totalorder %s9, 1
    %p118 = por %p116, %p117
    %p119 = scmp.ne.s32.totalorder %s111, %s114
    %p120 = scmp.eq.s32.totalorder %s9, 0
    %p121 = por %p119, %p120
    %p122 = scmp.ne.s32.totalorder %s111, %s114
    %p123 = scmp.eq.s32.totalorder %s14, 1
    %p124 = por %p122, %p123
    %p125 = scmp.ne.s32.totalorder %s114, %s115
    %p126 = scmp.eq.s32.totalorder %s14, 0
    %p127 = por %p125, %p126
    %p128 = scmp.ne.s32.totalorder %s114, %s115
    %p129 = scmp.eq.s32.totalorder %s15, 1
    %p130 = por %p128, %p129
    %p132 = scmp.ne.s32.totalorder %s115, %s131
    %p133 = scmp.eq.s32.totalorder %s15, 0
    %p134 = por %p132, %p133
    %p135 = scmp.le.s32.totalorder 1, %s9
    %p136 = scmp.lt.s32.totalorder %s9, 3
    %p137 = pnand %p135, %p136
    %p138 = pneg %p137
    // Predicated region
    $region9: #{bottleneck_forward.4} parent=5 // pred_check
      _
    $region10: #{bottleneck_forward.4} parent=5 // pred_check_branch
      %140 = sbr.rel (%p137) target = $region12
    $region11: #{bottleneck_forward.4} parent=5 // pred_region
      %s141 = ssub.s32 %s9, 1
      // Predicated region
      $region13: #{bottleneck_forward.4} parent=11 // pred_check
        %p142 = pneg %p73
      $region14: #{bottleneck_forward.4} parent=11 // pred_check_branch
        %144 = sbr.rel (%p142) target = $region16
      $region15: #{bottleneck_forward.4} parent=11 // pred_region
        %p145 = scmp.lt.s32.totalorder %s19, 0
        %s146 = scalar_select %p145, %s19, 0
        %s147 = smul.addr %s146, 4
        %s148 = scalar_lea.vmem %s1, %s147
      $region16: #{bottleneck_forward.4} parent=11 // pred_fallthru
        _
      // Predicated region
      $region17: #{bottleneck_forward.4} parent=11 // pred_check
        %p149 = pneg %p99
      $region18: #{bottleneck_forward.4} parent=11 // pred_check_branch
        %151 = sbr.rel (%p149) target = $region20
      $region19: #{bottleneck_forward.4} parent=11 // pred_region
        %p152 = scmp.lt.s32.totalorder %s19, 0
        %s153 = scalar_select %p152, %s19, 0
        %s154 = scalar_lea.vmem %s2, %s153
      $region20: #{bottleneck_forward.4} parent=11 // pred_fallthru
        _
    $region12: #{bottleneck_forward.4} parent=5 // pred_fallthru
      _
    %p155 = scmp.lt.s32.totalorder %s9, 2
    // Predicated region
    $region21: #{bottleneck_forward.4} parent=5 // pred_check
      %p156 = pneg %p155
    $region22: #{bottleneck_forward.4} parent=5 // pred_check_branch
      %158 = sbr.rel (%p156) target = $region24
    $region23: #{bottleneck_forward.4} parent=5 // pred_region
      // Predicated region
      $region25: #{bottleneck_forward.4} parent=23 // pred_check
        %p159 = pneg %p41
      $region26: #{bottleneck_forward.4} parent=23 // pred_check_branch
        %161 = sbr.rel (%p159) target = $region28
      $region27: #{bottleneck_forward.4} parent=23 // pred_region
        %s162 = smul.u32 32, %s16
        %p163 = scmp.lt.s32.totalorder %s162, 63
        %s164 = scalar_select %p163, %s162, 63
        %s165 = smul.addr %s164, 4
        %s166 = scalar_lea.vmem %s0, %s165
        %s167 = smul.u32 32, %s16
      $region28: #{bottleneck_forward.4} parent=23 // pred_fallthru
        _
    $region24: #{bottleneck_forward.4} parent=5 // pred_fallthru
      _
    %p168 = scmp.le.s32.totalorder 1, %s9
    %p169 = scmp.lt.s32.totalorder %s9, 3
    %p170 = pnand %p168, %p169
    %p171 = pneg %p170
    // Predicated region
    $region29: #{bottleneck_forward.4} parent=5 // pred_check
      _
    $region30: #{bottleneck_forward.4} parent=5 // pred_check_branch
      %173 = sbr.rel (%p170) target = $region32
    $region31: #{bottleneck_forward.4} parent=5 // pred_region
      %s174 = ssub.s32 %s9, 1
      %s175 = smul.u32 32, %s18
      %p176 = scmp.lt.s32.totalorder %s175, 63
      %s177 = scalar_select %p176, %s175, 63
      %s178 = smul.addr %s177, 4
      %s179 = scalar_lea.vmem %s0, %s178
      %p180 = pneg %p47
      %p181 = pneg %p44
      %p182 = scmp.lt.s32.totalorder %s19, 0
      %s183 = scalar_select %p182, %s19, 0
      %s184 = smul.addr %s183, 4
      %s185 = scalar_lea.vmem %s1, %s184
      %p186 = pneg %p73
      %p187 = pneg %p70
      %p188 = scmp.lt.s32.totalorder %s19, 0
      %s189 = scalar_select %p188, %s19, 0
      %s190 = scalar_lea.vmem %s2, %s189
      %p191 = pneg %p99
      %p192 = pneg %p96
      %p193 = pneg %p127
      %p194 = pneg %p124
      %s195 = smul.u32 32, %s18
      %p196 = scmp.lt.s32.totalorder %s195, 63
      %s197 = scalar_select %p196, %s195, 63
      %p198 = scmp.lt.s32.totalorder %s19, 0
      %s199 = scalar_select %p198, %s19, 0
      %s200 = sadd.s32 %s199, %s197
      %s201 = smul.addr %s200, 4
      %s202 = scalar_lea.vmem %s3, %s201
      %s203 = smul.u32 32, %s18
      %p204 = scmp.lt.s32.totalorder %s203, 63
      %s205 = scalar_select %p204, %s203, 63
      %s206 = smul.addr %s205, 4
      %s207 = scalar_lea.vmem %s0, %s206
      %s208 = smul.u32 32, %s18
      %p209 = scmp.lt.s32.totalorder %s19, 0
      %s210 = scalar_select %p209, %s19, 0
      %s211 = smul.addr %s210, 4
      %s212 = scalar_lea.vmem %s1, %s211
      %p213 = scmp.lt.s32.totalorder %s19, 0
      %s214 = scalar_select %p213, %s19, 0
      %s215 = scalar_lea.vmem %s2, %s214
      %s216 = smul.u32 32, %s18
      %p217 = scmp.lt.s32.totalorder %s216, 63
      %s218 = scalar_select %p217, %s216, 63
      %p219 = scmp.lt.s32.totalorder %s19, 0
      %s220 = scalar_select %p219, %s19, 0
      %s221 = sadd.s32 %s220, %s218
      %s222 = smul.addr %s221, 4
      %s223 = scalar_lea.vmem %s3, %s222
      %s224 = smul.u32 32, %s18
      %v226 = vld [vmem:[%s207] sm:$0xf]
      %v227 = vld [vmem:[%s207 + $0x4] sm:$0xf]
      %v228 = vld [vmem:[%s207 + $0x8] sm:$0xf]
      %v229 = vld [vmem:[%s207 + $0xc] sm:$0xf]
      %v230 = vld [vmem:[%s207 + $0x10] sm:$0xf]
      %v231 = vld [vmem:[%s207 + $0x14] sm:$0xf]
      %v232 = vld [vmem:[%s207 + $0x18] sm:$0xf]
      %v233 = vld [vmem:[%s207 + $0x1c] sm:$0xf]
      %v234 = vld [vmem:[%s207 + $0x20] sm:$0xf]
      %v235 = vld [vmem:[%s207 + $0x24] sm:$0xf]
      %v236 = vld [vmem:[%s207 + $0x28] sm:$0xf]
      %v237 = vld [vmem:[%s207 + $0x2c] sm:$0xf]
      %v238 = vld [vmem:[%s207 + $0x30] sm:$0xf]
      %v239 = vld [vmem:[%s207 + $0x34] sm:$0xf]
      %v240 = vld [vmem:[%s207 + $0x38] sm:$0xf]
      %v241 = vld [vmem:[%s207 + $0x3c] sm:$0xf]
      %v242 = vld [vmem:[%s207 + $0x40] sm:$0xf]
      %v243 = vld [vmem:[%s207 + $0x44] sm:$0xf]
      %v244 = vld [vmem:[%s207 + $0x48] sm:$0xf]
      %v245 = vld [vmem:[%s207 + $0x4c] sm:$0xf]
      %v246 = vld [vmem:[%s207 + $0x50] sm:$0xf]
      %v247 = vld [vmem:[%s207 + $0x54] sm:$0xf]
      %v248 = vld [vmem:[%s207 + $0x58] sm:$0xf]
      %v249 = vld [vmem:[%s207 + $0x5c] sm:$0xf]
      %v250 = vld [vmem:[%s207 + $0x60] sm:$0xf]
      %v251 = vld [vmem:[%s207 + $0x64] sm:$0xf]
      %v252 = vld [vmem:[%s207 + $0x68] sm:$0xf]
      %v253 = vld [vmem:[%s207 + $0x6c] sm:$0xf]
      %v254 = vld [vmem:[%s207 + $0x70] sm:$0xf]
      %v255 = vld [vmem:[%s207 + $0x74] sm:$0xf]
      %v256 = vld [vmem:[%s207 + $0x78] sm:$0xf]
      %v257 = vld [vmem:[%s207 + $0x7c] sm:$0xf]
      %v258 = vld [vmem:[%s212] sm:$0xf]
      %v259 = vld [vmem:[%s212 + $0x4] sm:$0xf]
      %v260 = vld [vmem:[%s212 + $0x8] sm:$0xf]
      %v261 = vld [vmem:[%s212 + $0xc] sm:$0xf]
      %v262 = vld [vmem:[%s212 + $0x10] sm:$0xf]
      %v263 = vld [vmem:[%s212 + $0x14] sm:$0xf]
      %v264 = vld [vmem:[%s212 + $0x18] sm:$0xf]
      %v265 = vld [vmem:[%s212 + $0x1c] sm:$0xf]
      %v266 = vld [vmem:[%s215] sm:$0x1]
      %v268 = vlaneseq
      %v269 = vshrl.u32 %v268, 7
      %v270 = vsub.s32 0, %v269
      %v271 = vrot.slane %v266, %v270
      %v305 = vunpack.c.l.b16 %v226
      %v306 = vunpack.c.l.b16 %v227
      %v307 = vunpack.c.l.b16 %v228
      %v308 = vunpack.c.l.b16 %v229
      %v309 = vunpack.c.l.b16 %v230
      %v310 = vunpack.c.l.b16 %v231
      %v311 = vunpack.c.l.b16 %v232
      %v312 = vunpack.c.l.b16 %v233
      %v313 = vunpack.c.l.b16 %v234
      %v314 = vunpack.c.l.b16 %v235
      %v315 = vunpack.c.l.b16 %v236
      %v316 = vunpack.c.l.b16 %v237
      %v317 = vunpack.c.l.b16 %v238
      %v318 = vunpack.c.l.b16 %v239
      %v319 = vunpack.c.l.b16 %v240
      %v320 = vunpack.c.l.b16 %v241
      %v321 = vunpack.c.l.b16 %v242
      %v322 = vunpack.c.l.b16 %v243
      %v323 = vunpack.c.l.b16 %v244
      %v324 = vunpack.c.l.b16 %v245
      %v325 = vunpack.c.l.b16 %v246
      %v326 = vunpack.c.l.b16 %v247
      %v327 = vunpack.c.l.b16 %v248
      %v328 = vunpack.c.l.b16 %v249
      %v329 = vunpack.c.l.b16 %v250
      %v330 = vunpack.c.l.b16 %v251
      %v331 = vunpack.c.l.b16 %v252
      %v332 = vunpack.c.l.b16 %v253
      %v333 = vunpack.c.l.b16 %v254
      %v334 = vunpack.c.l.b16 %v255
      %v335 = vunpack.c.l.b16 %v256
      %v336 = vunpack.c.l.b16 %v257
      %v337 = vpack.c.b16 %v306, %v305
      %v338 = vpack.c.b16 %v308, %v307
      %v339 = vpack.c.b16 %v310, %v309
      %v340 = vpack.c.b16 %v312, %v311
      %v341 = vpack.c.b16 %v314, %v313
      %v342 = vpack.c.b16 %v316, %v315
      %v343 = vpack.c.b16 %v318, %v317
      %v344 = vpack.c.b16 %v320, %v319
      %v345 = vpack.c.b16 %v322, %v321
      %v346 = vpack.c.b16 %v324, %v323
      %v347 = vpack.c.b16 %v326, %v325
      %v348 = vpack.c.b16 %v328, %v327
      %v349 = vpack.c.b16 %v330, %v329
      %v350 = vpack.c.b16 %v332, %v331
      %v351 = vpack.c.b16 %v334, %v333
      %v352 = vpack.c.b16 %v336, %v335
      %v361 = vunpack.c.l.b16 %v258
      %v362 = vunpack.c.l.b16 %v259
      %v363 = vunpack.c.l.b16 %v260
      %v364 = vunpack.c.l.b16 %v261
      %v365 = vunpack.c.l.b16 %v262
      %v366 = vunpack.c.l.b16 %v263
      %v367 = vunpack.c.l.b16 %v264
      %v368 = vunpack.c.l.b16 %v265
      %v369 = vpack.c.b16 %v362, %v361
      %v370 = vpack.c.b16 %v364, %v363
      %v371 = vpack.c.b16 %v366, %v365
      %v372 = vpack.c.b16 %v368, %v367
      %vm377 = vcmask 523264
      %v379 = vsel %vm377, %v337, 0
      %v382 = vsel %vm377, %v338, 0
      %v385 = vsel %vm377, %v339, 0
      %v388 = vsel %vm377, %v340, 0
      %v391 = vsel %vm377, %v341, 0
      %v394 = vsel %vm377, %v342, 0
      %v397 = vsel %vm377, %v343, 0
      %v400 = vsel %vm377, %v344, 0
      %v403 = vsel %vm377, %v345, 0
      %v406 = vsel %vm377, %v346, 0
      %v409 = vsel %vm377, %v347, 0
      %v412 = vsel %vm377, %v348, 0
      %v415 = vsel %vm377, %v349, 0
      %v418 = vsel %vm377, %v350, 0
      %v421 = vsel %vm377, %v351, 0
      %v424 = vsel %vm377, %v352, 0
      %426 = vmatprep.subr.bf16.mxu0 0
      %427 = vmatpush1.bf16.msra.mxu0 %v369
      %428 = vmatprep.subr.bf16.mxu0 0
      %429 = vmatpush1.bf16.msra.mxu0 %v370
      %430 = vmatprep.subr.bf16.mxu0 0
      %431 = vmatpush1.bf16.msra.mxu0 %v371
      %432 = vmatprep.subr.bf16.mxu0 0
      %433 = vmatpush1.bf16.msra.mxu0 %v372
      %434 = vmatprep.subr.bf16.mxu0 0
      %435 = vmatpush1.bf16.msra.mxu0 0
      %436 = vmatprep.subr.bf16.mxu0 0
      %437 = vmatpush1.bf16.msra.mxu0 0
      %438 = vmatprep.subr.bf16.mxu0 0
      %439 = vmatpush1.bf16.msra.mxu0 0
      %440 = vmatprep.subr.bf16.mxu0 0
      %441 = vmatpush1.bf16.msra.mxu0 0
      %442 = vmatprep.subr.bf16.mxu0 0
      %443 = vmatpush1.bf16.msra.mxu0 0
      %444 = vmatprep.subr.bf16.mxu0 0
      %445 = vmatpush1.bf16.msra.mxu0 0
      %446 = vmatprep.subr.bf16.mxu0 0
      %447 = vmatpush1.bf16.msra.mxu0 0
      %448 = vmatprep.subr.bf16.mxu0 0
      %449 = vmatpush1.bf16.msra.mxu0 0
      %450 = vmatprep.subr.bf16.mxu0 0
      %451 = vmatpush1.bf16.msra.mxu0 0
      %452 = vmatprep.subr.bf16.mxu0 0
      %453 = vmatpush1.bf16.msra.mxu0 0
      %454 = vmatprep.subr.bf16.mxu0 0
      %455 = vmatpush1.bf16.msra.mxu0 0
      %456 = vmatprep.subr.bf16.mxu0 0
      %457 = vmatpush1.bf16.msra.mxu0 0
      %458 = vmatprep.mubr.bf16.mxu0 0
      %459 = vmatmul.mubr.bf16.gmra.mrb[0].mxu0 %v379
      %v460 = vpop.f32.mrb[0].mxu0
      %v461 = vadd.f32 %v271, %v460
      %v462 = vpop.f32.mrb[0].mxu0
      %v463 = vpop.f32.mrb[0].mxu0
      %v464 = vadd.f32 %v271, %v463
      %v465 = vpop.f32.mrb[0].mxu0
      %466 = vmatprep.mubr.bf16.mxu0 0
      %467 = vmatmul.mubr.bf16.gmra.mrb[0].mxu0 %v382
      %v468 = vpop.f32.mrb[0].mxu0
      %v469 = vadd.f32 %v271, %v468
      %v470 = vpop.f32.mrb[0].mxu0
      %v471 = vpop.f32.mrb[0].mxu0
      %v472 = vadd.f32 %v271, %v471
      %v473 = vpop.f32.mrb[0].mxu0
      %474 = vmatprep.mubr.bf16.mxu0 0
      %475 = vmatmul.mubr.bf16.gmra.mrb[0].mxu0 %v385
      %v476 = vpop.f32.mrb[0].mxu0
      %v477 = vadd.f32 %v271, %v476
      %v478 = vpop.f32.mrb[0].mxu0
      %v479 = vpop.f32.mrb[0].mxu0
      %v480 = vadd.f32 %v271, %v479
      %v481 = vpop.f32.mrb[0].mxu0
      %482 = vmatprep.mubr.bf16.mxu0 0
      %483 = vmatmul.mubr.bf16.gmra.mrb[0].mxu0 %v388
      %v484 = vpop.f32.mrb[0].mxu0
      %v485 = vadd.f32 %v271, %v484
      %v486 = vpop.f32.mrb[0].mxu0
      %v487 = vpop.f32.mrb[0].mxu0
      %v488 = vadd.f32 %v271, %v487
      %v489 = vpop.f32.mrb[0].mxu0
      %490 = vmatprep.mubr.bf16.mxu0 0
      %491 = vmatmul.mubr.bf16.gmra.mrb[0].mxu0 %v391
      %v492 = vpop.f32.mrb[0].mxu0
      %v493 = vadd.f32 %v271, %v492
      %v494 = vpop.f32.mrb[0].mxu0
      %v495 = vpop.f32.mrb[0].mxu0
      %v496 = vadd.f32 %v271, %v495
      %v497 = vpop.f32.mrb[0].mxu0
      %498 = vmatprep.mubr.bf16.mxu0 0
      %499 = vmatmul.mubr.bf16.gmra.mrb[0].mxu0 %v394
      %v500 = vpop.f32.mrb[0].mxu0
      %v501 = vadd.f32 %v271, %v500
      %v502 = vpop.f32.mrb[0].mxu0
      %v503 = vpop.f32.mrb[0].mxu0
      %v504 = vadd.f32 %v271, %v503
      %v505 = vpop.f32.mrb[0].mxu0
      %506 = vmatprep.mubr.bf16.mxu0 0
      %507 = vmatmul.mubr.bf16.gmra.mrb[0].mxu0 %v397
      %v508 = vpop.f32.mrb[0].mxu0
      %v509 = vadd.f32 %v271, %v508
      %v510 = vpop.f32.mrb[0].mxu0
      %v511 = vpop.f32.mrb[0].mxu0
      %v512 = vadd.f32 %v271, %v511
      %v513 = vpop.f32.mrb[0].mxu0
      %514 = vmatprep.mubr.bf16.mxu0 0
      %515 = vmatmul.mubr.bf16.gmra.mrb[0].mxu0 %v400
      %v516 = vpop.f32.mrb[0].mxu0
      %v517 = vadd.f32 %v271, %v516
      %v518 = vpop.f32.mrb[0].mxu0
      %v519 = vpop.f32.mrb[0].mxu0
      %v520 = vadd.f32 %v271, %v519
      %v521 = vpop.f32.mrb[0].mxu0
      %522 = vmatprep.mubr.bf16.mxu0 0
      %523 = vmatmul.mubr.bf16.gmra.mrb[0].mxu0 %v403
      %v524 = vpop.f32.mrb[0].mxu0
      %v525 = vadd.f32 %v271, %v524
      %v526 = vpop.f32.mrb[0].mxu0
      %v527 = vpop.f32.mrb[0].mxu0
      %v528 = vadd.f32 %v271, %v527
      %v529 = vpop.f32.mrb[0].mxu0
      %530 = vmatprep.mubr.bf16.mxu0 0
      %531 = vmatmul.mubr.bf16.gmra.mrb[0].mxu0 %v406
      %v532 = vpop.f32.mrb[0].mxu0
      %v533 = vadd.f32 %v271, %v532
      %v534 = vpop.f32.mrb[0].mxu0
      %v535 = vpop.f32.mrb[0].mxu0
      %v536 = vadd.f32 %v271, %v535
      %v537 = vpop.f32.mrb[0].mxu0
      %538 = vmatprep.mubr.bf16.mxu0 0
      %539 = vmatmul.mubr.bf16.gmra.mrb[0].mxu0 %v409
      %v540 = vpop.f32.mrb[0].mxu0
      %v541 = vadd.f32 %v271, %v540
      %v542 = vpop.f32.mrb[0].mxu0
      %v543 = vpop.f32.mrb[0].mxu0
      %v544 = vadd.f32 %v271, %v543
      %v545 = vpop.f32.mrb[0].mxu0
      %546 = vmatprep.mubr.bf16.mxu0 0
      %547 = vmatmul.mubr.bf16.gmra.mrb[0].mxu0 %v412
      %v548 = vpop.f32.mrb[0].mxu0
      %v549 = vadd.f32 %v271, %v548
      %v550 = vpop.f32.mrb[0].mxu0
      %v551 = vpop.f32.mrb[0].mxu0
      %v552 = vadd.f32 %v271, %v551
      %v553 = vpop.f32.mrb[0].mxu0
      %554 = vmatprep.mubr.bf16.mxu0 0
      %555 = vmatmul.mubr.bf16.gmra.mrb[0].mxu0 %v415
      %v556 = vpop.f32.mrb[0].mxu0
      %v557 = vadd.f32 %v271, %v556
      %v558 = vpop.f32.mrb[0].mxu0
      %v559 = vpop.f32.mrb[0].mxu0
      %v560 = vadd.f32 %v271, %v559
      %v561 = vpop.f32.mrb[0].mxu0
      %562 = vmatprep.mubr.bf16.mxu0 0
      %563 = vmatmul.mubr.bf16.gmra.mrb[0].mxu0 %v418
      %v564 = vpop.f32.mrb[0].mxu0
      %v565 = vadd.f32 %v271, %v564
      %v566 = vpop.f32.mrb[0].mxu0
      %v567 = vpop.f32.mrb[0].mxu0
      %v568 = vadd.f32 %v271, %v567
      %v569 = vpop.f32.mrb[0].mxu0
      %570 = vmatprep.mubr.bf16.mxu0 0
      %571 = vmatmul.mubr.bf16.gmra.mrb[0].mxu0 %v421
      %v572 = vpop.f32.mrb[0].mxu0
      %v573 = vadd.f32 %v271, %v572
      %v574 = vpop.f32.mrb[0].mxu0
      %v575 = vpop.f32.mrb[0].mxu0
      %v576 = vadd.f32 %v271, %v575
      %v577 = vpop.f32.mrb[0].mxu0
      %578 = vmatprep.mubr.bf16.mxu0 0
      %579 = vmatmul.mubr.bf16.gmra.mrb[0].mxu0 %v424
      %v580 = vpop.f32.mrb[0].mxu0
      %v581 = vadd.f32 %v271, %v580
      %v582 = vpop.f32.mrb[0].mxu0
      %v583 = vpop.f32.mrb[0].mxu0
      %v584 = vadd.f32 %v271, %v583
      %v585 = vpop.f32.mrb[0].mxu0
      %586 = vdwg.mxu0
      %v587 = vmax.f32 %v461, 0.0
      %v588 = vmax.f32 %v464, 0.0
      %v589 = vmax.f32 %v469, 0.0
      %v590 = vmax.f32 %v472, 0.0
      %v591 = vmax.f32 %v477, 0.0
      %v592 = vmax.f32 %v480, 0.0
      %v593 = vmax.f32 %v485, 0.0
      %v594 = vmax.f32 %v488, 0.0
      %v595 = vmax.f32 %v493, 0.0
      %v596 = vmax.f32 %v496, 0.0
      %v597 = vmax.f32 %v501, 0.0
      %v598 = vmax.f32 %v504, 0.0
      %v599 = vmax.f32 %v509, 0.0
      %v600 = vmax.f32 %v512, 0.0
      %v601 = vmax.f32 %v517, 0.0
      %v602 = vmax.f32 %v520, 0.0
      %v603 = vmax.f32 %v525, 0.0
      %v604 = vmax.f32 %v528, 0.0
      %v605 = vmax.f32 %v533, 0.0
      %v606 = vmax.f32 %v536, 0.0
      %v607 = vmax.f32 %v541, 0.0
      %v608 = vmax.f32 %v544, 0.0
      %v609 = vmax.f32 %v549, 0.0
      %v610 = vmax.f32 %v552, 0.0
      %v611 = vmax.f32 %v557, 0.0
      %v612 = vmax.f32 %v560, 0.0
      %v613 = vmax.f32 %v565, 0.0
      %v614 = vmax.f32 %v568, 0.0
      %v615 = vmax.f32 %v573, 0.0
      %v616 = vmax.f32 %v576, 0.0
      %v617 = vmax.f32 %v581, 0.0
      %v618 = vmax.f32 %v584, 0.0
      %v619 = vpack.c.bf16 %v588, %v587
      %v620 = vpack.c.bf16 %v590, %v589
      %v621 = vpack.c.bf16 %v592, %v591
      %v622 = vpack.c.bf16 %v594, %v593
      %v623 = vpack.c.bf16 %v596, %v595
      %v624 = vpack.c.bf16 %v598, %v597
      %v625 = vpack.c.bf16 %v600, %v599
      %v626 = vpack.c.bf16 %v602, %v601
      %v627 = vpack.c.bf16 %v604, %v603
      %v628 = vpack.c.bf16 %v606, %v605
      %v629 = vpack.c.bf16 %v608, %v607
      %v630 = vpack.c.bf16 %v610, %v609
      %v631 = vpack.c.bf16 %v612, %v611
      %v632 = vpack.c.bf16 %v614, %v613
      %v633 = vpack.c.bf16 %v616, %v615
      %v634 = vpack.c.bf16 %v618, %v617
      %v651 = vunpack.c.l.b16 %v619
      %v652 = vunpack.c.h.b16 %v619
      %v653 = vunpack.c.l.b16 %v620
      %v654 = vunpack.c.h.b16 %v620
      %v655 = vunpack.c.l.b16 %v621
      %v656 = vunpack.c.h.b16 %v621
      %v657 = vunpack.c.l.b16 %v622
      %v658 = vunpack.c.h.b16 %v622
      %v659 = vunpack.c.l.b16 %v623
      %v660 = vunpack.c.h.b16 %v623
      %v661 = vunpack.c.l.b16 %v624
      %v662 = vunpack.c.h.b16 %v624
      %v663 = vunpack.c.l.b16 %v625
      %v664 = vunpack.c.h.b16 %v625
      %v665 = vunpack.c.l.b16 %v626
      %v666 = vunpack.c.h.b16 %v626
      %v667 = vunpack.c.l.b16 %v627
      %v668 = vunpack.c.h.b16 %v627
      %v669 = vunpack.c.l.b16 %v628
      %v670 = vunpack.c.h.b16 %v628
      %v671 = vunpack.c.l.b16 %v629
      %v672 = vunpack.c.h.b16 %v629
      %v673 = vunpack.c.l.b16 %v630
      %v674 = vunpack.c.h.b16 %v630
      %v675 = vunpack.c.l.b16 %v631
      %v676 = vunpack.c.h.b16 %v631
      %v677 = vunpack.c.l.b16 %v632
      %v678 = vunpack.c.h.b16 %v632
      %v679 = vunpack.c.l.b16 %v633
      %v680 = vunpack.c.h.b16 %v633
      %v681 = vunpack.c.l.b16 %v634
      %v682 = vunpack.c.h.b16 %v634
      %v683 = vpack.c.b16 %v651, %v651
      %v684 = vpack.c.b16 %v652, %v652
      %v685 = vpack.c.b16 %v653, %v653
      %v686 = vpack.c.b16 %v654, %v654
      %v687 = vpack.c.b16 %v655, %v655
      %v688 = vpack.c.b16 %v656, %v656
      %v689 = vpack.c.b16 %v657, %v657
      %v690 = vpack.c.b16 %v658, %v658
      %v691 = vpack.c.b16 %v659, %v659
      %v692 = vpack.c.b16 %v660, %v660
      %v693 = vpack.c.b16 %v661, %v661
      %v694 = vpack.c.b16 %v662, %v662
      %v695 = vpack.c.b16 %v663, %v663
      %v696 = vpack.c.b16 %v664, %v664
      %v697 = vpack.c.b16 %v665, %v665
      %v698 = vpack.c.b16 %v666, %v666
      %v699 = vpack.c.b16 %v667, %v667
      %v700 = vpack.c.b16 %v668, %v668
      %v701 = vpack.c.b16 %v669, %v669
      %v702 = vpack.c.b16 %v670, %v670
      %v703 = vpack.c.b16 %v671, %v671
      %v704 = vpack.c.b16 %v672, %v672
      %v705 = vpack.c.b16 %v673, %v673
      %v706 = vpack.c.b16 %v674, %v674
      %v707 = vpack.c.b16 %v675, %v675
      %v708 = vpack.c.b16 %v676, %v676
      %v709 = vpack.c.b16 %v677, %v677
      %v710 = vpack.c.b16 %v678, %v678
      %v711 = vpack.c.b16 %v679, %v679
      %v712 = vpack.c.b16 %v680, %v680
      %v713 = vpack.c.b16 %v681, %v681
      %v714 = vpack.c.b16 %v682, %v682
      %vm747 = vcmask 519168
      %748 = vst.msk [vmem:[%s223] sm:$0xf] %vm747, %v683
      %749 = vst.msk [vmem:[%s223 + $0x4] sm:$0xf] %vm747, %v684
      %750 = vst.msk [vmem:[%s223 + $0x8] sm:$0xf] %vm747, %v685
      %751 = vst.msk [vmem:[%s223 + $0xc] sm:$0xf] %vm747, %v686
      %752 = vst.msk [vmem:[%s223 + $0x10] sm:$0xf] %vm747, %v687
      %753 = vst.msk [vmem:[%s223 + $0x14] sm:$0xf] %vm747, %v688
      %754 = vst.msk [vmem:[%s223 + $0x18] sm:$0xf] %vm747, %v689
      %755 = vst.msk [vmem:[%s223 + $0x1c] sm:$0xf] %vm747, %v690
      %756 = vst.msk [vmem:[%s223 + $0x20] sm:$0xf] %vm747, %v691
      %757 = vst.msk [vmem:[%s223 + $0x24] sm:$0xf] %vm747, %v692
      %758 = vst.msk [vmem:[%s223 + $0x28] sm:$0xf] %vm747, %v693
      %759 = vst.msk [vmem:[%s223 + $0x2c] sm:$0xf] %vm747, %v694
      %760 = vst.msk [vmem:[%s223 + $0x30] sm:$0xf] %vm747, %v695
      %761 = vst.msk [vmem:[%s223 + $0x34] sm:$0xf] %vm747, %v696
      %762 = vst.msk [vmem:[%s223 + $0x38] sm:$0xf] %vm747, %v697
      %763 = vst.msk [vmem:[%s223 + $0x3c] sm:$0xf] %vm747, %v698
      %764 = vst.msk [vmem:[%s223 + $0x40] sm:$0xf] %vm747, %v699
      %765 = vst.msk [vmem:[%s223 + $0x44] sm:$0xf] %vm747, %v700
      %766 = vst.msk [vmem:[%s223 + $0x48] sm:$0xf] %vm747, %v701
      %767 = vst.msk [vmem:[%s223 + $0x4c] sm:$0xf] %vm747, %v702
      %768 = vst.msk [vmem:[%s223 + $0x50] sm:$0xf] %vm747, %v703
      %769 = vst.msk [vmem:[%s223 + $0x54] sm:$0xf] %vm747, %v704
      %770 = vst.msk [vmem:[%s223 + $0x58] sm:$0xf] %vm747, %v705
      %771 = vst.msk [vmem:[%s223 + $0x5c] sm:$0xf] %vm747, %v706
      %772 = vst.msk [vmem:[%s223 + $0x60] sm:$0xf] %vm747, %v707
      %773 = vst.msk [vmem:[%s223 + $0x64] sm:$0xf] %vm747, %v708
      %774 = vst.msk [vmem:[%s223 + $0x68] sm:$0xf] %vm747, %v709
      %775 = vst.msk [vmem:[%s223 + $0x6c] sm:$0xf] %vm747, %v710
      %776 = vst.msk [vmem:[%s223 + $0x70] sm:$0xf] %vm747, %v711
      %777 = vst.msk [vmem:[%s223 + $0x74] sm:$0xf] %vm747, %v712
      %778 = vst.msk [vmem:[%s223 + $0x78] sm:$0xf] %vm747, %v713
      %779 = vst.msk [vmem:[%s223 + $0x7c] sm:$0xf] %vm747, %v714
      %s780 = smul.u32 32, %s18
      %p781 = scmp.lt.s32.totalorder %s780, 63
      %s782 = scalar_select %p781, %s780, 63
      %p783 = scmp.lt.s32.totalorder %s19, 0
      %s784 = scalar_select %p783, %s19, 0
      %s785 = sadd.s32 %s784, %s782
      %s786 = smul.addr %s785, 4
      %s787 = scalar_lea.vmem %s3, %s786
      // Predicated region
      $region33: #{bottleneck_forward.4} parent=31 // pred_check
        %p788 = pneg %p124
      $region34: #{bottleneck_forward.4} parent=31 // pred_check_branch
        %790 = sbr.rel (%p788) target = $region36
      $region35: #{bottleneck_forward.4} parent=31 // pred_region
        %s791 = smul.u32 32, %s18
      $region36: #{bottleneck_forward.4} parent=31 // pred_fallthru
        _
    $region32: #{bottleneck_forward.4} parent=5 // pred_fallthru
      _
    %p792 = scmp.le.s32.totalorder 2, %s9
    // Predicated region
    $region37: #{bottleneck_forward.4} parent=5 // pred_check
      %p793 = pneg %p792
    $region38: #{bottleneck_forward.4} parent=5 // pred_check_branch
      %795 = sbr.rel (%p793) target = $region40
    $region39: #{bottleneck_forward.4} parent=5 // pred_region
      %s796 = ssub.s32 %s9, 2
      // Predicated region
      $region41: #{bottleneck_forward.4} parent=39 // pred_check
        %p797 = pneg %p130
      $region42: #{bottleneck_forward.4} parent=39 // pred_check_branch
        %799 = sbr.rel (%p797) target = $region44
      $region43: #{bottleneck_forward.4} parent=39 // pred_region
        %s800 = smul.u32 32, %s20
        %p801 = scmp.lt.s32.totalorder %s800, 63
        %s802 = scalar_select %p801, %s800, 63
        %p803 = scmp.lt.s32.totalorder %s21, 0
        %s804 = scalar_select %p803, %s21, 0
        %s805 = sadd.s32 %s804, %s802
        %s806 = smul.addr %s805, 4
        %s807 = scalar_lea.vmem %s3, %s806
      $region44: #{bottleneck_forward.4} parent=39 // pred_fallthru
        _
    $region40: #{bottleneck_forward.4} parent=5 // pred_fallthru
      _
  $region6: #{bottleneck_forward.4} parent=0 // loop_footer
    %s13 = sadd.s32 1, %s9
  $region7: #{bottleneck_forward.4} parent=0 // loop_footer_branch
    %8 = sbr.rel target = $region3
  $region8: #{bottleneck_forward.4} parent=0 // loop_exit
    _

// kernel: bottleneck_forward.5
$region0: #{bottleneck_forward.5}
  #allocation0 [shape = 'u32[]', space=smem, size = 0x4, offset = 0x4, fixed_abs, tag = 'smem constant byte address 0x4 - core index']
  #allocation1 [shape = 'u32[144,128]{1,0:T(1,128)}', space=vmem, size = 0x12000, scoped, tag = 'internal scratch']
  %s0 = inlined_call_operand.vmem [shape: bf16[512,576], index: 0, kind: input, shape index: {}]
  %s1 = inlined_call_operand.vmem [shape: bf16[576,64], index: 1, kind: input, shape index: {}]
  %s2 = inlined_call_operand.vmem [shape: f32[1,64], index: 2, kind: input, shape index: {}]
  %s3 = inlined_call_operand.vmem [shape: bf16[512,64], index: 3, kind: output, shape index: {}]
  %s4 = sld [smem:[#allocation0]]
  $region45: #{bottleneck_forward.5} parent=0
    _
  %s6 = ssub.s32 1, %s4
  %s7 = scalar_select 0, %s6, %s4
  loop: start=0, step=1, limit=4
  $region2: #{bottleneck_forward.5} parent=0 // loop_pre_header
    _
  $region3: #{bottleneck_forward.5} parent=0 // loop_header
    %s9 = sphi 0, %s13
    %p10 = scmp.ge.s32.totalorder %s9, 4
    %s16 = sphi 0, %s28
    %s17 = sphi 0, %s24
    %s18 = sphi 0, %s16
    %s19 = sphi 0, %s17
    %s20 = sphi 0, %s18
    %s21 = sphi 0, %s19
    %s31 = sphi 0, %s33
    %s34 = sphi 0, %s31
    %s35 = sphi 0, %s34
    %s51 = sphi 0, %s35
    %s57 = sphi 0, %s59
    %s60 = sphi 0, %s57
    %s61 = sphi 0, %s60
    %s77 = sphi 0, %s61
    %s83 = sphi 0, %s85
    %s86 = sphi 0, %s83
    %s87 = sphi 0, %s86
    %s103 = sphi 0, %s87
    %s111 = sphi 0, %s113
    %s114 = sphi 0, %s111
    %s115 = sphi 0, %s114
    %s131 = sphi 0, %s115
  $region4: #{bottleneck_forward.5} parent=0 // loop_header_branch
    %12 = sbr.rel (%p10) target = $region8
  $region5: #{bottleneck_forward.5} parent=0 // loop_body
    %s14 = ssub.s32 %s9, 1
    %s15 = ssub.s32 %s9, 2
    %s22 = sadd.s32 1, %s17
    %p23 = scmp.ge.s32.totalorder %s22, 1
    %s24 = scalar_select %p23, 0, %s22
    %s25 = sadd.s32 1, %s16
    %s26 = scalar_select %p23, %s25, %s16
    %p27 = scmp.ge.s32.totalorder %s26, 2
    %s28 = scalar_select %p27, 0, %s26
    %s29 = ssub.s32 %s16, %s28
    %p30 = scmp.eq.s32.totalorder %s29, 0
    %s32 = sadd.s32 %s31, 1
    %s33 = scalar_select %p30, %s31, %s32
    %p36 = pneg %p30
    %p37 = scmp.eq.s32.totalorder %s9, 1
    %p38 = por %p36, %p37
    %p39 = scmp.ne.s32.totalorder %s31, %s34
    %p40 = scmp.eq.s32.totalorder %s9, 0
    %p41 = por %p39, %p40
    %p42 = scmp.ne.s32.totalorder %s31, %s34
    %p43 = scmp.eq.s32.totalorder %s14, 1
    %p44 = por %p42, %p43
    %p45 = scmp.ne.s32.totalorder %s34, %s35
    %p46 = scmp.eq.s32.totalorder %s14, 0
    %p47 = por %p45, %p46
    %p48 = scmp.ne.s32.totalorder %s34, %s35
    %p49 = scmp.eq.s32.totalorder %s15, 1
    %p50 = por %p48, %p49
    %p52 = scmp.ne.s32.totalorder %s35, %s51
    %p53 = scmp.eq.s32.totalorder %s15, 0
    %p54 = por %p52, %p53
    %s55 = ssub.s32 %s17, %s24
    %p56 = scmp.eq.s32.totalorder %s55, 0
    %s58 = sadd.s32 %s57, 1
    %s59 = scalar_select %p56, %s57, %s58
    %p62 = pneg %p56
    %p63 = scmp.eq.s32.totalorder %s9, 1
    %p64 = por %p62, %p63
    %p65 = scmp.ne.s32.totalorder %s57, %s60
    %p66 = scmp.eq.s32.totalorder %s9, 0
    %p67 = por %p65, %p66
    %p68 = scmp.ne.s32.totalorder %s57, %s60
    %p69 = scmp.eq.s32.totalorder %s14, 1
    %p70 = por %p68, %p69
    %p71 = scmp.ne.s32.totalorder %s60, %s61
    %p72 = scmp.eq.s32.totalorder %s14, 0
    %p73 = por %p71, %p72
    %p74 = scmp.ne.s32.totalorder %s60, %s61
    %p75 = scmp.eq.s32.totalorder %s15, 1
    %p76 = por %p74, %p75
    %p78 = scmp.ne.s32.totalorder %s61, %s77
    %p79 = scmp.eq.s32.totalorder %s15, 0
    %p80 = por %p78, %p79
    %s81 = ssub.s32 %s17, %s24
    %p82 = scmp.eq.s32.totalorder %s81, 0
    %s84 = sadd.s32 %s83, 1
    %s85 = scalar_select %p82, %s83, %s84
    %p88 = pneg %p82
    %p89 = scmp.eq.s32.totalorder %s9, 1
    %p90 = por %p88, %p89
    %p91 = scmp.ne.s32.totalorder %s83, %s86
    %p92 = scmp.eq.s32.totalorder %s9, 0
    %p93 = por %p91, %p92
    %p94 = scmp.ne.s32.totalorder %s83, %s86
    %p95 = scmp.eq.s32.totalorder %s14, 1
    %p96 = por %p94, %p95
    %p97 = scmp.ne.s32.totalorder %s86, %s87
    %p98 = scmp.eq.s32.totalorder %s14, 0
    %p99 = por %p97, %p98
    %p100 = scmp.ne.s32.totalorder %s86, %s87
    %p101 = scmp.eq.s32.totalorder %s15, 1
    %p102 = por %p100, %p101
    %p104 = scmp.ne.s32.totalorder %s87, %s103
    %p105 = scmp.eq.s32.totalorder %s15, 0
    %p106 = por %p104, %p105
    %s107 = ssub.s32 %s16, %s28
    %s108 = ssub.s32 %s17, %s24
    %s109 = sor.u32 %s107, %s108
    %p110 = scmp.eq.s32.totalorder %s109, 0
    %s112 = sadd.s32 %s111, 1
    %s113 = scalar_select %p110, %s111, %s112
    %p116 = pneg %p110
    %p117 = scmp.eq.s32.totalorder %s9, 1
    %p118 = por %p116, %p117
    %p119 = scmp.ne.s32.totalorder %s111, %s114
    %p120 = scmp.eq.s32.totalorder %s9, 0
    %p121 = por %p119, %p120
    %p122 = scmp.ne.s32.totalorder %s111, %s114
    %p123 = scmp.eq.s32.totalorder %s14, 1
    %p124 = por %p122, %p123
    %p125 = scmp.ne.s32.totalorder %s114, %s115
    %p126 = scmp.eq.s32.totalorder %s14, 0
    %p127 = por %p125, %p126
    %p128 = scmp.ne.s32.totalorder %s114, %s115
    %p129 = scmp.eq.s32.totalorder %s15, 1
    %p130 = por %p128, %p129
    %p132 = scmp.ne.s32.totalorder %s115, %s131
    %p133 = scmp.eq.s32.totalorder %s15, 0
    %p134 = por %p132, %p133
    %p135 = scmp.le.s32.totalorder 1, %s9
    %p136 = scmp.lt.s32.totalorder %s9, 3
    %p137 = pnand %p135, %p136
    %p138 = pneg %p137
    // Predicated region
    $region9: #{bottleneck_forward.5} parent=5 // pred_check
      _
    $region10: #{bottleneck_forward.5} parent=5 // pred_check_branch
      %140 = sbr.rel (%p137) target = $region12
    $region11: #{bottleneck_forward.5} parent=5 // pred_region
      %s141 = ssub.s32 %s9, 1
      // Predicated region
      $region13: #{bottleneck_forward.5} parent=11 // pred_check
        %p142 = pneg %p73
      $region14: #{bottleneck_forward.5} parent=11 // pred_check_branch
        %144 = sbr.rel (%p142) target = $region16
      $region15: #{bottleneck_forward.5} parent=11 // pred_region
        %p145 = scmp.lt.s32.totalorder %s19, 0
        %s146 = scalar_select %p145, %s19, 0
        %s147 = smul.addr %s146, 4
        %s148 = scalar_lea.vmem %s1, %s147
      $region16: #{bottleneck_forward.5} parent=11 // pred_fallthru
        _
      // Predicated region
      $region17: #{bottleneck_forward.5} parent=11 // pred_check
        %p149 = pneg %p99
      $region18: #{bottleneck_forward.5} parent=11 // pred_check_branch
        %151 = sbr.rel (%p149) target = $region20
      $region19: #{bottleneck_forward.5} parent=11 // pred_region
        %p152 = scmp.lt.s32.totalorder %s19, 0
        %s153 = scalar_select %p152, %s19, 0
        %s154 = scalar_lea.vmem %s2, %s153
      $region20: #{bottleneck_forward.5} parent=11 // pred_fallthru
        _
    $region12: #{bottleneck_forward.5} parent=5 // pred_fallthru
      _
    %p155 = scmp.lt.s32.totalorder %s9, 2
    // Predicated region
    $region21: #{bottleneck_forward.5} parent=5 // pred_check
      %p156 = pneg %p155
    $region22: #{bottleneck_forward.5} parent=5 // pred_check_branch
      %158 = sbr.rel (%p156) target = $region24
    $region23: #{bottleneck_forward.5} parent=5 // pred_region
      // Predicated region
      $region25: #{bottleneck_forward.5} parent=23 // pred_check
        %p159 = pneg %p41
      $region26: #{bottleneck_forward.5} parent=23 // pred_check_branch
        %161 = sbr.rel (%p159) target = $region28
      $region27: #{bottleneck_forward.5} parent=23 // pred_region
        %s162 = smul.u32 32, %s16
        %p163 = scmp.lt.s32.totalorder %s162, 63
        %s164 = scalar_select %p163, %s162, 63
        %s165 = smul.addr %s164, 5
        %s166 = smul.addr %s165, 4
        %s167 = scalar_lea.vmem %s0, %s166
        %s168 = smul.u32 32, %s16
      $region28: #{bottleneck_forward.5} parent=23 // pred_fallthru
        _
    $region24: #{bottleneck_forward.5} parent=5 // pred_fallthru
      _
    %p169 = scmp.le.s32.totalorder 1, %s9
    %p170 = scmp.lt.s32.totalorder %s9, 3
    %p171 = pnand %p169, %p170
    %p172 = pneg %p171
    // Predicated region
    $region29: #{bottleneck_forward.5} parent=5 // pred_check
      _
    $region30: #{bottleneck_forward.5} parent=5 // pred_check_branch
      %174 = sbr.rel (%p171) target = $region32
    $region31: #{bottleneck_forward.5} parent=5 // pred_region
      %s175 = ssub.s32 %s9, 1
      %s176 = smul.u32 32, %s18
      %p177 = scmp.lt.s32.totalorder %s176, 63
      %s178 = scalar_select %p177, %s176, 63
      %s179 = smul.addr %s178, 5
      %s180 = smul.addr %s179, 4
      %s181 = scalar_lea.vmem %s0, %s180
      %p182 = pneg %p47
      %p183 = pneg %p44
      %p184 = scmp.lt.s32.totalorder %s19, 0
      %s185 = scalar_select %p184, %s19, 0
      %s186 = smul.addr %s185, 4
      %s187 = scalar_lea.vmem %s1, %s186
      %p188 = pneg %p73
      %p189 = pneg %p70
      %p190 = scmp.lt.s32.totalorder %s19, 0
      %s191 = scalar_select %p190, %s19, 0
      %s192 = scalar_lea.vmem %s2, %s191
      %p193 = pneg %p99
      %p194 = pneg %p96
      %p195 = pneg %p127
      %p196 = pneg %p124
      %s197 = smul.u32 32, %s18
      %p198 = scmp.lt.s32.totalorder %s197, 63
      %s199 = scalar_select %p198, %s197, 63
      %p200 = scmp.lt.s32.totalorder %s19, 0
      %s201 = scalar_select %p200, %s19, 0
      %s202 = sadd.s32 %s201, %s199
      %s203 = smul.addr %s202, 4
      %s204 = scalar_lea.vmem %s3, %s203
      %s205 = smul.u32 32, %s18
      %p206 = scmp.lt.s32.totalorder %s205, 63
      %s207 = scalar_select %p206, %s205, 63
      %s208 = smul.addr %s207, 5
      %s209 = smul.addr %s208, 4
      %s210 = scalar_lea.vmem %s0, %s209
      %s211 = smul.u32 32, %s18
      %p212 = scmp.lt.s32.totalorder %s19, 0
      %s213 = scalar_select %p212, %s19, 0
      %s214 = smul.addr %s213, 4
      %s215 = scalar_lea.vmem %s1, %s214
      %p216 = scmp.lt.s32.totalorder %s19, 0
      %s217 = scalar_select %p216, %s19, 0
      %s218 = scalar_lea.vmem %s2, %s217
      %s219 = smul.u32 32, %s18
      %p220 = scmp.lt.s32.totalorder %s219, 63
      %s221 = scalar_select %p220, %s219, 63
      %p222 = scmp.lt.s32.totalorder %s19, 0
      %s223 = scalar_select %p222, %s19, 0
      %s224 = sadd.s32 %s223, %s221
      %s225 = smul.addr %s224, 4
      %s226 = scalar_lea.vmem %s3, %s225
      %s227 = smul.u32 32, %s18
      %v229 = vld [vmem:[%s210] sm:$0xff]
      %v230 = vld [vmem:[%s210 + $0x8] sm:$0xff]
      %v231 = vld [vmem:[%s210 + $0x10] sm:$0xf]
      %v232 = vld [vmem:[%s210 + $0x14] sm:$0xff]
      %v233 = vld [vmem:[%s210 + $0x1c] sm:$0xff]
      %v234 = vld [vmem:[%s210 + $0x24] sm:$0xf]
      %v235 = vld [vmem:[%s210 + $0x28] sm:$0xff]
      %v236 = vld [vmem:[%s210 + $0x30] sm:$0xff]
      %v237 = vld [vmem:[%s210 + $0x38] sm:$0xf]
      %v238 = vld [vmem:[%s210 + $0x3c] sm:$0xff]
      %v239 = vld [vmem:[%s210 + $0x44] sm:$0xff]
      %v240 = vld [vmem:[%s210 + $0x4c] sm:$0xf]
      %v241 = vld [vmem:[%s210 + $0x50] sm:$0xff]
      %v242 = vld [vmem:[%s210 + $0x58] sm:$0xff]
      %v243 = vld [vmem:[%s210 + $0x60] sm:$0xf]
      %v244 = vld [vmem:[%s210 + $0x64] sm:$0xff]
      %v245 = vld [vmem:[%s210 + $0x6c] sm:$0xff]
      %v246 = vld [vmem:[%s210 + $0x74] sm:$0xf]
      %v247 = vld [vmem:[%s210 + $0x78] sm:$0xff]
      %v248 = vld [vmem:[%s210 + $0x80] sm:$0xff]
      %v249 = vld [vmem:[%s210 + $0x88] sm:$0xf]
      %v250 = vld [vmem:[%s210 + $0x8c] sm:$0xff]
      %v251 = vld [vmem:[%s210 + $0x94] sm:$0xff]
      %v252 = vld [vmem:[%s210 + $0x9c] sm:$0xf]
      %v253 = vld [vmem:[%s210 + $0xa0] sm:$0xff]
      %v254 = vld [vmem:[%s210 + $0xa8] sm:$0xff]
      %v255 = vld [vmem:[%s210 + $0xb0] sm:$0xf]
      %v256 = vld [vmem:[%s210 + $0xb4] sm:$0xff]
      %v257 = vld [vmem:[%s210 + $0xbc] sm:$0xff]
      %v258 = vld [vmem:[%s210 + $0xc4] sm:$0xf]
      %v259 = vld [vmem:[%s210 + $0xc8] sm:$0xff]
      %v260 = vld [vmem:[%s210 + $0xd0] sm:$0xff]
      %v261 = vld [vmem:[%s210 + $0xd8] sm:$0xf]
      %v262 = vld [vmem:[%s210 + $0xdc] sm:$0xff]
      %v263 = vld [vmem:[%s210 + $0xe4] sm:$0xff]
      %v264 = vld [vmem:[%s210 + $0xec] sm:$0xf]
      %v265 = vld [vmem:[%s210 + $0xf0] sm:$0xff]
      %v266 = vld [vmem:[%s210 + $0xf8] sm:$0xff]
      %v267 = vld [vmem:[%s210 + $0x100] sm:$0xf]
      %v268 = vld [vmem:[%s210 + $0x104] sm:$0xff]
      %v269 = vld [vmem:[%s210 + $0x10c] sm:$0xff]
      %v270 = vld [vmem:[%s210 + $0x114] sm:$0xf]
      %v271 = vld [vmem:[%s210 + $0x118] sm:$0xff]
      %v272 = vld [vmem:[%s210 + $0x120] sm:$0xff]
      %v273 = vld [vmem:[%s210 + $0x128] sm:$0xf]
      %v274 = vld [vmem:[%s210 + $0x12c] sm:$0xff]
      %v275 = vld [vmem:[%s210 + $0x134] sm:$0xff]
      %v276 = vld [vmem:[%s210 + $0x13c] sm:$0xf]
      %v277 = vld [vmem:[%s210 + $0x140] sm:$0xff]
      %v278 = vld [vmem:[%s210 + $0x148] sm:$0xff]
      %v279 = vld [vmem:[%s210 + $0x150] sm:$0xf]
      %v280 = vld [vmem:[%s210 + $0x154] sm:$0xff]
      %v281 = vld [vmem:[%s210 + $0x15c] sm:$0xff]
      %v282 = vld [vmem:[%s210 + $0x164] sm:$0xf]
      %v283 = vld [vmem:[%s210 + $0x168] sm:$0xff]
      %v284 = vld [vmem:[%s210 + $0x170] sm:$0xff]
      %v285 = vld [vmem:[%s210 + $0x178] sm:$0xf]
      %v286 = vld [vmem:[%s210 + $0x17c] sm:$0xff]
      %v287 = vld [vmem:[%s210 + $0x184] sm:$0xff]
      %v288 = vld [vmem:[%s210 + $0x18c] sm:$0xf]
      %v289 = vld [vmem:[%s210 + $0x190] sm:$0xff]
      %v290 = vld [vmem:[%s210 + $0x198] sm:$0xff]
      %v291 = vld [vmem:[%s210 + $0x1a0] sm:$0xf]
      %v292 = vld [vmem:[%s210 + $0x1a4] sm:$0xff]
      %v293 = vld [vmem:[%s210 + $0x1ac] sm:$0xff]
      %v294 = vld [vmem:[%s210 + $0x1b4] sm:$0xf]
      %v295 = vld [vmem:[%s210 + $0x1b8] sm:$0xff]
      %v296 = vld [vmem:[%s210 + $0x1c0] sm:$0xff]
      %v297 = vld [vmem:[%s210 + $0x1c8] sm:$0xf]
      %v298 = vld [vmem:[%s210 + $0x1cc] sm:$0xff]
      %v299 = vld [vmem:[%s210 + $0x1d4] sm:$0xff]
      %v300 = vld [vmem:[%s210 + $0x1dc] sm:$0xf]
      %v301 = vld [vmem:[%s210 + $0x1e0] sm:$0xff]
      %v302 = vld [vmem:[%s210 + $0x1e8] sm:$0xff]
      %v303 = vld [vmem:[%s210 + $0x1f0] sm:$0xf]
      %v304 = vld [vmem:[%s210 + $0x1f4] sm:$0xff]
      %v305 = vld [vmem:[%s210 + $0x1fc] sm:$0xff]
      %v306 = vld [vmem:[%s210 + $0x204] sm:$0xf]
      %v307 = vld [vmem:[%s210 + $0x208] sm:$0xff]
      %v308 = vld [vmem:[%s210 + $0x210] sm:$0xff]
      %v309 = vld [vmem:[%s210 + $0x218] sm:$0xf]
      %v310 = vld [vmem:[%s210 + $0x21c] sm:$0xff]
      %v311 = vld [vmem:[%s210 + $0x224] sm:$0xff]
      %v312 = vld [vmem:[%s210 + $0x22c] sm:$0xf]
      %v313 = vld [vmem:[%s210 + $0x230] sm:$0xff]
      %v314 = vld [vmem:[%s210 + $0x238] sm:$0xff]
      %v315 = vld [vmem:[%s210 + $0x240] sm:$0xf]
      %v316 = vld [vmem:[%s210 + $0x244] sm:$0xff]
      %v317 = vld [vmem:[%s210 + $0x24c] sm:$0xff]
      %v318 = vld [vmem:[%s210 + $0x254] sm:$0xf]
      %v319 = vld [vmem:[%s210 + $0x258] sm:$0xff]
      %v320 = vld [vmem:[%s210 + $0x260] sm:$0xff]
      %v321 = vld [vmem:[%s210 + $0x268] sm:$0xf]
      %v322 = vld [vmem:[%s210 + $0x26c] sm:$0xff]
      %v323 = vld [vmem:[%s210 + $0x274] sm:$0xff]
      %v324 = vld [vmem:[%s210 + $0x27c] sm:$0xf]
      %v325 = vld [vmem:[%s215] sm:$0xf]
      %v326 = vld [vmem:[%s215 + $0x4] sm:$0xf]
      %v327 = vld [vmem:[%s215 + $0x8] sm:$0xf]
      %v328 = vld [vmem:[%s215 + $0xc] sm:$0xf]
      %v329 = vld [vmem:[%s215 + $0x10] sm:$0xf]
      %v330 = vld [vmem:[%s215 + $0x14] sm:$0xf]
      %v331 = vld [vmem:[%s215 + $0x18] sm:$0xf]
      %v332 = vld [vmem:[%s215 + $0x1c] sm:$0xf]
      %v333 = vld [vmem:[%s215 + $0x20] sm:$0xf]
      %v334 = vld [vmem:[%s215 + $0x24] sm:$0xf]
      %v335 = vld [vmem:[%s215 + $0x28] sm:$0xf]
      %v336 = vld [vmem:[%s215 + $0x2c] sm:$0xf]
      %v337 = vld [vmem:[%s215 + $0x30] sm:$0xf]
      %v338 = vld [vmem:[%s215 + $0x34] sm:$0xf]
      %v339 = vld [vmem:[%s215 + $0x38] sm:$0xf]
      %v340 = vld [vmem:[%s215 + $0x3c] sm:$0xf]
      %v341 = vld [vmem:[%s215 + $0x40] sm:$0xf]
      %v342 = vld [vmem:[%s215 + $0x44] sm:$0xf]
      %v343 = vld [vmem:[%s215 + $0x48] sm:$0xf]
      %v344 = vld [vmem:[%s215 + $0x4c] sm:$0xf]
      %v345 = vld [vmem:[%s215 + $0x50] sm:$0xf]
      %v346 = vld [vmem:[%s215 + $0x54] sm:$0xf]
      %v347 = vld [vmem:[%s215 + $0x58] sm:$0xf]
      %v348 = vld [vmem:[%s215 + $0x5c] sm:$0xf]
      %v349 = vld [vmem:[%s215 + $0x60] sm:$0xf]
      %v350 = vld [vmem:[%s215 + $0x64] sm:$0xf]
      %v351 = vld [vmem:[%s215 + $0x68] sm:$0xf]
      %v352 = vld [vmem:[%s215 + $0x6c] sm:$0xf]
      %v353 = vld [vmem:[%s215 + $0x70] sm:$0xf]
      %v354 = vld [vmem:[%s215 + $0x74] sm:$0xf]
      %v355 = vld [vmem:[%s215 + $0x78] sm:$0xf]
      %v356 = vld [vmem:[%s215 + $0x7c] sm:$0xf]
      %v357 = vld [vmem:[%s215 + $0x80] sm:$0xf]
      %v358 = vld [vmem:[%s215 + $0x84] sm:$0xf]
      %v359 = vld [vmem:[%s215 + $0x88] sm:$0xf]
      %v360 = vld [vmem:[%s215 + $0x8c] sm:$0xf]
      %v361 = vld [vmem:[%s215 + $0x90] sm:$0xf]
      %v362 = vld [vmem:[%s215 + $0x94] sm:$0xf]
      %v363 = vld [vmem:[%s215 + $0x98] sm:$0xf]
      %v364 = vld [vmem:[%s215 + $0x9c] sm:$0xf]
      %v365 = vld [vmem:[%s215 + $0xa0] sm:$0xf]
      %v366 = vld [vmem:[%s215 + $0xa4] sm:$0xf]
      %v367 = vld [vmem:[%s215 + $0xa8] sm:$0xf]
      %v368 = vld [vmem:[%s215 + $0xac] sm:$0xf]
      %v369 = vld [vmem:[%s215 + $0xb0] sm:$0xf]
      %v370 = vld [vmem:[%s215 + $0xb4] sm:$0xf]
      %v371 = vld [vmem:[%s215 + $0xb8] sm:$0xf]
      %v372 = vld [vmem:[%s215 + $0xbc] sm:$0xf]
      %v373 = vld [vmem:[%s215 + $0xc0] sm:$0xf]
      %v374 = vld [vmem:[%s215 + $0xc4] sm:$0xf]
      %v375 = vld [vmem:[%s215 + $0xc8] sm:$0xf]
      %v376 = vld [vmem:[%s215 + $0xcc] sm:$0xf]
      %v377 = vld [vmem:[%s215 + $0xd0] sm:$0xf]
      %v378 = vld [vmem:[%s215 + $0xd4] sm:$0xf]
      %v379 = vld [vmem:[%s215 + $0xd8] sm:$0xf]
      %v380 = vld [vmem:[%s215 + $0xdc] sm:$0xf]
      %v381 = vld [vmem:[%s215 + $0xe0] sm:$0xf]
      %v382 = vld [vmem:[%s215 + $0xe4] sm:$0xf]
      %v383 = vld [vmem:[%s215 + $0xe8] sm:$0xf]
      %v384 = vld [vmem:[%s215 + $0xec] sm:$0xf]
      %v385 = vld [vmem:[%s215 + $0xf0] sm:$0xf]
      %v386 = vld [vmem:[%s215 + $0xf4] sm:$0xf]
      %v387 = vld [vmem:[%s215 + $0xf8] sm:$0xf]
      %v388 = vld [vmem:[%s215 + $0xfc] sm:$0xf]
      %v389 = vld [vmem:[%s215 + $0x100] sm:$0xf]
      %v390 = vld [vmem:[%s215 + $0x104] sm:$0xf]
      %v391 = vld [vmem:[%s215 + $0x108] sm:$0xf]
      %v392 = vld [vmem:[%s215 + $0x10c] sm:$0xf]
      %v393 = vld [vmem:[%s215 + $0x110] sm:$0xf]
      %v394 = vld [vmem:[%s215 + $0x114] sm:$0xf]
      %v395 = vld [vmem:[%s215 + $0x118] sm:$0xf]
      %v396 = vld [vmem:[%s215 + $0x11c] sm:$0xf]
      %v397 = vld [vmem:[%s218] sm:$0x1]
      %v399 = vlaneseq
      %v400 = vshrl.u32 %v399, 7
      %v401 = vsub.s32 0, %v400
      %v402 = vrot.slane %v397, %v401
      %v500 = vunpack.c.l.b16 %v229
      %v501 = vunpack.c.h.b16 %v229
      %v502 = vunpack.c.l.b16 %v230
      %v503 = vunpack.c.h.b16 %v230
      %v504 = vunpack.c.l.b16 %v231
      %v505 = vunpack.c.l.b16 %v232
      %v506 = vunpack.c.h.b16 %v232
      %v507 = vunpack.c.l.b16 %v233
      %v508 = vunpack.c.h.b16 %v233
      %v509 = vunpack.c.l.b16 %v234
      %v510 = vunpack.c.l.b16 %v235
      %v511 = vunpack.c.h.b16 %v235
      %v512 = vunpack.c.l.b16 %v236
      %v513 = vunpack.c.h.b16 %v236
      %v514 = vunpack.c.l.b16 %v237
      %v515 = vunpack.c.l.b16 %v238
      %v516 = vunpack.c.h.b16 %v238
      %v517 = vunpack.c.l.b16 %v239
      %v518 = vunpack.c.h.b16 %v239
      %v519 = vunpack.c.l.b16 %v240
      %v520 = vunpack.c.l.b16 %v241
      %v521 = vunpack.c.h.b16 %v241
      %v522 = vunpack.c.l.b16 %v242
      %v523 = vunpack.c.h.b16 %v242
      %v524 = vunpack.c.l.b16 %v243
      %v525 = vunpack.c.l.b16 %v244
      %v526 = vunpack.c.h.b16 %v244
      %v527 = vunpack.c.l.b16 %v245
      %v528 = vunpack.c.h.b16 %v245
      %v529 = vunpack.c.l.b16 %v246
      %v530 = vunpack.c.l.b16 %v247
      %v531 = vunpack.c.h.b16 %v247
      %v532 = vunpack.c.l.b16 %v248
      %v533 = vunpack.c.h.b16 %v248
      %v534 = vunpack.c.l.b16 %v249
      %v535 = vunpack.c.l.b16 %v250
      %v536 = vunpack.c.h.b16 %v250
      %v537 = vunpack.c.l.b16 %v251
      %v538 = vunpack.c.h.b16 %v251
      %v539 = vunpack.c.l.b16 %v252
      %v540 = vunpack.c.l.b16 %v253
      %v541 = vunpack.c.h.b16 %v253
      %v542 = vunpack.c.l.b16 %v254
      %v543 = vunpack.c.h.b16 %v254
      %v544 = vunpack.c.l.b16 %v255
      %v545 = vunpack.c.l.b16 %v256
      %v546 = vunpack.c.h.b16 %v256
      %v547 = vunpack.c.l.b16 %v257
      %v548 = vunpack.c.h.b16 %v257
      %v549 = vunpack.c.l.b16 %v258
      %v550 = vunpack.c.l.b16 %v259
      %v551 = vunpack.c.h.b16 %v259
      %v552 = vunpack.c.l.b16 %v260
      %v553 = vunpack.c.h.b16 %v260
      %v554 = vunpack.c.l.b16 %v261
      %v555 = vunpack.c.l.b16 %v262
      %v556 = vunpack.c.h.b16 %v262
      %v557 = vunpack.c.l.b16 %v263
      %v558 = vunpack.c.h.b16 %v263
      %v559 = vunpack.c.l.b16 %v264
      %v560 = vunpack.c.l.b16 %v265
      %v561 = vunpack.c.h.b16 %v265
      %v562 = vunpack.c.l.b16 %v266
      %v563 = vunpack.c.h.b16 %v266
      %v564 = vunpack.c.l.b16 %v267
      %v565 = vunpack.c.l.b16 %v268
      %v566 = vunpack.c.h.b16 %v268
      %v567 = vunpack.c.l.b16 %v269
      %v568 = vunpack.c.h.b16 %v269
      %v569 = vunpack.c.l.b16 %v270
      %v570 = vunpack.c.l.b16 %v271
      %v571 = vunpack.c.h.b16 %v271
      %v572 = vunpack.c.l.b16 %v272
      %v573 = vunpack.c.h.b16 %v272
      %v574 = vunpack.c.l.b16 %v273
      %v575 = vunpack.c.l.b16 %v274
      %v576 = vunpack.c.h.b16 %v274
      %v577 = vunpack.c.l.b16 %v275
      %v578 = vunpack.c.h.b16 %v275
      %v579 = vunpack.c.l.b16 %v276
      %v580 = vunpack.c.l.b16 %v277
      %v581 = vunpack.c.h.b16 %v277
      %v582 = vunpack.c.l.b16 %v278
      %v583 = vunpack.c.h.b16 %v278
      %v584 = vunpack.c.l.b16 %v279
      %v585 = vunpack.c.l.b16 %v280
      %v586 = vunpack.c.h.b16 %v280
      %v587 = vunpack.c.l.b16 %v281
      %v588 = vunpack.c.h.b16 %v281
      %v589 = vunpack.c.l.b16 %v282
      %v590 = vunpack.c.l.b16 %v283
      %v591 = vunpack.c.h.b16 %v283
      %v592 = vunpack.c.l.b16 %v284
      %v593 = vunpack.c.h.b16 %v284
      %v594 = vunpack.c.l.b16 %v285
      %v595 = vunpack.c.l.b16 %v286
      %v596 = vunpack.c.h.b16 %v286
      %v597 = vunpack.c.l.b16 %v287
      %v598 = vunpack.c.h.b16 %v287
      %v599 = vunpack.c.l.b16 %v288
      %v600 = vunpack.c.l.b16 %v289
      %v601 = vunpack.c.h.b16 %v289
      %v602 = vunpack.c.l.b16 %v290
      %v603 = vunpack.c.h.b16 %v290
      %v604 = vunpack.c.l.b16 %v291
      %v605 = vunpack.c.l.b16 %v292
      %v606 = vunpack.c.h.b16 %v292
      %v607 = vunpack.c.l.b16 %v293
      %v608 = vunpack.c.h.b16 %v293
      %v609 = vunpack.c.l.b16 %v294
      %v610 = vunpack.c.l.b16 %v295
      %v611 = vunpack.c.h.b16 %v295
      %v612 = vunpack.c.l.b16 %v296
      %v613 = vunpack.c.h.b16 %v296
      %v614 = vunpack.c.l.b16 %v297
      %v615 = vunpack.c.l.b16 %v298
      %v616 = vunpack.c.h.b16 %v298
      %v617 = vunpack.c.l.b16 %v299
      %v618 = vunpack.c.h.b16 %v299
      %v619 = vunpack.c.l.b16 %v300
      %v620 = vunpack.c.l.b16 %v301
      %v621 = vunpack.c.h.b16 %v301
      %v622 = vunpack.c.l.b16 %v302
      %v623 = vunpack.c.h.b16 %v302
      %v624 = vunpack.c.l.b16 %v303
      %v625 = vunpack.c.l.b16 %v304
      %v626 = vunpack.c.h.b16 %v304
      %v627 = vunpack.c.l.b16 %v305
      %v628 = vunpack.c.h.b16 %v305
      %v629 = vunpack.c.l.b16 %v306
      %v630 = vunpack.c.l.b16 %v307
      %v631 = vunpack.c.h.b16 %v307
      %v632 = vunpack.c.l.b16 %v308
      %v633 = vunpack.c.h.b16 %v308
      %v634 = vunpack.c.l.b16 %v309
      %v635 = vunpack.c.l.b16 %v310
      %v636 = vunpack.c.h.b16 %v310
      %v637 = vunpack.c.l.b16 %v311
      %v638 = vunpack.c.h.b16 %v311
      %v639 = vunpack.c.l.b16 %v312
      %v640 = vunpack.c.l.b16 %v313
      %v641 = vunpack.c.h.b16 %v313
      %v642 = vunpack.c.l.b16 %v314
      %v643 = vunpack.c.h.b16 %v314
      %v644 = vunpack.c.l.b16 %v315
      %v645 = vunpack.c.l.b16 %v316
      %v646 = vunpack.c.h.b16 %v316
      %v647 = vunpack.c.l.b16 %v317
      %v648 = vunpack.c.h.b16 %v317
      %v649 = vunpack.c.l.b16 %v318
      %v650 = vunpack.c.l.b16 %v319
      %v651 = vunpack.c.h.b16 %v319
      %v652 = vunpack.c.l.b16 %v320
      %v653 = vunpack.c.h.b16 %v320
      %v654 = vunpack.c.l.b16 %v321
      %v655 = vunpack.c.l.b16 %v322
      %v656 = vunpack.c.h.b16 %v322
      %v657 = vunpack.c.l.b16 %v323
      %v658 = vunpack.c.h.b16 %v323
      %v659 = vunpack.c.l.b16 %v324
      %v660 = vpack.c.b16 %v505, %v500
      %v661 = vpack.c.b16 %v506, %v501
      %v662 = vpack.c.b16 %v507, %v502
      %v663 = vpack.c.b16 %v508, %v503
      %v664 = vpack.c.b16 %v509, %v504
      %v665 = vpack.c.b16 %v515, %v510
      %v666 = vpack.c.b16 %v516, %v511
      %v667 = vpack.c.b16 %v517, %v512
      %v668 = vpack.c.b16 %v518, %v513
      %v669 = vpack.c.b16 %v519, %v514
      %v670 = vpack.c.b16 %v525, %v520
      %v671 = vpack.c.b16 %v526, %v521
      %v672 = vpack.c.b16 %v527, %v522
      %v673 = vpack.c.b16 %v528, %v523
      %v674 = vpack.c.b16 %v529, %v524
      %v675 = vpack.c.b16 %v535, %v530
      %v676 = vpack.c.b16 %v536, %v531
      %v677 = vpack.c.b16 %v537, %v532
      %v678 = vpack.c.b16 %v538, %v533
      %v679 = vpack.c.b16 %v539, %v534
      %v680 = vpack.c.b16 %v545, %v540
      %v681 = vpack.c.b16 %v546, %v541
      %v682 = vpack.c.b16 %v547, %v542
      %v683 = vpack.c.b16 %v548, %v543
      %v684 = vpack.c.b16 %v549, %v544
      %v685 = vpack.c.b16 %v555, %v550
      %v686 = vpack.c.b16 %v556, %v551
      %v687 = vpack.c.b16 %v557, %v552
      %v688 = vpack.c.b16 %v558, %v553
      %v689 = vpack.c.b16 %v559, %v554
      %v690 = vpack.c.b16 %v565, %v560
      %v691 = vpack.c.b16 %v566, %v561
      %v692 = vpack.c.b16 %v567, %v562
      %v693 = vpack.c.b16 %v568, %v563
      %v694 = vpack.c.b16 %v569, %v564
      %v695 = vpack.c.b16 %v575, %v570
      %v696 = vpack.c.b16 %v576, %v571
      %v697 = vpack.c.b16 %v577, %v572
      %v698 = vpack.c.b16 %v578, %v573
      %v699 = vpack.c.b16 %v579, %v574
      %v700 = vpack.c.b16 %v585, %v580
      %v701 = vpack.c.b16 %v586, %v581
      %v702 = vpack.c.b16 %v587, %v582
      %v703 = vpack.c.b16 %v588, %v583
      %v704 = vpack.c.b16 %v589, %v584
      %v705 = vpack.c.b16 %v595, %v590
      %v706 = vpack.c.b16 %v596, %v591
      %v707 = vpack.c.b16 %v597, %v592
      %v708 = vpack.c.b16 %v598, %v593
      %v709 = vpack.c.b16 %v599, %v594
      %v710 = vpack.c.b16 %v605, %v600
      %v711 = vpack.c.b16 %v606, %v601
      %v712 = vpack.c.b16 %v607, %v602
      %v713 = vpack.c.b16 %v608, %v603
      %v714 = vpack.c.b16 %v609, %v604
      %v715 = vpack.c.b16 %v615, %v610
      %v716 = vpack.c.b16 %v616, %v611
      %v717 = vpack.c.b16 %v617, %v612
      %v718 = vpack.c.b16 %v618, %v613
      %v719 = vpack.c.b16 %v619, %v614
      %v720 = vpack.c.b16 %v625, %v620
      %v721 = vpack.c.b16 %v626, %v621
      %v722 = vpack.c.b16 %v627, %v622
      %v723 = vpack.c.b16 %v628, %v623
      %v724 = vpack.c.b16 %v629, %v624
      %v725 = vpack.c.b16 %v635, %v630
      %v726 = vpack.c.b16 %v636, %v631
      %v727 = vpack.c.b16 %v637, %v632
      %v728 = vpack.c.b16 %v638, %v633
      %v729 = vpack.c.b16 %v639, %v634
      %v730 = vpack.c.b16 %v645, %v640
      %v731 = vpack.c.b16 %v646, %v641
      %v732 = vpack.c.b16 %v647, %v642
      %v733 = vpack.c.b16 %v648, %v643
      %v734 = vpack.c.b16 %v649, %v644
      %v735 = vpack.c.b16 %v655, %v650
      %v736 = vpack.c.b16 %v656, %v651
      %v737 = vpack.c.b16 %v657, %v652
      %v738 = vpack.c.b16 %v658, %v653
      %v739 = vpack.c.b16 %v659, %v654
      %v876 = vunpack.c.l.b16 %v325
      %v877 = vunpack.c.l.b16 %v326
      %v878 = vunpack.c.l.b16 %v327
      %v879 = vunpack.c.l.b16 %v328
      %v880 = vunpack.c.l.b16 %v329
      %v881 = vunpack.c.l.b16 %v330
      %v882 = vunpack.c.l.b16 %v331
      %v883 = vunpack.c.l.b16 %v332
      %v884 = vunpack.c.l.b16 %v333
      %v885 = vunpack.c.l.b16 %v334
      %v886 = vunpack.c.l.b16 %v335
      %v887 = vunpack.c.l.b16 %v336
      %v888 = vunpack.c.l.b16 %v337
      %v889 = vunpack.c.l.b16 %v338
      %v890 = vunpack.c.l.b16 %v339
      %v891 = vunpack.c.l.b16 %v340
      %v892 = vunpack.c.l.b16 %v341
      %v893 = vunpack.c.l.b16 %v342
      %v894 = vunpack.c.l.b16 %v343
      %v895 = vunpack.c.l.b16 %v344
      %v896 = vunpack.c.l.b16 %v345
      %v897 = vunpack.c.l.b16 %v346
      %v898 = vunpack.c.l.b16 %v347
      %v899 = vunpack.c.l.b16 %v348
      %v900 = vunpack.c.l.b16 %v349
      %v901 = vunpack.c.l.b16 %v350
      %v902 = vunpack.c.l.b16 %v351
      %v903 = vunpack.c.l.b16 %v352
      %v904 = vunpack.c.l.b16 %v353
      %v905 = vunpack.c.l.b16 %v354
      %v906 = vunpack.c.l.b16 %v355
      %v907 = vunpack.c.l.b16 %v356
      %v908 = vunpack.c.l.b16 %v357
      %v909 = vunpack.c.l.b16 %v358
      %v910 = vunpack.c.l.b16 %v359
      %v911 = vunpack.c.l.b16 %v360
      %v912 = vunpack.c.l.b16 %v361
      %v913 = vunpack.c.l.b16 %v362
      %v914 = vunpack.c.l.b16 %v363
      %v915 = vunpack.c.l.b16 %v364
      %v916 = vunpack.c.l.b16 %v365
      %v917 = vunpack.c.l.b16 %v366
      %v918 = vunpack.c.l.b16 %v367
      %v919 = vunpack.c.l.b16 %v368
      %v920 = vunpack.c.l.b16 %v369
      %v921 = vunpack.c.l.b16 %v370
      %v922 = vunpack.c.l.b16 %v371
      %v923 = vunpack.c.l.b16 %v372
      %v924 = vunpack.c.l.b16 %v373
      %v925 = vunpack.c.l.b16 %v374
      %v926 = vunpack.c.l.b16 %v375
      %v927 = vunpack.c.l.b16 %v376
      %v928 = vunpack.c.l.b16 %v377
      %v929 = vunpack.c.l.b16 %v378
      %v930 = vunpack.c.l.b16 %v379
      %v931 = vunpack.c.l.b16 %v380
      %v932 = vunpack.c.l.b16 %v381
      %v933 = vunpack.c.l.b16 %v382
      %v934 = vunpack.c.l.b16 %v383
      %v935 = vunpack.c.l.b16 %v384
      %v936 = vunpack.c.l.b16 %v385
      %v937 = vunpack.c.l.b16 %v386
      %v938 = vunpack.c.l.b16 %v387
      %v939 = vunpack.c.l.b16 %v388
      %v940 = vunpack.c.l.b16 %v389
      %v941 = vunpack.c.l.b16 %v390
      %v942 = vunpack.c.l.b16 %v391
      %v943 = vunpack.c.l.b16 %v392
      %v944 = vunpack.c.l.b16 %v393
      %v945 = vunpack.c.l.b16 %v394
      %v946 = vunpack.c.l.b16 %v395
      %v947 = vunpack.c.l.b16 %v396
      %v948 = vpack.c.b16 %v877, %v876
      %v949 = vpack.c.b16 %v879, %v878
      %v950 = vpack.c.b16 %v881, %v880
      %v951 = vpack.c.b16 %v883, %v882
      %v952 = vpack.c.b16 %v885, %v884
      %v953 = vpack.c.b16 %v887, %v886
      %v954 = vpack.c.b16 %v889, %v888
      %v955 = vpack.c.b16 %v891, %v890
      %v956 = vpack.c.b16 %v893, %v892
      %v957 = vpack.c.b16 %v895, %v894
      %v958 = vpack.c.b16 %v897, %v896
      %v959 = vpack.c.b16 %v899, %v898
      %v960 = vpack.c.b16 %v901, %v900
      %v961 = vpack.c.b16 %v903, %v902
      %v962 = vpack.c.b16 %v905, %v904
      %v963 = vpack.c.b16 %v907, %v906
      %v964 = vpack.c.b16 %v909, %v908
      %v965 = vpack.c.b16 %v911, %v910
      %v966 = vpack.c.b16 %v913, %v912
      %v967 = vpack.c.b16 %v915, %v914
      %v968 = vpack.c.b16 %v917, %v916
      %v969 = vpack.c.b16 %v919, %v918
      %v970 = vpack.c.b16 %v921, %v920
      %v971 = vpack.c.b16 %v923, %v922
      %v972 = vpack.c.b16 %v925, %v924
      %v973 = vpack.c.b16 %v927, %v926
      %v974 = vpack.c.b16 %v929, %v928
      %v975 = vpack.c.b16 %v931, %v930
      %v976 = vpack.c.b16 %v933, %v932
      %v977 = vpack.c.b16 %v935, %v934
      %v978 = vpack.c.b16 %v937, %v936
      %v979 = vpack.c.b16 %v939, %v938
      %v980 = vpack.c.b16 %v941, %v940
      %v981 = vpack.c.b16 %v943, %v942
      %v982 = vpack.c.b16 %v945, %v944
      %v983 = vpack.c.b16 %v947, %v946
      %vm1020 = vcmask 523264
      %v1022 = vsel %vm1020, %v664, 0
      %v1025 = vsel %vm1020, %v669, 0
      %v1028 = vsel %vm1020, %v674, 0
      %v1031 = vsel %vm1020, %v679, 0
      %v1034 = vsel %vm1020, %v684, 0
      %v1037 = vsel %vm1020, %v689, 0
      %v1040 = vsel %vm1020, %v694, 0
      %v1043 = vsel %vm1020, %v699, 0
      %v1046 = vsel %vm1020, %v704, 0
      %v1049 = vsel %vm1020, %v709, 0
      %v1052 = vsel %vm1020, %v714, 0
      %v1055 = vsel %vm1020, %v719, 0
      %v1058 = vsel %vm1020, %v724, 0
      %v1061 = vsel %vm1020, %v729, 0
      %v1064 = vsel %vm1020, %v734, 0
      %v1067 = vsel %vm1020, %v739, 0
      %1069 = vmatprep.subr.bf16.mxu0 0
      %1070 = vmatpush1.bf16.msra.mxu0 %v948
      %1071 = vmatprep.subr.bf16.mxu0 0
      %1072 = vmatpush1.bf16.msra.mxu0 %v949
      %1073 = vmatprep.subr.bf16.mxu0 0
      %1074 = vmatpush1.bf16.msra.mxu0 %v950
      %1075 = vmatprep.subr.bf16.mxu0 0
      %1076 = vmatpush1.bf16.msra.mxu0 %v951
      %1077 = vmatprep.subr.bf16.mxu0 0
      %1078 = vmatpush1.bf16.msra.mxu0 %v952
      %1079 = vmatprep.subr.bf16.mxu0 0
      %1080 = vmatpush1.bf16.msra.mxu0 %v953
      %1081 = vmatprep.subr.bf16.mxu0 0
      %1082 = vmatpush1.bf16.msra.mxu0 %v954
      %1083 = vmatprep.subr.bf16.mxu0 0
      %1084 = vmatpush1.bf16.msra.mxu0 %v955
      %1085 = vmatprep.subr.bf16.mxu0 0
      %1086 = vmatpush1.bf16.msra.mxu0 %v956
      %1087 = vmatprep.subr.bf16.mxu0 0
      %1088 = vmatpush1.bf16.msra.mxu0 %v957
      %1089 = vmatprep.subr.bf16.mxu0 0
      %1090 = vmatpush1.bf16.msra.mxu0 %v958
      %1091 = vmatprep.subr.bf16.mxu0 0
      %1092 = vmatpush1.bf16.msra.mxu0 %v959
      %1093 = vmatprep.subr.bf16.mxu0 0
      %1094 = vmatpush1.bf16.msra.mxu0 %v960
      %1095 = vmatprep.subr.bf16.mxu0 0
      %1096 = vmatpush1.bf16.msra.mxu0 %v961
      %1097 = vmatprep.subr.bf16.mxu0 0
      %1098 = vmatpush1.bf16.msra.mxu0 %v962
      %1099 = vmatprep.subr.bf16.mxu0 0
      %1100 = vmatpush1.bf16.msra.mxu0 %v963
      %1101 = vmatprep.mubr.bf16.mxu0 %v661
      %1102 = vmatmul.mubr.bf16.gmra.mrb[0].mxu0 %v660
      %v1103 = vpop.f32.mrb[0].mxu0
      %v1104 = vadd.f32 %v402, %v1103
      %v1105 = vpop.f32.mrb[0].mxu0
      %v1106 = vpop.f32.mrb[0].mxu0
      %v1107 = vadd.f32 %v402, %v1106
      %v1108 = vpop.f32.mrb[0].mxu0
      %1109 = vmatprep.mubr.bf16.mxu0 %v666
      %1110 = vmatmul.mubr.bf16.gmra.mrb[0].mxu0 %v665
      %v1111 = vpop.f32.mrb[0].mxu0
      %v1112 = vadd.f32 %v402, %v1111
      %v1113 = vpop.f32.mrb[0].mxu0
      %v1114 = vpop.f32.mrb[0].mxu0
      %v1115 = vadd.f32 %v402, %v1114
      %v1116 = vpop.f32.mrb[0].mxu0
      %1117 = vmatprep.mubr.bf16.mxu0 %v671
      %1118 = vmatmul.mubr.bf16.gmra.mrb[0].mxu0 %v670
      %v1119 = vpop.f32.mrb[0].mxu0
      %v1120 = vadd.f32 %v402, %v1119
      %v1121 = vpop.f32.mrb[0].mxu0
      %v1122 = vpop.f32.mrb[0].mxu0
      %v1123 = vadd.f32 %v402, %v1122
      %v1124 = vpop.f32.mrb[0].mxu0
      %1125 = vmatprep.mubr.bf16.mxu0 %v676
      %1126 = vmatmul.mubr.bf16.gmra.mrb[0].mxu0 %v675
      %v1127 = vpop.f32.mrb[0].mxu0
      %v1128 = vadd.f32 %v402, %v1127
      %v1129 = vpop.f32.mrb[0].mxu0
      %v1130 = vpop.f32.mrb[0].mxu0
      %v1131 = vadd.f32 %v402, %v1130
      %v1132 = vpop.f32.mrb[0].mxu0
      %1133 = vmatprep.mubr.bf16.mxu0 %v681
      %1134 = vmatmul.mubr.bf16.gmra.mrb[0].mxu0 %v680
      %v1135 = vpop.f32.mrb[0].mxu0
      %v1136 = vadd.f32 %v402, %v1135
      %v1137 = vpop.f32.mrb[0].mxu0
      %v1138 = vpop.f32.mrb[0].mxu0
      %v1139 = vadd.f32 %v402, %v1138
      %v1140 = vpop.f32.mrb[0].mxu0
      %1141 = vmatprep.mubr.bf16.mxu0 %v686
      %1142 = vmatmul.mubr.bf16.gmra.mrb[0].mxu0 %v685
      %v1143 = vpop.f32.mrb[0].mxu0
      %v1144 = vadd.f32 %v402, %v1143
      %v1145 = vpop.f32.mrb[0].mxu0
      %v1146 = vpop.f32.mrb[0].mxu0
      %v1147 = vadd.f32 %v402, %v1146
      %v1148 = vpop.f32.mrb[0].mxu0
      %1149 = vmatprep.mubr.bf16.mxu0 %v691
      %1150 = vmatmul.mubr.bf16.gmra.mrb[0].mxu0 %v690
      %v1151 = vpop.f32.mrb[0].mxu0
      %v1152 = vadd.f32 %v402, %v1151
      %v1153 = vpop.f32.mrb[0].mxu0
      %v1154 = vpop.f32.mrb[0].mxu0
      %v1155 = vadd.f32 %v402, %v1154
      %v1156 = vpop.f32.mrb[0].mxu0
      %1157 = vmatprep.mubr.bf16.mxu0 %v696
      %1158 = vmatmul.mubr.bf16.gmra.mrb[0].mxu0 %v695
      %v1159 = vpop.f32.mrb[0].mxu0
      %v1160 = vadd.f32 %v402, %v1159
      %v1161 = vpop.f32.mrb[0].mxu0
      %v1162 = vpop.f32.mrb[0].mxu0
      %v1163 = vadd.f32 %v402, %v1162
      %v1164 = vpop.f32.mrb[0].mxu0
      %1165 = vmatprep.mubr.bf16.mxu0 %v701
      %1166 = vmatmul.mubr.bf16.gmra.mrb[0].mxu0 %v700
      %v1167 = vpop.f32.mrb[0].mxu0
      %v1168 = vadd.f32 %v402, %v1167
      %v1169 = vpop.f32.mrb[0].mxu0
      %v1170 = vpop.f32.mrb[0].mxu0
      %v1171 = vadd.f32 %v402, %v1170
      %v1172 = vpop.f32.mrb[0].mxu0
      %1173 = vmatprep.mubr.bf16.mxu0 %v706
      %1174 = vmatmul.mubr.bf16.gmra.mrb[0].mxu0 %v705
      %v1175 = vpop.f32.mrb[0].mxu0
      %v1176 = vadd.f32 %v402, %v1175
      %v1177 = vpop.f32.mrb[0].mxu0
      %v1178 = vpop.f32.mrb[0].mxu0
      %v1179 = vadd.f32 %v402, %v1178
      %v1180 = vpop.f32.mrb[0].mxu0
      %1181 = vmatprep.mubr.bf16.mxu0 %v711
      %1182 = vmatmul.mubr.bf16.gmra.mrb[0].mxu0 %v710
      %v1183 = vpop.f32.mrb[0].mxu0
      %v1184 = vadd.f32 %v402, %v1183
      %v1185 = vpop.f32.mrb[0].mxu0
      %v1186 = vpop.f32.mrb[0].mxu0
      %v1187 = vadd.f32 %v402, %v1186
      %v1188 = vpop.f32.mrb[0].mxu0
      %1189 = vmatprep.mubr.bf16.mxu0 %v716
      %1190 = vmatmul.mubr.bf16.gmra.mrb[0].mxu0 %v715
      %v1191 = vpop.f32.mrb[0].mxu0
      %v1192 = vadd.f32 %v402, %v1191
      %v1193 = vpop.f32.mrb[0].mxu0
      %v1194 = vpop.f32.mrb[0].mxu0
      %v1195 = vadd.f32 %v402, %v1194
      %v1196 = vpop.f32.mrb[0].mxu0
      %1197 = vmatprep.mubr.bf16.mxu0 %v721
      %1198 = vmatmul.mubr.bf16.gmra.mrb[0].mxu0 %v720
      %v1199 = vpop.f32.mrb[0].mxu0
      %v1200 = vadd.f32 %v402, %v1199
      %v1201 = vpop.f32.mrb[0].mxu0
      %v1202 = vpop.f32.mrb[0].mxu0
      %v1203 = vadd.f32 %v402, %v1202
      %v1204 = vpop.f32.mrb[0].mxu0
      %1205 = vmatprep.mubr.bf16.mxu0 %v726
      %1206 = vmatmul.mubr.bf16.gmra.mrb[0].mxu0 %v725
      %v1207 = vpop.f32.mrb[0].mxu0
      %v1208 = vadd.f32 %v402, %v1207
      %v1209 = vpop.f32.mrb[0].mxu0
      %v1210 = vpop.f32.mrb[0].mxu0
      %v1211 = vadd.f32 %v402, %v1210
      %v1212 = vpop.f32.mrb[0].mxu0
      %1213 = vmatprep.mubr.bf16.mxu0 %v731
      %1214 = vmatmul.mubr.bf16.gmra.mrb[0].mxu0 %v730
      %v1215 = vpop.f32.mrb[0].mxu0
      %v1216 = vadd.f32 %v402, %v1215
      %v1217 = vpop.f32.mrb[0].mxu0
      %v1218 = vpop.f32.mrb[0].mxu0
      %v1219 = vadd.f32 %v402, %v1218
      %v1220 = vpop.f32.mrb[0].mxu0
      %1221 = vmatprep.mubr.bf16.mxu0 %v736
      %1222 = vmatmul.mubr.bf16.gmra.mrb[0].mxu0 %v735
      %v1223 = vpop.f32.mrb[0].mxu0
      %v1224 = vadd.f32 %v402, %v1223
      %v1225 = vpop.f32.mrb[0].mxu0
      %v1226 = vpop.f32.mrb[0].mxu0
      %v1227 = vadd.f32 %v402, %v1226
      %v1228 = vpop.f32.mrb[0].mxu0
      %1229 = vdwg.mxu0
      %1230 = vmatprep.subr.bf16.mxu0 0
      %1231 = vmatpush1.bf16.msra.mxu0 %v964
      %1232 = vmatprep.subr.bf16.mxu0 0
      %1233 = vmatpush1.bf16.msra.mxu0 %v965
      %1234 = vmatprep.subr.bf16.mxu0 0
      %1235 = vmatpush1.bf16.msra.mxu0 %v966
      %1236 = vmatprep.subr.bf16.mxu0 0
      %1237 = vmatpush1.bf16.msra.mxu0 %v967
      %1238 = vmatprep.subr.bf16.mxu0 0
      %1239 = vmatpush1.bf16.msra.mxu0 %v968
      %1240 = vmatprep.subr.bf16.mxu0 0
      %1241 = vmatpush1.bf16.msra.mxu0 %v969
      %1242 = vmatprep.subr.bf16.mxu0 0
      %1243 = vmatpush1.bf16.msra.mxu0 %v970
      %1244 = vmatprep.subr.bf16.mxu0 0
      %1245 = vmatpush1.bf16.msra.mxu0 %v971
      %1246 = vmatprep.subr.bf16.mxu0 0
      %1247 = vmatpush1.bf16.msra.mxu0 %v972
      %1248 = vmatprep.subr.bf16.mxu0 0
      %1249 = vmatpush1.bf16.msra.mxu0 %v973
      %1250 = vmatprep.subr.bf16.mxu0 0
      %1251 = vmatpush1.bf16.msra.mxu0 %v974
      %1252 = vmatprep.subr.bf16.mxu0 0
      %1253 = vmatpush1.bf16.msra.mxu0 %v975
      %1254 = vmatprep.subr.bf16.mxu0 0
      %1255 = vmatpush1.bf16.msra.mxu0 %v976
      %1256 = vmatprep.subr.bf16.mxu0 0
      %1257 = vmatpush1.bf16.msra.mxu0 %v977
      %1258 = vmatprep.subr.bf16.mxu0 0
      %1259 = vmatpush1.bf16.msra.mxu0 %v978
      %1260 = vmatprep.subr.bf16.mxu0 0
      %1261 = vmatpush1.bf16.msra.mxu0 %v979
      %1262 = vmatprep.mubr.bf16.mxu0 %v663
      %1263 = vmatmul.mubr.bf16.gmra.mrb[0].mxu0 %v662
      %v1264 = vpop.f32.mrb[0].mxu0
      %v1265 = vadd.f32 %v1104, %v1264
      %v1266 = vpop.f32.mrb[0].mxu0
      %v1267 = vpop.f32.mrb[0].mxu0
      %v1268 = vadd.f32 %v1107, %v1267
      %v1269 = vpop.f32.mrb[0].mxu0
      %1270 = vmatprep.mubr.bf16.mxu0 %v668
      %1271 = vmatmul.mubr.bf16.gmra.mrb[0].mxu0 %v667
      %v1272 = vpop.f32.mrb[0].mxu0
      %v1273 = vadd.f32 %v1112, %v1272
      %v1274 = vpop.f32.mrb[0].mxu0
      %v1275 = vpop.f32.mrb[0].mxu0
      %v1276 = vadd.f32 %v1115, %v1275
      %v1277 = vpop.f32.mrb[0].mxu0
      %1278 = vmatprep.mubr.bf16.mxu0 %v673
      %1279 = vmatmul.mubr.bf16.gmra.mrb[0].mxu0 %v672
      %v1280 = vpop.f32.mrb[0].mxu0
      %v1281 = vadd.f32 %v1120, %v1280
      %v1282 = vpop.f32.mrb[0].mxu0
      %v1283 = vpop.f32.mrb[0].mxu0
      %v1284 = vadd.f32 %v1123, %v1283
      %v1285 = vpop.f32.mrb[0].mxu0
      %1286 = vmatprep.mubr.bf16.mxu0 %v678
      %1287 = vmatmul.mubr.bf16.gmra.mrb[0].mxu0 %v677
      %v1288 = vpop.f32.mrb[0].mxu0
      %v1289 = vadd.f32 %v1128, %v1288
      %v1290 = vpop.f32.mrb[0].mxu0
      %v1291 = vpop.f32.mrb[0].mxu0
      %v1292 = vadd.f32 %v1131, %v1291
      %v1293 = vpop.f32.mrb[0].mxu0
      %1294 = vmatprep.mubr.bf16.mxu0 %v683
      %1295 = vmatmul.mubr.bf16.gmra.mrb[0].mxu0 %v682
      %v1296 = vpop.f32.mrb[0].mxu0
      %v1297 = vadd.f32 %v1136, %v1296
      %v1298 = vpop.f32.mrb[0].mxu0
      %v1299 = vpop.f32.mrb[0].mxu0
      %v1300 = vadd.f32 %v1139, %v1299
      %v1301 = vpop.f32.mrb[0].mxu0
      %1302 = vmatprep.mubr.bf16.mxu0 %v688
      %1303 = vmatmul.mubr.bf16.gmra.mrb[0].mxu0 %v687
      %v1304 = vpop.f32.mrb[0].mxu0
      %v1305 = vadd.f32 %v1144, %v1304
      %v1306 = vpop.f32.mrb[0].mxu0
      %v1307 = vpop.f32.mrb[0].mxu0
      %v1308 = vadd.f32 %v1147, %v1307
      %v1309 = vpop.f32.mrb[0].mxu0
      %1310 = vmatprep.mubr.bf16.mxu0 %v693
      %1311 = vmatmul.mubr.bf16.gmra.mrb[0].mxu0 %v692
      %v1312 = vpop.f32.mrb[0].mxu0
      %v1313 = vadd.f32 %v1152, %v1312
      %v1314 = vpop.f32.mrb[0].mxu0
      %v1315 = vpop.f32.mrb[0].mxu0
      %v1316 = vadd.f32 %v1155, %v1315
      %v1317 = vpop.f32.mrb[0].mxu0
      %1318 = vmatprep.mubr.bf16.mxu0 %v698
      %1319 = vmatmul.mubr.bf16.gmra.mrb[0].mxu0 %v697
      %v1320 = vpop.f32.mrb[0].mxu0
      %v1321 = vadd.f32 %v1160, %v1320
      %v1322 = vpop.f32.mrb[0].mxu0
      %v1323 = vpop.f32.mrb[0].mxu0
      %v1324 = vadd.f32 %v1163, %v1323
      %v1325 = vpop.f32.mrb[0].mxu0
      %1326 = vmatprep.mubr.bf16.mxu0 %v703
      %1327 = vmatmul.mubr.bf16.gmra.mrb[0].mxu0 %v702
      %v1328 = vpop.f32.mrb[0].mxu0
      %v1329 = vadd.f32 %v1168, %v1328
      %v1330 = vpop.f32.mrb[0].mxu0
      %v1331 = vpop.f32.mrb[0].mxu0
      %v1332 = vadd.f32 %v1171, %v1331
      %v1333 = vpop.f32.mrb[0].mxu0
      %1334 = vmatprep.mubr.bf16.mxu0 %v708
      %1335 = vmatmul.mubr.bf16.gmra.mrb[0].mxu0 %v707
      %v1336 = vpop.f32.mrb[0].mxu0
      %v1337 = vadd.f32 %v1176, %v1336
      %v1338 = vpop.f32.mrb[0].mxu0
      %v1339 = vpop.f32.mrb[0].mxu0
      %v1340 = vadd.f32 %v1179, %v1339
      %v1341 = vpop.f32.mrb[0].mxu0
      %1342 = vmatprep.mubr.bf16.mxu0 %v713
      %1343 = vmatmul.mubr.bf16.gmra.mrb[0].mxu0 %v712
      %v1344 = vpop.f32.mrb[0].mxu0
      %v1345 = vadd.f32 %v1184, %v1344
      %v1346 = vpop.f32.mrb[0].mxu0
      %v1347 = vpop.f32.mrb[0].mxu0
      %v1348 = vadd.f32 %v1187, %v1347
      %v1349 = vpop.f32.mrb[0].mxu0
      %1350 = vmatprep.mubr.bf16.mxu0 %v718
      %1351 = vmatmul.mubr.bf16.gmra.mrb[0].mxu0 %v717
      %v1352 = vpop.f32.mrb[0].mxu0
      %v1353 = vadd.f32 %v1192, %v1352
      %v1354 = vpop.f32.mrb[0].mxu0
      %v1355 = vpop.f32.mrb[0].mxu0
      %v1356 = vadd.f32 %v1195, %v1355
      %v1357 = vpop.f32.mrb[0].mxu0
      %1358 = vmatprep.mubr.bf16.mxu0 %v723
      %1359 = vmatmul.mubr.bf16.gmra.mrb[0].mxu0 %v722
      %v1360 = vpop.f32.mrb[0].mxu0
      %v1361 = vadd.f32 %v1200, %v1360
      %v1362 = vpop.f32.mrb[0].mxu0
      %v1363 = vpop.f32.mrb[0].mxu0
      %v1364 = vadd.f32 %v1203, %v1363
      %v1365 = vpop.f32.mrb[0].mxu0
      %1366 = vmatprep.mubr.bf16.mxu0 %v728
      %1367 = vmatmul.mubr.bf16.gmra.mrb[0].mxu0 %v727
      %v1368 = vpop.f32.mrb[0].mxu0
      %v1369 = vadd.f32 %v1208, %v1368
      %v1370 = vpop.f32.mrb[0].mxu0
      %v1371 = vpop.f32.mrb[0].mxu0
      %v1372 = vadd.f32 %v1211, %v1371
      %v1373 = vpop.f32.mrb[0].mxu0
      %1374 = vmatprep.mubr.bf16.mxu0 %v733
      %1375 = vmatmul.mubr.bf16.gmra.mrb[0].mxu0 %v732
      %v1376 = vpop.f32.mrb[0].mxu0
      %v1377 = vadd.f32 %v1216, %v1376
      %v1378 = vpop.f32.mrb[0].mxu0
      %v1379 = vpop.f32.mrb[0].mxu0
      %v1380 = vadd.f32 %v1219, %v1379
      %v1381 = vpop.f32.mrb[0].mxu0
      %1382 = vmatprep.mubr.bf16.mxu0 %v738
      %1383 = vmatmul.mubr.bf16.gmra.mrb[0].mxu0 %v737
      %v1384 = vpop.f32.mrb[0].mxu0
      %v1385 = vadd.f32 %v1224, %v1384
      %v1386 = vpop.f32.mrb[0].mxu0
      %v1387 = vpop.f32.mrb[0].mxu0
      %v1388 = vadd.f32 %v1227, %v1387
      %v1389 = vpop.f32.mrb[0].mxu0
      %1390 = vdwg.mxu0
      %1391 = vmatprep.subr.bf16.mxu0 0
      %1392 = vmatpush1.bf16.msra.mxu0 %v980
      %1393 = vmatprep.subr.bf16.mxu0 0
      %1394 = vmatpush1.bf16.msra.mxu0 %v981
      %1395 = vmatprep.subr.bf16.mxu0 0
      %1396 = vmatpush1.bf16.msra.mxu0 %v982
      %1397 = vmatprep.subr.bf16.mxu0 0
      %1398 = vmatpush1.bf16.msra.mxu0 %v983
      %1399 = vmatprep.subr.bf16.mxu0 0
      %1400 = vmatpush1.bf16.msra.mxu0 0
      %1401 = vmatprep.subr.bf16.mxu0 0
      %1402 = vmatpush1.bf16.msra.mxu0 0
      %1403 = vmatprep.subr.bf16.mxu0 0
      %1404 = vmatpush1.bf16.msra.mxu0 0
      %1405 = vmatprep.subr.bf16.mxu0 0
      %1406 = vmatpush1.bf16.msra.mxu0 0
      %1407 = vmatprep.subr.bf16.mxu0 0
      %1408 = vmatpush1.bf16.msra.mxu0 0
      %1409 = vmatprep.subr.bf16.mxu0 0
      %1410 = vmatpush1.bf16.msra.mxu0 0
      %1411 = vmatprep.subr.bf16.mxu0 0
      %1412 = vmatpush1.bf16.msra.mxu0 0
      %1413 = vmatprep.subr.bf16.mxu0 0
      %1414 = vmatpush1.bf16.msra.mxu0 0
      %1415 = vmatprep.subr.bf16.mxu0 0
      %1416 = vmatpush1.bf16.msra.mxu0 0
      %1417 = vmatprep.subr.bf16.mxu0 0
      %1418 = vmatpush1.bf16.msra.mxu0 0
      %1419 = vmatprep.subr.bf16.mxu0 0
      %1420 = vmatpush1.bf16.msra.mxu0 0
      %1421 = vmatprep.subr.bf16.mxu0 0
      %1422 = vmatpush1.bf16.msra.mxu0 0
      %1423 = vmatprep.mubr.bf16.mxu0 0
      %1424 = vmatmul.mubr.bf16.gmra.mrb[0].mxu0 %v1022
      %v1425 = vpop.f32.mrb[0].mxu0
      %v1426 = vadd.f32 %v1265, %v1425
      %v1427 = vpop.f32.mrb[0].mxu0
      %v1428 = vpop.f32.mrb[0].mxu0
      %v1429 = vadd.f32 %v1268, %v1428
      %v1430 = vpop.f32.mrb[0].mxu0
      %1431 = vmatprep.mubr.bf16.mxu0 0
      %1432 = vmatmul.mubr.bf16.gmra.mrb[0].mxu0 %v1025
      %v1433 = vpop.f32.mrb[0].mxu0
      %v1434 = vadd.f32 %v1273, %v1433
      %v1435 = vpop.f32.mrb[0].mxu0
      %v1436 = vpop.f32.mrb[0].mxu0
      %v1437 = vadd.f32 %v1276, %v1436
      %v1438 = vpop.f32.mrb[0].mxu0
      %1439 = vmatprep.mubr.bf16.mxu0 0
      %1440 = vmatmul.mubr.bf16.gmra.mrb[0].mxu0 %v1028
      %v1441 = vpop.f32.mrb[0].mxu0
      %v1442 = vadd.f32 %v1281, %v1441
      %v1443 = vpop.f32.mrb[0].mxu0
      %v1444 = vpop.f32.mrb[0].mxu0
      %v1445 = vadd.f32 %v1284, %v1444
      %v1446 = vpop.f32.mrb[0].mxu0
      %1447 = vmatprep.mubr.bf16.mxu0 0
      %1448 = vmatmul.mubr.bf16.gmra.mrb[0].mxu0 %v1031
      %v1449 = vpop.f32.mrb[0].mxu0
      %v1450 = vadd.f32 %v1289, %v1449
      %v1451 = vpop.f32.mrb[0].mxu0
      %v1452 = vpop.f32.mrb[0].mxu0
      %v1453 = vadd.f32 %v1292, %v1452
      %v1454 = vpop.f32.mrb[0].mxu0
      %1455 = vmatprep.mubr.bf16.mxu0 0
      %1456 = vmatmul.mubr.bf16.gmra.mrb[0].mxu0 %v1034
      %v1457 = vpop.f32.mrb[0].mxu0
      %v1458 = vadd.f32 %v1297, %v1457
      %v1459 = vpop.f32.mrb[0].mxu0
      %v1460 = vpop.f32.mrb[0].mxu0
      %v1461 = vadd.f32 %v1300, %v1460
      %v1462 = vpop.f32.mrb[0].mxu0
      %1463 = vmatprep.mubr.bf16.mxu0 0
      %1464 = vmatmul.mubr.bf16.gmra.mrb[0].mxu0 %v1037
      %v1465 = vpop.f32.mrb[0].mxu0
      %v1466 = vadd.f32 %v1305, %v1465
      %v1467 = vpop.f32.mrb[0].mxu0
      %v1468 = vpop.f32.mrb[0].mxu0
      %v1469 = vadd.f32 %v1308, %v1468
      %v1470 = vpop.f32.mrb[0].mxu0
      %1471 = vmatprep.mubr.bf16.mxu0 0
      %1472 = vmatmul.mubr.bf16.gmra.mrb[0].mxu0 %v1040
      %v1473 = vpop.f32.mrb[0].mxu0
      %v1474 = vadd.f32 %v1313, %v1473
      %v1475 = vpop.f32.mrb[0].mxu0
      %v1476 = vpop.f32.mrb[0].mxu0
      %v1477 = vadd.f32 %v1316, %v1476
      %v1478 = vpop.f32.mrb[0].mxu0
      %1479 = vmatprep.mubr.bf16.mxu0 0
      %1480 = vmatmul.mubr.bf16.gmra.mrb[0].mxu0 %v1043
      %v1481 = vpop.f32.mrb[0].mxu0
      %v1482 = vadd.f32 %v1321, %v1481
      %v1483 = vpop.f32.mrb[0].mxu0
      %v1484 = vpop.f32.mrb[0].mxu0
      %v1485 = vadd.f32 %v1324, %v1484
      %v1486 = vpop.f32.mrb[0].mxu0
      %1487 = vmatprep.mubr.bf16.mxu0 0
      %1488 = vmatmul.mubr.bf16.gmra.mrb[0].mxu0 %v1046
      %v1489 = vpop.f32.mrb[0].mxu0
      %v1490 = vadd.f32 %v1329, %v1489
      %v1491 = vpop.f32.mrb[0].mxu0
      %v1492 = vpop.f32.mrb[0].mxu0
      %v1493 = vadd.f32 %v1332, %v1492
      %v1494 = vpop.f32.mrb[0].mxu0
      %1495 = vmatprep.mubr.bf16.mxu0 0
      %1496 = vmatmul.mubr.bf16.gmra.mrb[0].mxu0 %v1049
      %v1497 = vpop.f32.mrb[0].mxu0
      %v1498 = vadd.f32 %v1337, %v1497
      %v1499 = vpop.f32.mrb[0].mxu0
      %v1500 = vpop.f32.mrb[0].mxu0
      %v1501 = vadd.f32 %v1340, %v1500
      %v1502 = vpop.f32.mrb[0].mxu0
      %1503 = vmatprep.mubr.bf16.mxu0 0
      %1504 = vmatmul.mubr.bf16.gmra.mrb[0].mxu0 %v1052
      %v1505 = vpop.f32.mrb[0].mxu0
      %v1506 = vadd.f32 %v1345, %v1505
      %v1507 = vpop.f32.mrb[0].mxu0
      %v1508 = vpop.f32.mrb[0].mxu0
      %v1509 = vadd.f32 %v1348, %v1508
      %v1510 = vpop.f32.mrb[0].mxu0
      %1511 = vmatprep.mubr.bf16.mxu0 0
      %1512 = vmatmul.mubr.bf16.gmra.mrb[0].mxu0 %v1055
      %v1513 = vpop.f32.mrb[0].mxu0
      %v1514 = vadd.f32 %v1353, %v1513
      %v1515 = vpop.f32.mrb[0].mxu0
      %v1516 = vpop.f32.mrb[0].mxu0
      %v1517 = vadd.f32 %v1356, %v1516
      %v1518 = vpop.f32.mrb[0].mxu0
      %1519 = vmatprep.mubr.bf16.mxu0 0
      %1520 = vmatmul.mubr.bf16.gmra.mrb[0].mxu0 %v1058
      %v1521 = vpop.f32.mrb[0].mxu0
      %v1522 = vadd.f32 %v1361, %v1521
      %v1523 = vpop.f32.mrb[0].mxu0
      %v1524 = vpop.f32.mrb[0].mxu0
      %v1525 = vadd.f32 %v1364, %v1524
      %v1526 = vpop.f32.mrb[0].mxu0
      %1527 = vmatprep.mubr.bf16.mxu0 0
      %1528 = vmatmul.mubr.bf16.gmra.mrb[0].mxu0 %v1061
      %v1529 = vpop.f32.mrb[0].mxu0
      %v1530 = vadd.f32 %v1369, %v1529
      %v1531 = vpop.f32.mrb[0].mxu0
      %v1532 = vpop.f32.mrb[0].mxu0
      %v1533 = vadd.f32 %v1372, %v1532
      %v1534 = vpop.f32.mrb[0].mxu0
      %1535 = vmatprep.mubr.bf16.mxu0 0
      %1536 = vmatmul.mubr.bf16.gmra.mrb[0].mxu0 %v1064
      %v1537 = vpop.f32.mrb[0].mxu0
      %v1538 = vadd.f32 %v1377, %v1537
      %v1539 = vpop.f32.mrb[0].mxu0
      %v1540 = vpop.f32.mrb[0].mxu0
      %v1541 = vadd.f32 %v1380, %v1540
      %v1542 = vpop.f32.mrb[0].mxu0
      %1543 = vmatprep.mubr.bf16.mxu0 0
      %1544 = vmatmul.mubr.bf16.gmra.mrb[0].mxu0 %v1067
      %v1545 = vpop.f32.mrb[0].mxu0
      %v1546 = vadd.f32 %v1385, %v1545
      %v1547 = vpop.f32.mrb[0].mxu0
      %v1548 = vpop.f32.mrb[0].mxu0
      %v1549 = vadd.f32 %v1388, %v1548
      %v1550 = vpop.f32.mrb[0].mxu0
      %1551 = vdwg.mxu0
      %v1552 = vmax.f32 %v1426, 0.0
      %v1553 = vmax.f32 %v1429, 0.0
      %v1554 = vmax.f32 %v1434, 0.0
      %v1555 = vmax.f32 %v1437, 0.0
      %v1556 = vmax.f32 %v1442, 0.0
      %v1557 = vmax.f32 %v1445, 0.0
      %v1558 = vmax.f32 %v1450, 0.0
      %v1559 = vmax.f32 %v1453, 0.0
      %v1560 = vmax.f32 %v1458, 0.0
      %v1561 = vmax.f32 %v1461, 0.0
      %v1562 = vmax.f32 %v1466, 0.0
      %v1563 = vmax.f32 %v1469, 0.0
      %v1564 = vmax.f32 %v1474, 0.0
      %v1565 = vmax.f32 %v1477, 0.0
      %v1566 = vmax.f32 %v1482, 0.0
      %v1567 = vmax.f32 %v1485, 0.0
      %v1568 = vmax.f32 %v1490, 0.0
      %v1569 = vmax.f32 %v1493, 0.0
      %v1570 = vmax.f32 %v1498, 0.0
      %v1571 = vmax.f32 %v1501, 0.0
      %v1572 = vmax.f32 %v1506, 0.0
      %v1573 = vmax.f32 %v1509, 0.0
      %v1574 = vmax.f32 %v1514, 0.0
      %v1575 = vmax.f32 %v1517, 0.0
      %v1576 = vmax.f32 %v1522, 0.0
      %v1577 = vmax.f32 %v1525, 0.0
      %v1578 = vmax.f32 %v1530, 0.0
      %v1579 = vmax.f32 %v1533, 0.0
      %v1580 = vmax.f32 %v1538, 0.0
      %v1581 = vmax.f32 %v1541, 0.0
      %v1582 = vmax.f32 %v1546, 0.0
      %v1583 = vmax.f32 %v1549, 0.0
      %v1584 = vpack.c.bf16 %v1553, %v1552
      %v1585 = vpack.c.bf16 %v1555, %v1554
      %v1586 = vpack.c.bf16 %v1557, %v1556
      %v1587 = vpack.c.bf16 %v1559, %v1558
      %v1588 = vpack.c.bf16 %v1561, %v1560
      %v1589 = vpack.c.bf16 %v1563, %v1562
      %v1590 = vpack.c.bf16 %v1565, %v1564
      %v1591 = vpack.c.bf16 %v1567, %v1566
      %v1592 = vpack.c.bf16 %v1569, %v1568
      %v1593 = vpack.c.bf16 %v1571, %v1570
      %v1594 = vpack.c.bf16 %v1573, %v1572
      %v1595 = vpack.c.bf16 %v1575, %v1574
      %v1596 = vpack.c.bf16 %v1577, %v1576
      %v1597 = vpack.c.bf16 %v1579, %v1578
      %v1598 = vpack.c.bf16 %v1581, %v1580
      %v1599 = vpack.c.bf16 %v1583, %v1582
      %v1616 = vunpack.c.l.b16 %v1584
      %v1617 = vunpack.c.h.b16 %v1584
      %v1618 = vunpack.c.l.b16 %v1585
      %v1619 = vunpack.c.h.b16 %v1585
      %v1620 = vunpack.c.l.b16 %v1586
      %v1621 = vunpack.c.h.b16 %v1586
      %v1622 = vunpack.c.l.b16 %v1587
      %v1623 = vunpack.c.h.b16 %v1587
      %v1624 = vunpack.c.l.b16 %v1588
      %v1625 = vunpack.c.h.b16 %v1588
      %v1626 = vunpack.c.l.b16 %v1589
      %v1627 = vunpack.c.h.b16 %v1589
      %v1628 = vunpack.c.l.b16 %v1590
      %v1629 = vunpack.c.h.b16 %v1590
      %v1630 = vunpack.c.l.b16 %v1591
      %v1631 = vunpack.c.h.b16 %v1591
      %v1632 = vunpack.c.l.b16 %v1592
      %v1633 = vunpack.c.h.b16 %v1592
      %v1634 = vunpack.c.l.b16 %v1593
      %v1635 = vunpack.c.h.b16 %v1593
      %v1636 = vunpack.c.l.b16 %v1594
      %v1637 = vunpack.c.h.b16 %v1594
      %v1638 = vunpack.c.l.b16 %v1595
      %v1639 = vunpack.c.h.b16 %v1595
      %v1640 = vunpack.c.l.b16 %v1596
      %v1641 = vunpack.c.h.b16 %v1596
      %v1642 = vunpack.c.l.b16 %v1597
      %v1643 = vunpack.c.h.b16 %v1597
      %v1644 = vunpack.c.l.b16 %v1598
      %v1645 = vunpack.c.h.b16 %v1598
      %v1646 = vunpack.c.l.b16 %v1599
      %v1647 = vunpack.c.h.b16 %v1599
      %v1648 = vpack.c.b16 %v1616, %v1616
      %v1649 = vpack.c.b16 %v1617, %v1617
      %v1650 = vpack.c.b16 %v1618, %v1618
      %v1651 = vpack.c.b16 %v1619, %v1619
      %v1652 = vpack.c.b16 %v1620, %v1620
      %v1653 = vpack.c.b16 %v1621, %v1621
      %v1654 = vpack.c.b16 %v1622, %v1622
      %v1655 = vpack.c.b16 %v1623, %v1623
      %v1656 = vpack.c.b16 %v1624, %v1624
      %v1657 = vpack.c.b16 %v1625, %v1625
      %v1658 = vpack.c.b16 %v1626, %v1626
      %v1659 = vpack.c.b16 %v1627, %v1627
      %v1660 = vpack.c.b16 %v1628, %v1628
      %v1661 = vpack.c.b16 %v1629, %v1629
      %v1662 = vpack.c.b16 %v1630, %v1630
      %v1663 = vpack.c.b16 %v1631, %v1631
      %v1664 = vpack.c.b16 %v1632, %v1632
      %v1665 = vpack.c.b16 %v1633, %v1633
      %v1666 = vpack.c.b16 %v1634, %v1634
      %v1667 = vpack.c.b16 %v1635, %v1635
      %v1668 = vpack.c.b16 %v1636, %v1636
      %v1669 = vpack.c.b16 %v1637, %v1637
      %v1670 = vpack.c.b16 %v1638, %v1638
      %v1671 = vpack.c.b16 %v1639, %v1639
      %v1672 = vpack.c.b16 %v1640, %v1640
      %v1673 = vpack.c.b16 %v1641, %v1641
      %v1674 = vpack.c.b16 %v1642, %v1642
      %v1675 = vpack.c.b16 %v1643, %v1643
      %v1676 = vpack.c.b16 %v1644, %v1644
      %v1677 = vpack.c.b16 %v1645, %v1645
      %v1678 = vpack.c.b16 %v1646, %v1646
      %v1679 = vpack.c.b16 %v1647, %v1647
      %vm1712 = vcmask 519168
      %1713 = vst.msk [vmem:[%s226] sm:$0xf] %vm1712, %v1648
      %1714 = vst.msk [vmem:[%s226 + $0x4] sm:$0xf] %vm1712, %v1649
      %1715 = vst.msk [vmem:[%s226 + $0x8] sm:$0xf] %vm1712, %v1650
      %1716 = vst.msk [vmem:[%s226 + $0xc] sm:$0xf] %vm1712, %v1651
      %1717 = vst.msk [vmem:[%s226 + $0x10] sm:$0xf] %vm1712, %v1652
      %1718 = vst.msk [vmem:[%s226 + $0x14] sm:$0xf] %vm1712, %v1653
      %1719 = vst.msk [vmem:[%s226 + $0x18] sm:$0xf] %vm1712, %v1654
      %1720 = vst.msk [vmem:[%s226 + $0x1c] sm:$0xf] %vm1712, %v1655
      %1721 = vst.msk [vmem:[%s226 + $0x20] sm:$0xf] %vm1712, %v1656
      %1722 = vst.msk [vmem:[%s226 + $0x24] sm:$0xf] %vm1712, %v1657
      %1723 = vst.msk [vmem:[%s226 + $0x28] sm:$0xf] %vm1712, %v1658
      %1724 = vst.msk [vmem:[%s226 + $0x2c] sm:$0xf] %vm1712, %v1659
      %1725 = vst.msk [vmem:[%s226 + $0x30] sm:$0xf] %vm1712, %v1660
      %1726 = vst.msk [vmem:[%s226 + $0x34] sm:$0xf] %vm1712, %v1661
      %1727 = vst.msk [vmem:[%s226 + $0x38] sm:$0xf] %vm1712, %v1662
      %1728 = vst.msk [vmem:[%s226 + $0x3c] sm:$0xf] %vm1712, %v1663
      %1729 = vst.msk [vmem:[%s226 + $0x40] sm:$0xf] %vm1712, %v1664
      %1730 = vst.msk [vmem:[%s226 + $0x44] sm:$0xf] %vm1712, %v1665
      %1731 = vst.msk [vmem:[%s226 + $0x48] sm:$0xf] %vm1712, %v1666
      %1732 = vst.msk [vmem:[%s226 + $0x4c] sm:$0xf] %vm1712, %v1667
      %1733 = vst.msk [vmem:[%s226 + $0x50] sm:$0xf] %vm1712, %v1668
      %1734 = vst.msk [vmem:[%s226 + $0x54] sm:$0xf] %vm1712, %v1669
      %1735 = vst.msk [vmem:[%s226 + $0x58] sm:$0xf] %vm1712, %v1670
      %1736 = vst.msk [vmem:[%s226 + $0x5c] sm:$0xf] %vm1712, %v1671
      %1737 = vst.msk [vmem:[%s226 + $0x60] sm:$0xf] %vm1712, %v1672
      %1738 = vst.msk [vmem:[%s226 + $0x64] sm:$0xf] %vm1712, %v1673
      %1739 = vst.msk [vmem:[%s226 + $0x68] sm:$0xf] %vm1712, %v1674
      %1740 = vst.msk [vmem:[%s226 + $0x6c] sm:$0xf] %vm1712, %v1675
      %1741 = vst.msk [vmem:[%s226 + $0x70] sm:$0xf] %vm1712, %v1676
      %1742 = vst.msk [vmem:[%s226 + $0x74] sm:$0xf] %vm1712, %v1677
      %1743 = vst.msk [vmem:[%s226 + $0x78] sm:$0xf] %vm1712, %v1678
      %1744 = vst.msk [vmem:[%s226 + $0x7c] sm:$0xf] %vm1712, %v1679
      %s1745 = smul.u32 32, %s18
      %p1746 = scmp.lt.s32.totalorder %s1745, 63
      %s1747 = scalar_select %p1746, %s1745, 63
      %p1748 = scmp.lt.s32.totalorder %s19, 0
      %s1749 = scalar_select %p1748, %s19, 0
      %s1750 = sadd.s32 %s1749, %s1747
      %s1751 = smul.addr %s1750, 4
      %s1752 = scalar_lea.vmem %s3, %s1751
      // Predicated region
      $region33: #{bottleneck_forward.5} parent=31 // pred_check
        %p1753 = pneg %p124
      $region34: #{bottleneck_forward.5} parent=31 // pred_check_branch
        %1755 = sbr.rel (%p1753) target = $region36
      $region35: #{bottleneck_forward.5} parent=31 // pred_region
        %s1756 = smul.u32 32, %s18
      $region36: #{bottleneck_forward.5} parent=31 // pred_fallthru
        _
    $region32: #{bottleneck_forward.5} parent=5 // pred_fallthru
      _
    %p1757 = scmp.le.s32.totalorder 2, %s9
    // Predicated region
    $region37: #{bottleneck_forward.5} parent=5 // pred_check
      %p1758 = pneg %p1757
    $region38: #{bottleneck_forward.5} parent=5 // pred_check_branch
      %1760 = sbr.rel (%p1758) target = $region40
    $region39: #{bottleneck_forward.5} parent=5 // pred_region
      %s1761 = ssub.s32 %s9, 2
      // Predicated region
      $region41: #{bottleneck_forward.5} parent=39 // pred_check
        %p1762 = pneg %p130
      $region42: #{bottleneck_forward.5} parent=39 // pred_check_branch
        %1764 = sbr.rel (%p1762) target = $region44
      $region43: #{bottleneck_forward.5} parent=39 // pred_region
        %s1765 = smul.u32 32, %s20
        %p1766 = scmp.lt.s32.totalorder %s1765, 63
        %s1767 = scalar_select %p1766, %s1765, 63
        %p1768 = scmp.lt.s32.totalorder %s21, 0
        %s1769 = scalar_select %p1768, %s21, 0
        %s1770 = sadd.s32 %s1769, %s1767
        %s1771 = smul.addr %s1770, 4
        %s1772 = scalar_lea.vmem %s3, %s1771
      $region44: #{bottleneck_forward.5} parent=39 // pred_fallthru
        _
    $region40: #{bottleneck_forward.5} parent=5 // pred_fallthru
      _
  $region6: #{bottleneck_forward.5} parent=0 // loop_footer
    %s13 = sadd.s32 1, %s9
  $region7: #{bottleneck_forward.5} parent=0 // loop_footer_branch
    %8 = sbr.rel target = $region3
  $region8: #{bottleneck_forward.5} parent=0 // loop_exit
    _

// kernel: bottleneck_forward.6
$region0: #{bottleneck_forward.6}
  #allocation0 [shape = 'u32[]', space=smem, size = 0x4, offset = 0x4, fixed_abs, tag = 'smem constant byte address 0x4 - core index']
  #allocation1 [shape = 'u32[144,128]{1,0:T(1,128)}', space=vmem, size = 0x12000, scoped, tag = 'internal scratch']
  %s0 = inlined_call_operand.vmem [shape: bf16[512,64], index: 0, kind: input, shape index: {}]
  %s1 = inlined_call_operand.vmem [shape: bf16[64,256], index: 1, kind: input, shape index: {}]
  %s2 = inlined_call_operand.vmem [shape: f32[1,256], index: 2, kind: input, shape index: {}]
  %s3 = inlined_call_operand.vmem [shape: bf16[512,256], index: 3, kind: output, shape index: {}]
  %s4 = sld [smem:[#allocation0]]
  $region45: #{bottleneck_forward.6} parent=0
    _
  %s6 = ssub.s32 1, %s4
  %s7 = scalar_select 0, %s6, %s4
  loop: start=0, step=1, limit=4
  $region2: #{bottleneck_forward.6} parent=0 // loop_pre_header
    _
  $region3: #{bottleneck_forward.6} parent=0 // loop_header
    %s9 = sphi 0, %s13
    %p10 = scmp.ge.s32.totalorder %s9, 4
    %s16 = sphi 0, %s28
    %s17 = sphi 0, %s24
    %s18 = sphi 0, %s16
    %s19 = sphi 0, %s17
    %s20 = sphi 0, %s18
    %s21 = sphi 0, %s19
    %s31 = sphi 0, %s33
    %s34 = sphi 0, %s31
    %s35 = sphi 0, %s34
    %s51 = sphi 0, %s35
    %s57 = sphi 0, %s59
    %s60 = sphi 0, %s57
    %s61 = sphi 0, %s60
    %s77 = sphi 0, %s61
    %s83 = sphi 0, %s85
    %s86 = sphi 0, %s83
    %s87 = sphi 0, %s86
    %s103 = sphi 0, %s87
    %s111 = sphi 0, %s113
    %s114 = sphi 0, %s111
    %s115 = sphi 0, %s114
    %s131 = sphi 0, %s115
  $region4: #{bottleneck_forward.6} parent=0 // loop_header_branch
    %12 = sbr.rel (%p10) target = $region8
  $region5: #{bottleneck_forward.6} parent=0 // loop_body
    %s14 = ssub.s32 %s9, 1
    %s15 = ssub.s32 %s9, 2
    %s22 = sadd.s32 1, %s17
    %p23 = scmp.ge.s32.totalorder %s22, 1
    %s24 = scalar_select %p23, 0, %s22
    %s25 = sadd.s32 1, %s16
    %s26 = scalar_select %p23, %s25, %s16
    %p27 = scmp.ge.s32.totalorder %s26, 2
    %s28 = scalar_select %p27, 0, %s26
    %s29 = ssub.s32 %s16, %s28
    %p30 = scmp.eq.s32.totalorder %s29, 0
    %s32 = sadd.s32 %s31, 1
    %s33 = scalar_select %p30, %s31, %s32
    %p36 = pneg %p30
    %p37 = scmp.eq.s32.totalorder %s9, 1
    %p38 = por %p36, %p37
    %p39 = scmp.ne.s32.totalorder %s31, %s34
    %p40 = scmp.eq.s32.totalorder %s9, 0
    %p41 = por %p39, %p40
    %p42 = scmp.ne.s32.totalorder %s31, %s34
    %p43 = scmp.eq.s32.totalorder %s14, 1
    %p44 = por %p42, %p43
    %p45 = scmp.ne.s32.totalorder %s34, %s35
    %p46 = scmp.eq.s32.totalorder %s14, 0
    %p47 = por %p45, %p46
    %p48 = scmp.ne.s32.totalorder %s34, %s35
    %p49 = scmp.eq.s32.totalorder %s15, 1
    %p50 = por %p48, %p49
    %p52 = scmp.ne.s32.totalorder %s35, %s51
    %p53 = scmp.eq.s32.totalorder %s15, 0
    %p54 = por %p52, %p53
    %s55 = ssub.s32 %s17, %s24
    %p56 = scmp.eq.s32.totalorder %s55, 0
    %s58 = sadd.s32 %s57, 1
    %s59 = scalar_select %p56, %s57, %s58
    %p62 = pneg %p56
    %p63 = scmp.eq.s32.totalorder %s9, 1
    %p64 = por %p62, %p63
    %p65 = scmp.ne.s32.totalorder %s57, %s60
    %p66 = scmp.eq.s32.totalorder %s9, 0
    %p67 = por %p65, %p66
    %p68 = scmp.ne.s32.totalorder %s57, %s60
    %p69 = scmp.eq.s32.totalorder %s14, 1
    %p70 = por %p68, %p69
    %p71 = scmp.ne.s32.totalorder %s60, %s61
    %p72 = scmp.eq.s32.totalorder %s14, 0
    %p73 = por %p71, %p72
    %p74 = scmp.ne.s32.totalorder %s60, %s61
    %p75 = scmp.eq.s32.totalorder %s15, 1
    %p76 = por %p74, %p75
    %p78 = scmp.ne.s32.totalorder %s61, %s77
    %p79 = scmp.eq.s32.totalorder %s15, 0
    %p80 = por %p78, %p79
    %s81 = ssub.s32 %s17, %s24
    %p82 = scmp.eq.s32.totalorder %s81, 0
    %s84 = sadd.s32 %s83, 1
    %s85 = scalar_select %p82, %s83, %s84
    %p88 = pneg %p82
    %p89 = scmp.eq.s32.totalorder %s9, 1
    %p90 = por %p88, %p89
    %p91 = scmp.ne.s32.totalorder %s83, %s86
    %p92 = scmp.eq.s32.totalorder %s9, 0
    %p93 = por %p91, %p92
    %p94 = scmp.ne.s32.totalorder %s83, %s86
    %p95 = scmp.eq.s32.totalorder %s14, 1
    %p96 = por %p94, %p95
    %p97 = scmp.ne.s32.totalorder %s86, %s87
    %p98 = scmp.eq.s32.totalorder %s14, 0
    %p99 = por %p97, %p98
    %p100 = scmp.ne.s32.totalorder %s86, %s87
    %p101 = scmp.eq.s32.totalorder %s15, 1
    %p102 = por %p100, %p101
    %p104 = scmp.ne.s32.totalorder %s87, %s103
    %p105 = scmp.eq.s32.totalorder %s15, 0
    %p106 = por %p104, %p105
    %s107 = ssub.s32 %s16, %s28
    %s108 = ssub.s32 %s17, %s24
    %s109 = sor.u32 %s107, %s108
    %p110 = scmp.eq.s32.totalorder %s109, 0
    %s112 = sadd.s32 %s111, 1
    %s113 = scalar_select %p110, %s111, %s112
    %p116 = pneg %p110
    %p117 = scmp.eq.s32.totalorder %s9, 1
    %p118 = por %p116, %p117
    %p119 = scmp.ne.s32.totalorder %s111, %s114
    %p120 = scmp.eq.s32.totalorder %s9, 0
    %p121 = por %p119, %p120
    %p122 = scmp.ne.s32.totalorder %s111, %s114
    %p123 = scmp.eq.s32.totalorder %s14, 1
    %p124 = por %p122, %p123
    %p125 = scmp.ne.s32.totalorder %s114, %s115
    %p126 = scmp.eq.s32.totalorder %s14, 0
    %p127 = por %p125, %p126
    %p128 = scmp.ne.s32.totalorder %s114, %s115
    %p129 = scmp.eq.s32.totalorder %s15, 1
    %p130 = por %p128, %p129
    %p132 = scmp.ne.s32.totalorder %s115, %s131
    %p133 = scmp.eq.s32.totalorder %s15, 0
    %p134 = por %p132, %p133
    %p135 = scmp.le.s32.totalorder 1, %s9
    %p136 = scmp.lt.s32.totalorder %s9, 3
    %p137 = pnand %p135, %p136
    %p138 = pneg %p137
    // Predicated region
    $region9: #{bottleneck_forward.6} parent=5 // pred_check
      _
    $region10: #{bottleneck_forward.6} parent=5 // pred_check_branch
      %140 = sbr.rel (%p137) target = $region12
    $region11: #{bottleneck_forward.6} parent=5 // pred_region
      %s141 = ssub.s32 %s9, 1
      // Predicated region
      $region13: #{bottleneck_forward.6} parent=11 // pred_check
        %p142 = pneg %p73
      $region14: #{bottleneck_forward.6} parent=11 // pred_check_branch
        %144 = sbr.rel (%p142) target = $region16
      $region15: #{bottleneck_forward.6} parent=11 // pred_region
        %s145 = smul.u32 2, %s19
        %p146 = scmp.lt.s32.totalorder %s145, 1
        %s147 = scalar_select %p146, %s145, 1
        %s148 = smul.addr %s147, 4
        %s149 = scalar_lea.vmem %s1, %s148
        %s150 = smul.u32 2, %s19
      $region16: #{bottleneck_forward.6} parent=11 // pred_fallthru
        _
      // Predicated region
      $region17: #{bottleneck_forward.6} parent=11 // pred_check
        %p151 = pneg %p99
      $region18: #{bottleneck_forward.6} parent=11 // pred_check_branch
        %153 = sbr.rel (%p151) target = $region20
      $region19: #{bottleneck_forward.6} parent=11 // pred_region
        %s154 = smul.u32 2, %s19
        %p155 = scmp.lt.s32.totalorder %s154, 1
        %s156 = scalar_select %p155, %s154, 1
        %s157 = scalar_lea.vmem %s2, %s156
        %s158 = smul.u32 2, %s19
      $region20: #{bottleneck_forward.6} parent=11 // pred_fallthru
        _
    $region12: #{bottleneck_forward.6} parent=5 // pred_fallthru
      _
    %p159 = scmp.lt.s32.totalorder %s9, 2
    // Predicated region
    $region21: #{bottleneck_forward.6} parent=5 // pred_check
      %p160 = pneg %p159
    $region22: #{bottleneck_forward.6} parent=5 // pred_check_branch
      %162 = sbr.rel (%p160) target = $region24
    $region23: #{bottleneck_forward.6} parent=5 // pred_region
      // Predicated region
      $region25: #{bottleneck_forward.6} parent=23 // pred_check
        %p163 = pneg %p41
      $region26: #{bottleneck_forward.6} parent=23 // pred_check_branch
        %165 = sbr.rel (%p163) target = $region28
      $region27: #{bottleneck_forward.6} parent=23 // pred_region
        %s166 = smul.u32 32, %s16
        %p167 = scmp.lt.s32.totalorder %s166, 63
        %s168 = scalar_select %p167, %s166, 63
        %s169 = smul.addr %s168, 4
        %s170 = scalar_lea.vmem %s0, %s169
        %s171 = smul.u32 32, %s16
      $region28: #{bottleneck_forward.6} parent=23 // pred_fallthru
        _
    $region24: #{bottleneck_forward.6} parent=5 // pred_fallthru
      _
    %p172 = scmp.le.s32.totalorder 1, %s9
    %p173 = scmp.lt.s32.totalorder %s9, 3
    %p174 = pnand %p172, %p173
    %p175 = pneg %p174
    // Predicated region
    $region29: #{bottleneck_forward.6} parent=5 // pred_check
      _
    $region30: #{bottleneck_forward.6} parent=5 // pred_check_branch
      %177 = sbr.rel (%p174) target = $region32
    $region31: #{bottleneck_forward.6} parent=5 // pred_region
      %s178 = ssub.s32 %s9, 1
      %s179 = smul.u32 32, %s18
      %p180 = scmp.lt.s32.totalorder %s179, 63
      %s181 = scalar_select %p180, %s179, 63
      %s182 = smul.addr %s181, 4
      %s183 = scalar_lea.vmem %s0, %s182
      %p184 = pneg %p47
      %p185 = pneg %p44
      %s186 = smul.u32 2, %s19
      %p187 = scmp.lt.s32.totalorder %s186, 1
      %s188 = scalar_select %p187, %s186, 1
      %s189 = smul.addr %s188, 4
      %s190 = scalar_lea.vmem %s1, %s189
      %p191 = pneg %p73
      %p192 = pneg %p70
      %s193 = smul.u32 2, %s19
      %p194 = scmp.lt.s32.totalorder %s193, 1
      %s195 = scalar_select %p194, %s193, 1
      %s196 = scalar_lea.vmem %s2, %s195
      %p197 = pneg %p99
      %p198 = pneg %p96
      %p199 = pneg %p127
      %p200 = pneg %p124
      %s201 = smul.u32 32, %s18
      %s202 = smul.u32 2, %s19
      %p203 = scmp.lt.s32.totalorder %s201, 63
      %s204 = scalar_select %p203, %s201, 63
      %p205 = scmp.lt.s32.totalorder %s202, 1
      %s206 = scalar_select %p205, %s202, 1
      %s207 = smul.addr %s204, 2
      %s208 = sadd.s32 %s206, %s207
      %s209 = smul.addr %s208, 4
      %s210 = scalar_lea.vmem %s3, %s209
      %s211 = smul.u32 32, %s18
      %p212 = scmp.lt.s32.totalorder %s211, 63
      %s213 = scalar_select %p212, %s211, 63
      %s214 = smul.addr %s213, 4
      %s215 = scalar_lea.vmem %s0, %s214
      %s216 = smul.u32 32, %s18
      %s217 = smul.u32 2, %s19
      %p218 = scmp.lt.s32.totalorder %s217, 1
      %s219 = scalar_select %p218, %s217, 1
      %s220 = smul.addr %s219, 4
      %s221 = scalar_lea.vmem %s1, %s220
      %s222 = smul.u32 2, %s19
      %s223 = smul.u32 2, %s19
      %p224 = scmp.lt.s32.totalorder %s223, 1
      %s225 = scalar_select %p224, %s223, 1
      %s226 = scalar_lea.vmem %s2, %s225
      %s227 = smul.u32 2, %s19
      %s228 = smul.u32 32, %s18
      %s229 = smul.u32 2, %s19
      %p230 = scmp.lt.s32.totalorder %s228, 63
      %s231 = scalar_select %p230, %s228, 63
      %p232 = scmp.lt.s32.totalorder %s229, 1
      %s233 = scalar_select %p232, %s229, 1
      %s234 = smul.addr %s231, 2
      %s235 = sadd.s32 %s233, %s234
      %s236 = smul.addr %s235, 4
      %s237 = scalar_lea.vmem %s3, %s236
      %s238 = smul.u32 32, %s18
      %s239 = smul.u32 2, %s19
      %v241 = vld [vmem:[%s215] sm:$0xf]
      %v242 = vld [vmem:[%s215 + $0x4] sm:$0xf]
      %v243 = vld [vmem:[%s215 + $0x8] sm:$0xf]
      %v244 = vld [vmem:[%s215 + $0xc] sm:$0xf]
      %v245 = vld [vmem:[%s215 + $0x10] sm:$0xf]
      %v246 = vld [vmem:[%s215 + $0x14] sm:$0xf]
      %v247 = vld [vmem:[%s215 + $0x18] sm:$0xf]
      %v248 = vld [vmem:[%s215 + $0x1c] sm:$0xf]
      %v249 = vld [vmem:[%s215 + $0x20] sm:$0xf]
      %v250 = vld [vmem:[%s215 + $0x24] sm:$0xf]
      %v251 = vld [vmem:[%s215 + $0x28] sm:$0xf]
      %v252 = vld [vmem:[%s215 + $0x2c] sm:$0xf]
      %v253 = vld [vmem:[%s215 + $0x30] sm:$0xf]
      %v254 = vld [vmem:[%s215 + $0x34] sm:$0xf]
      %v255 = vld [vmem:[%s215 + $0x38] sm:$0xf]
      %v256 = vld [vmem:[%s215 + $0x3c] sm:$0xf]
      %v257 = vld [vmem:[%s215 + $0x40] sm:$0xf]
      %v258 = vld [vmem:[%s215 + $0x44] sm:$0xf]
      %v259 = vld [vmem:[%s215 + $0x48] sm:$0xf]
      %v260 = vld [vmem:[%s215 + $0x4c] sm:$0xf]
      %v261 = vld [vmem:[%s215 + $0x50] sm:$0xf]
      %v262 = vld [vmem:[%s215 + $0x54] sm:$0xf]
      %v263 = vld [vmem:[%s215 + $0x58] sm:$0xf]
      %v264 = vld [vmem:[%s215 + $0x5c] sm:$0xf]
      %v265 = vld [vmem:[%s215 + $0x60] sm:$0xf]
      %v266 = vld [vmem:[%s215 + $0x64] sm:$0xf]
      %v267 = vld [vmem:[%s215 + $0x68] sm:$0xf]
      %v268 = vld [vmem:[%s215 + $0x6c] sm:$0xf]
      %v269 = vld [vmem:[%s215 + $0x70] sm:$0xf]
      %v270 = vld [vmem:[%s215 + $0x74] sm:$0xf]
      %v271 = vld [vmem:[%s215 + $0x78] sm:$0xf]
      %v272 = vld [vmem:[%s215 + $0x7c] sm:$0xf]
      %v273 = vld [vmem:[%s221] sm:$0xff]
      %v274 = vld [vmem:[%s221 + $0x8] sm:$0xff]
      %v275 = vld [vmem:[%s221 + $0x10] sm:$0xff]
      %v276 = vld [vmem:[%s221 + $0x18] sm:$0xff]
      %v277 = vld [vmem:[%s221 + $0x20] sm:$0xff]
      %v278 = vld [vmem:[%s221 + $0x28] sm:$0xff]
      %v279 = vld [vmem:[%s221 + $0x30] sm:$0xff]
      %v280 = vld [vmem:[%s221 + $0x38] sm:$0xff]
      %v281 = vld [vmem:[%s226] sm:$0x3]
      %v283 = vlaneseq
      %v284 = vshrl.u32 %v283, 7
      %v285 = vsub.s32 0, %v284
      %v286 = vrot.slane %v281, %v285
      %v287 = vlaneseq
      %v288 = vshrl.u32 %v287, 7
      %v289 = vsub.s32 1, %v288
      %v290 = vrot.slane %v281, %v289
      %v325 = vunpack.c.l.b16 %v241
      %v326 = vunpack.c.l.b16 %v242
      %v327 = vunpack.c.l.b16 %v243
      %v328 = vunpack.c.l.b16 %v244
      %v329 = vunpack.c.l.b16 %v245
      %v330 = vunpack.c.l.b16 %v246
      %v331 = vunpack.c.l.b16 %v247
      %v332 = vunpack.c.l.b16 %v248
      %v333 = vunpack.c.l.b16 %v249
      %v334 = vunpack.c.l.b16 %v250
      %v335 = vunpack.c.l.b16 %v251
      %v336 = vunpack.c.l.b16 %v252
      %v337 = vunpack.c.l.b16 %v253
      %v338 = vunpack.c.l.b16 %v254
      %v339 = vunpack.c.l.b16 %v255
      %v340 = vunpack.c.l.b16 %v256
      %v341 = vunpack.c.l.b16 %v257
      %v342 = vunpack.c.l.b16 %v258
      %v343 = vunpack.c.l.b16 %v259
      %v344 = vunpack.c.l.b16 %v260
      %v345 = vunpack.c.l.b16 %v261
      %v346 = vunpack.c.l.b16 %v262
      %v347 = vunpack.c.l.b16 %v263
      %v348 = vunpack.c.l.b16 %v264
      %v349 = vunpack.c.l.b16 %v265
      %v350 = vunpack.c.l.b16 %v266
      %v351 = vunpack.c.l.b16 %v267
      %v352 = vunpack.c.l.b16 %v268
      %v353 = vunpack.c.l.b16 %v269
      %v354 = vunpack.c.l.b16 %v270
      %v355 = vunpack.c.l.b16 %v271
      %v356 = vunpack.c.l.b16 %v272
      %v357 = vpack.c.b16 %v326, %v325
      %v358 = vpack.c.b16 %v328, %v327
      %v359 = vpack.c.b16 %v330, %v329
      %v360 = vpack.c.b16 %v332, %v331
      %v361 = vpack.c.b16 %v334, %v333
      %v362 = vpack.c.b16 %v336, %v335
      %v363 = vpack.c.b16 %v338, %v337
      %v364 = vpack.c.b16 %v340, %v339
      %v365 = vpack.c.b16 %v342, %v341
      %v366 = vpack.c.b16 %v344, %v343
      %v367 = vpack.c.b16 %v346, %v345
      %v368 = vpack.c.b16 %v348, %v347
      %v369 = vpack.c.b16 %v350, %v349
      %v370 = vpack.c.b16 %v352, %v351
      %v371 = vpack.c.b16 %v354, %v353
      %v372 = vpack.c.b16 %v356, %v355
      %v381 = vunpack.c.l.b16 %v273
      %v382 = vunpack.c.h.b16 %v273
      %v383 = vunpack.c.l.b16 %v274
      %v384 = vunpack.c.h.b16 %v274
      %v385 = vunpack.c.l.b16 %v275
      %v386 = vunpack.c.h.b16 %v275
      %v387 = vunpack.c.l.b16 %v276
      %v388 = vunpack.c.h.b16 %v276
      %v389 = vunpack.c.l.b16 %v277
      %v390 = vunpack.c.h.b16 %v277
      %v391 = vunpack.c.l.b16 %v278
      %v392 = vunpack.c.h.b16 %v278
      %v393 = vunpack.c.l.b16 %v279
      %v394 = vunpack.c.h.b16 %v279
      %v395 = vunpack.c.l.b16 %v280
      %v396 = vunpack.c.h.b16 %v280
      %v397 = vpack.c.b16 %v383, %v381
      %v398 = vpack.c.b16 %v384, %v382
      %v399 = vpack.c.b16 %v387, %v385
      %v400 = vpack.c.b16 %v388, %v386
      %v401 = vpack.c.b16 %v391, %v389
      %v402 = vpack.c.b16 %v392, %v390
      %v403 = vpack.c.b16 %v395, %v393
      %v404 = vpack.c.b16 %v396, %v394
      %vm413 = vcmask 523264
      %v415 = vsel %vm413, %v357, 0
      %v418 = vsel %vm413, %v358, 0
      %v421 = vsel %vm413, %v359, 0
      %v424 = vsel %vm413, %v360, 0
      %v427 = vsel %vm413, %v361, 0
      %v430 = vsel %vm413, %v362, 0
      %v433 = vsel %vm413, %v363, 0
      %v436 = vsel %vm413, %v364, 0
      %v439 = vsel %vm413, %v365, 0
      %v442 = vsel %vm413, %v366, 0
      %v445 = vsel %vm413, %v367, 0
      %v448 = vsel %vm413, %v368, 0
      %v451 = vsel %vm413, %v369, 0
      %v454 = vsel %vm413, %v370, 0
      %v457 = vsel %vm413, %v371, 0
      %v460 = vsel %vm413, %v372, 0
      %462 = vmatprep.subr.bf16.mxu0 %v398
      %463 = vmatpush1.bf16.msra.mxu0 %v397
      %464 = vmatprep.subr.bf16.mxu0 %v400
      %465 = vmatpush1.bf16.msra.mxu0 %v399
      %466 = vmatprep.subr.bf16.mxu0 %v402
      %467 = vmatpush1.bf16.msra.mxu0 %v401
      %468 = vmatprep.subr.bf16.mxu0 %v404
      %469 = vmatpush1.bf16.msra.mxu0 %v403
      %470 = vmatprep.subr.bf16.mxu0 0
      %471 = vmatpush1.bf16.msra.mxu0 0
      %472 = vmatprep.subr.bf16.mxu0 0
      %473 = vmatpush1.bf16.msra.mxu0 0
      %474 = vmatprep.subr.bf16.mxu0 0
      %475 = vmatpush1.bf16.msra.mxu0 0
      %476 = vmatprep.subr.bf16.mxu0 0
      %477 = vmatpush1.bf16.msra.mxu0 0
      %478 = vmatprep.subr.bf16.mxu0 0
      %479 = vmatpush1.bf16.msra.mxu0 0
      %480 = vmatprep.subr.bf16.mxu0 0
      %481 = vmatpush1.bf16.msra.mxu0 0
      %482 = vmatprep.subr.bf16.mxu0 0
      %483 = vmatpush1.bf16.msra.mxu0 0
      %484 = vmatprep.subr.bf16.mxu0 0
      %485 = vmatpush1.bf16.msra.mxu0 0
      %486 = vmatprep.subr.bf16.mxu0 0
      %487 = vmatpush1.bf16.msra.mxu0 0
      %488 = vmatprep.subr.bf16.mxu0 0
      %489 = vmatpush1.bf16.msra.mxu0 0
      %490 = vmatprep.subr.bf16.mxu0 0
      %491 = vmatpush1.bf16.msra.mxu0 0
      %492 = vmatprep.subr.bf16.mxu0 0
      %493 = vmatpush1.bf16.msra.mxu0 0
      %494 = vmatprep.mubr.bf16.mxu0 0
      %495 = vmatmul.mubr.bf16.gmra.mrb[0].mxu0 %v415
      %v496 = vpop.f32.mrb[0].mxu0
      %v497 = vadd.f32 %v286, %v496
      %v498 = vpop.f32.mrb[0].mxu0
      %v499 = vadd.f32 %v290, %v498
      %v500 = vpop.f32.mrb[0].mxu0
      %v501 = vadd.f32 %v286, %v500
      %v502 = vpop.f32.mrb[0].mxu0
      %v503 = vadd.f32 %v290, %v502
      %504 = vmatprep.mubr.bf16.mxu0 0
      %505 = vmatmul.mubr.bf16.gmra.mrb[0].mxu0 %v418
      %v506 = vpop.f32.mrb[0].mxu0
      %v507 = vadd.f32 %v286, %v506
      %v508 = vpop.f32.mrb[0].mxu0
      %v509 = vadd.f32 %v290, %v508
      %v510 = vpop.f32.mrb[0].mxu0
      %v511 = vadd.f32 %v286, %v510
      %v512 = vpop.f32.mrb[0].mxu0
      %v513 = vadd.f32 %v290, %v512
      %514 = vmatprep.mubr.bf16.mxu0 0
      %515 = vmatmul.mubr.bf16.gmra.mrb[0].mxu0 %v421
      %v516 = vpop.f32.mrb[0].mxu0
      %v517 = vadd.f32 %v286, %v516
      %v518 = vpop.f32.mrb[0].mxu0
      %v519 = vadd.f32 %v290, %v518
      %v520 = vpop.f32.mrb[0].mxu0
      %v521 = vadd.f32 %v286, %v520
      %v522 = vpop.f32.mrb[0].mxu0
      %v523 = vadd.f32 %v290, %v522
      %524 = vmatprep.mubr.bf16.mxu0 0
      %525 = vmatmul.mubr.bf16.gmra.mrb[0].mxu0 %v424
      %v526 = vpop.f32.mrb[0].mxu0
      %v527 = vadd.f32 %v286, %v526
      %v528 = vpop.f32.mrb[0].mxu0
      %v529 = vadd.f32 %v290, %v528
      %v530 = vpop.f32.mrb[0].mxu0
      %v531 = vadd.f32 %v286, %v530
      %v532 = vpop.f32.mrb[0].mxu0
      %v533 = vadd.f32 %v290, %v532
      %534 = vmatprep.mubr.bf16.mxu0 0
      %535 = vmatmul.mubr.bf16.gmra.mrb[0].mxu0 %v427
      %v536 = vpop.f32.mrb[0].mxu0
      %v537 = vadd.f32 %v286, %v536
      %v538 = vpop.f32.mrb[0].mxu0
      %v539 = vadd.f32 %v290, %v538
      %v540 = vpop.f32.mrb[0].mxu0
      %v541 = vadd.f32 %v286, %v540
      %v542 = vpop.f32.mrb[0].mxu0
      %v543 = vadd.f32 %v290, %v542
      %544 = vmatprep.mubr.bf16.mxu0 0
      %545 = vmatmul.mubr.bf16.gmra.mrb[0].mxu0 %v430
      %v546 = vpop.f32.mrb[0].mxu0
      %v547 = vadd.f32 %v286, %v546
      %v548 = vpop.f32.mrb[0].mxu0
      %v549 = vadd.f32 %v290, %v548
      %v550 = vpop.f32.mrb[0].mxu0
      %v551 = vadd.f32 %v286, %v550
      %v552 = vpop.f32.mrb[0].mxu0
      %v553 = vadd.f32 %v290, %v552
      %554 = vmatprep.mubr.bf16.mxu0 0
      %555 = vmatmul.mubr.bf16.gmra.mrb[0].mxu0 %v433
      %v556 = vpop.f32.mrb[0].mxu0
      %v557 = vadd.f32 %v286, %v556
      %v558 = vpop.f32.mrb[0].mxu0
      %v559 = vadd.f32 %v290, %v558
      %v560 = vpop.f32.mrb[0].mxu0
      %v561 = vadd.f32 %v286, %v560
      %v562 = vpop.f32.mrb[0].mxu0
      %v563 = vadd.f32 %v290, %v562
      %564 = vmatprep.mubr.bf16.mxu0 0
      %565 = vmatmul.mubr.bf16.gmra.mrb[0].mxu0 %v436
      %v566 = vpop.f32.mrb[0].mxu0
      %v567 = vadd.f32 %v286, %v566
      %v568 = vpop.f32.mrb[0].mxu0
      %v569 = vadd.f32 %v290, %v568
      %v570 = vpop.f32.mrb[0].mxu0
      %v571 = vadd.f32 %v286, %v570
      %v572 = vpop.f32.mrb[0].mxu0
      %v573 = vadd.f32 %v290, %v572
      %574 = vmatprep.mubr.bf16.mxu0 0
      %575 = vmatmul.mubr.bf16.gmra.mrb[0].mxu0 %v439
      %v576 = vpop.f32.mrb[0].mxu0
      %v577 = vadd.f32 %v286, %v576
      %v578 = vpop.f32.mrb[0].mxu0
      %v579 = vadd.f32 %v290, %v578
      %v580 = vpop.f32.mrb[0].mxu0
      %v581 = vadd.f32 %v286, %v580
      %v582 = vpop.f32.mrb[0].mxu0
      %v583 = vadd.f32 %v290, %v582
      %584 = vmatprep.mubr.bf16.mxu0 0
      %585 = vmatmul.mubr.bf16.gmra.mrb[0].mxu0 %v442
      %v586 = vpop.f32.mrb[0].mxu0
      %v587 = vadd.f32 %v286, %v586
      %v588 = vpop.f32.mrb[0].mxu0
      %v589 = vadd.f32 %v290, %v588
      %v590 = vpop.f32.mrb[0].mxu0
      %v591 = vadd.f32 %v286, %v590
      %v592 = vpop.f32.mrb[0].mxu0
      %v593 = vadd.f32 %v290, %v592
      %594 = vmatprep.mubr.bf16.mxu0 0
      %595 = vmatmul.mubr.bf16.gmra.mrb[0].mxu0 %v445
      %v596 = vpop.f32.mrb[0].mxu0
      %v597 = vadd.f32 %v286, %v596
      %v598 = vpop.f32.mrb[0].mxu0
      %v599 = vadd.f32 %v290, %v598
      %v600 = vpop.f32.mrb[0].mxu0
      %v601 = vadd.f32 %v286, %v600
      %v602 = vpop.f32.mrb[0].mxu0
      %v603 = vadd.f32 %v290, %v602
      %604 = vmatprep.mubr.bf16.mxu0 0
      %605 = vmatmul.mubr.bf16.gmra.mrb[0].mxu0 %v448
      %v606 = vpop.f32.mrb[0].mxu0
      %v607 = vadd.f32 %v286, %v606
      %v608 = vpop.f32.mrb[0].mxu0
      %v609 = vadd.f32 %v290, %v608
      %v610 = vpop.f32.mrb[0].mxu0
      %v611 = vadd.f32 %v286, %v610
      %v612 = vpop.f32.mrb[0].mxu0
      %v613 = vadd.f32 %v290, %v612
      %614 = vmatprep.mubr.bf16.mxu0 0
      %615 = vmatmul.mubr.bf16.gmra.mrb[0].mxu0 %v451
      %v616 = vpop.f32.mrb[0].mxu0
      %v617 = vadd.f32 %v286, %v616
      %v618 = vpop.f32.mrb[0].mxu0
      %v619 = vadd.f32 %v290, %v618
      %v620 = vpop.f32.mrb[0].mxu0
      %v621 = vadd.f32 %v286, %v620
      %v622 = vpop.f32.mrb[0].mxu0
      %v623 = vadd.f32 %v290, %v622
      %624 = vmatprep.mubr.bf16.mxu0 0
      %625 = vmatmul.mubr.bf16.gmra.mrb[0].mxu0 %v454
      %v626 = vpop.f32.mrb[0].mxu0
      %v627 = vadd.f32 %v286, %v626
      %v628 = vpop.f32.mrb[0].mxu0
      %v629 = vadd.f32 %v290, %v628
      %v630 = vpop.f32.mrb[0].mxu0
      %v631 = vadd.f32 %v286, %v630
      %v632 = vpop.f32.mrb[0].mxu0
      %v633 = vadd.f32 %v290, %v632
      %634 = vmatprep.mubr.bf16.mxu0 0
      %635 = vmatmul.mubr.bf16.gmra.mrb[0].mxu0 %v457
      %v636 = vpop.f32.mrb[0].mxu0
      %v637 = vadd.f32 %v286, %v636
      %v638 = vpop.f32.mrb[0].mxu0
      %v639 = vadd.f32 %v290, %v638
      %v640 = vpop.f32.mrb[0].mxu0
      %v641 = vadd.f32 %v286, %v640
      %v642 = vpop.f32.mrb[0].mxu0
      %v643 = vadd.f32 %v290, %v642
      %644 = vmatprep.mubr.bf16.mxu0 0
      %645 = vmatmul.mubr.bf16.gmra.mrb[0].mxu0 %v460
      %v646 = vpop.f32.mrb[0].mxu0
      %v647 = vadd.f32 %v286, %v646
      %v648 = vpop.f32.mrb[0].mxu0
      %v649 = vadd.f32 %v290, %v648
      %v650 = vpop.f32.mrb[0].mxu0
      %v651 = vadd.f32 %v286, %v650
      %v652 = vpop.f32.mrb[0].mxu0
      %v653 = vadd.f32 %v290, %v652
      %654 = vdwg.mxu0
      %v655 = vpack.c.bf16 %v501, %v497
      %v656 = vpack.c.bf16 %v503, %v499
      %v657 = vpack.c.bf16 %v511, %v507
      %v658 = vpack.c.bf16 %v513, %v509
      %v659 = vpack.c.bf16 %v521, %v517
      %v660 = vpack.c.bf16 %v523, %v519
      %v661 = vpack.c.bf16 %v531, %v527
      %v662 = vpack.c.bf16 %v533, %v529
      %v663 = vpack.c.bf16 %v541, %v537
      %v664 = vpack.c.bf16 %v543, %v539
      %v665 = vpack.c.bf16 %v551, %v547
      %v666 = vpack.c.bf16 %v553, %v549
      %v667 = vpack.c.bf16 %v561, %v557
      %v668 = vpack.c.bf16 %v563, %v559
      %v669 = vpack.c.bf16 %v571, %v567
      %v670 = vpack.c.bf16 %v573, %v569
      %v671 = vpack.c.bf16 %v581, %v577
      %v672 = vpack.c.bf16 %v583, %v579
      %v673 = vpack.c.bf16 %v591, %v587
      %v674 = vpack.c.bf16 %v593, %v589
      %v675 = vpack.c.bf16 %v601, %v597
      %v676 = vpack.c.bf16 %v603, %v599
      %v677 = vpack.c.bf16 %v611, %v607
      %v678 = vpack.c.bf16 %v613, %v609
      %v679 = vpack.c.bf16 %v621, %v617
      %v680 = vpack.c.bf16 %v623, %v619
      %v681 = vpack.c.bf16 %v631, %v627
      %v682 = vpack.c.bf16 %v633, %v629
      %v683 = vpack.c.bf16 %v641, %v637
      %v684 = vpack.c.bf16 %v643, %v639
      %v685 = vpack.c.bf16 %v651, %v647
      %v686 = vpack.c.bf16 %v653, %v649
      %v719 = vunpack.c.l.b16 %v655
      %v720 = vunpack.c.l.b16 %v656
      %v721 = vunpack.c.h.b16 %v655
      %v722 = vunpack.c.h.b16 %v656
      %v723 = vunpack.c.l.b16 %v657
      %v724 = vunpack.c.l.b16 %v658
      %v725 = vunpack.c.h.b16 %v657
      %v726 = vunpack.c.h.b16 %v658
      %v727 = vunpack.c.l.b16 %v659
      %v728 = vunpack.c.l.b16 %v660
      %v729 = vunpack.c.h.b16 %v659
      %v730 = vunpack.c.h.b16 %v660
      %v731 = vunpack.c.l.b16 %v661
      %v732 = vunpack.c.l.b16 %v662
      %v733 = vunpack.c.h.b16 %v661
      %v734 = vunpack.c.h.b16 %v662
      %v735 = vunpack.c.l.b16 %v663
      %v736 = vunpack.c.l.b16 %v664
      %v737 = vunpack.c.h.b16 %v663
      %v738 = vunpack.c.h.b16 %v664
      %v739 = vunpack.c.l.b16 %v665
      %v740 = vunpack.c.l.b16 %v666
      %v741 = vunpack.c.h.b16 %v665
      %v742 = vunpack.c.h.b16 %v666
      %v743 = vunpack.c.l.b16 %v667
      %v744 = vunpack.c.l.b16 %v668
      %v745 = vunpack.c.h.b16 %v667
      %v746 = vunpack.c.h.b16 %v668
      %v747 = vunpack.c.l.b16 %v669
      %v748 = vunpack.c.l.b16 %v670
      %v749 = vunpack.c.h.b16 %v669
      %v750 = vunpack.c.h.b16 %v670
      %v751 = vunpack.c.l.b16 %v671
      %v752 = vunpack.c.l.b16 %v672
      %v753 = vunpack.c.h.b16 %v671
      %v754 = vunpack.c.h.b16 %v672
      %v755 = vunpack.c.l.b16 %v673
      %v756 = vunpack.c.l.b16 %v674
      %v757 = vunpack.c.h.b16 %v673
      %v758 = vunpack.c.h.b16 %v674
      %v759 = vunpack.c.l.b16 %v675
      %v760 = vunpack.c.l.b16 %v676
      %v761 = vunpack.c.h.b16 %v675
      %v762 = vunpack.c.h.b16 %v676
      %v763 = vunpack.c.l.b16 %v677
      %v764 = vunpack.c.l.b16 %v678
      %v765 = vunpack.c.h.b16 %v677
      %v766 = vunpack.c.h.b16 %v678
      %v767 = vunpack.c.l.b16 %v679
      %v768 = vunpack.c.l.b16 %v680
      %v769 = vunpack.c.h.b16 %v679
      %v770 = vunpack.c.h.b16 %v680
      %v771 = vunpack.c.l.b16 %v681
      %v772 = vunpack.c.l.b16 %v682
      %v773 = vunpack.c.h.b16 %v681
      %v774 = vunpack.c.h.b16 %v682
      %v775 = vunpack.c.l.b16 %v683
      %v776 = vunpack.c.l.b16 %v684
      %v777 = vunpack.c.h.b16 %v683
      %v778 = vunpack.c.h.b16 %v684
      %v779 = vunpack.c.l.b16 %v685
      %v780 = vunpack.c.l.b16 %v686
      %v781 = vunpack.c.h.b16 %v685
      %v782 = vunpack.c.h.b16 %v686
      %v783 = vpack.c.b16 %v720, %v719
      %v784 = vpack.c.b16 %v722, %v721
      %v785 = vpack.c.b16 %v724, %v723
      %v786 = vpack.c.b16 %v726, %v725
      %v787 = vpack.c.b16 %v728, %v727
      %v788 = vpack.c.b16 %v730, %v729
      %v789 = vpack.c.b16 %v732, %v731
      %v790 = vpack.c.b16 %v734, %v733
      %v791 = vpack.c.b16 %v736, %v735
      %v792 = vpack.c.b16 %v738, %v737
      %v793 = vpack.c.b16 %v740, %v739
      %v794 = vpack.c.b16 %v742, %v741
      %v795 = vpack.c.b16 %v744, %v743
      %v796 = vpack.c.b16 %v746, %v745
      %v797 = vpack.c.b16 %v748, %v747
      %v798 = vpack.c.b16 %v750, %v749
      %v799 = vpack.c.b16 %v752, %v751
      %v800 = vpack.c.b16 %v754, %v753
      %v801 = vpack.c.b16 %v756, %v755
      %v802 = vpack.c.b16 %v758, %v757
      %v803 = vpack.c.b16 %v760, %v759
      %v804 = vpack.c.b16 %v762, %v761
      %v805 = vpack.c.b16 %v764, %v763
      %v806 = vpack.c.b16 %v766, %v765
      %v807 = vpack.c.b16 %v768, %v767
      %v808 = vpack.c.b16 %v770, %v769
      %v809 = vpack.c.b16 %v772, %v771
      %v810 = vpack.c.b16 %v774, %v773
      %v811 = vpack.c.b16 %v776, %v775
      %v812 = vpack.c.b16 %v778, %v777
      %v813 = vpack.c.b16 %v780, %v779
      %v814 = vpack.c.b16 %v782, %v781
      %847 = vst [vmem:[%s237] sm:$0xff] %v783
      %848 = vst [vmem:[%s237 + $0x8] sm:$0xff] %v784
      %849 = vst [vmem:[%s237 + $0x10] sm:$0xff] %v785
      %850 = vst [vmem:[%s237 + $0x18] sm:$0xff] %v786
      %851 = vst [vmem:[%s237 + $0x20] sm:$0xff] %v787
      %852 = vst [vmem:[%s237 + $0x28] sm:$0xff] %v788
      %853 = vst [vmem:[%s237 + $0x30] sm:$0xff] %v789
      %854 = vst [vmem:[%s237 + $0x38] sm:$0xff] %v790
      %855 = vst [vmem:[%s237 + $0x40] sm:$0xff] %v791
      %856 = vst [vmem:[%s237 + $0x48] sm:$0xff] %v792
      %857 = vst [vmem:[%s237 + $0x50] sm:$0xff] %v793
      %858 = vst [vmem:[%s237 + $0x58] sm:$0xff] %v794
      %859 = vst [vmem:[%s237 + $0x60] sm:$0xff] %v795
      %860 = vst [vmem:[%s237 + $0x68] sm:$0xff] %v796
      %861 = vst [vmem:[%s237 + $0x70] sm:$0xff] %v797
      %862 = vst [vmem:[%s237 + $0x78] sm:$0xff] %v798
      %863 = vst [vmem:[%s237 + $0x80] sm:$0xff] %v799
      %864 = vst [vmem:[%s237 + $0x88] sm:$0xff] %v800
      %865 = vst [vmem:[%s237 + $0x90] sm:$0xff] %v801
      %866 = vst [vmem:[%s237 + $0x98] sm:$0xff] %v802
      %867 = vst [vmem:[%s237 + $0xa0] sm:$0xff] %v803
      %868 = vst [vmem:[%s237 + $0xa8] sm:$0xff] %v804
      %869 = vst [vmem:[%s237 + $0xb0] sm:$0xff] %v805
      %870 = vst [vmem:[%s237 + $0xb8] sm:$0xff] %v806
      %871 = vst [vmem:[%s237 + $0xc0] sm:$0xff] %v807
      %872 = vst [vmem:[%s237 + $0xc8] sm:$0xff] %v808
      %873 = vst [vmem:[%s237 + $0xd0] sm:$0xff] %v809
      %874 = vst [vmem:[%s237 + $0xd8] sm:$0xff] %v810
      %875 = vst [vmem:[%s237 + $0xe0] sm:$0xff] %v811
      %876 = vst [vmem:[%s237 + $0xe8] sm:$0xff] %v812
      %877 = vst [vmem:[%s237 + $0xf0] sm:$0xff] %v813
      %878 = vst [vmem:[%s237 + $0xf8] sm:$0xff] %v814
      %s879 = smul.u32 32, %s18
      %s880 = smul.u32 2, %s19
      %p881 = scmp.lt.s32.totalorder %s879, 63
      %s882 = scalar_select %p881, %s879, 63
      %p883 = scmp.lt.s32.totalorder %s880, 1
      %s884 = scalar_select %p883, %s880, 1
      %s885 = smul.addr %s882, 2
      %s886 = sadd.s32 %s884, %s885
      %s887 = smul.addr %s886, 4
      %s888 = scalar_lea.vmem %s3, %s887
      // Predicated region
      $region33: #{bottleneck_forward.6} parent=31 // pred_check
        %p889 = pneg %p124
      $region34: #{bottleneck_forward.6} parent=31 // pred_check_branch
        %891 = sbr.rel (%p889) target = $region36
      $region35: #{bottleneck_forward.6} parent=31 // pred_region
        %s892 = smul.u32 32, %s18
        %s893 = smul.u32 2, %s19
      $region36: #{bottleneck_forward.6} parent=31 // pred_fallthru
        _
    $region32: #{bottleneck_forward.6} parent=5 // pred_fallthru
      _
    %p894 = scmp.le.s32.totalorder 2, %s9
    // Predicated region
    $region37: #{bottleneck_forward.6} parent=5 // pred_check
      %p895 = pneg %p894
    $region38: #{bottleneck_forward.6} parent=5 // pred_check_branch
      %897 = sbr.rel (%p895) target = $region40
    $region39: #{bottleneck_forward.6} parent=5 // pred_region
      %s898 = ssub.s32 %s9, 2
      // Predicated region
      $region41: #{bottleneck_forward.6} parent=39 // pred_check
        %p899 = pneg %p130
      $region42: #{bottleneck_forward.6} parent=39 // pred_check_branch
        %901 = sbr.rel (%p899) target = $region44
      $region43: #{bottleneck_forward.6} parent=39 // pred_region
        %s902 = smul.u32 32, %s20
        %s903 = smul.u32 2, %s21
        %p904 = scmp.lt.s32.totalorder %s902, 63
        %s905 = scalar_select %p904, %s902, 63
        %p906 = scmp.lt.s32.totalorder %s903, 1
        %s907 = scalar_select %p906, %s903, 1
        %s908 = smul.addr %s905, 2
        %s909 = sadd.s32 %s907, %s908
        %s910 = smul.addr %s909, 4
        %s911 = scalar_lea.vmem %s3, %s910
      $region44: #{bottleneck_forward.6} parent=39 // pred_fallthru
        _
    $region40: #{bottleneck_forward.6} parent=5 // pred_fallthru
      _
  $region6: #{bottleneck_forward.6} parent=0 // loop_footer
    %s13 = sadd.s32 1, %s9
  $region7: #{bottleneck_forward.6} parent=0 // loop_footer_branch
    %8 = sbr.rel target = $region3
  $region8: #{bottleneck_forward.6} parent=0 // loop_exit
    _

// kernel: bottleneck_forward.7
$region0: #{bottleneck_forward.7}
  #allocation0 [shape = 'u32[]', space=smem, size = 0x4, offset = 0x4, fixed_abs, tag = 'smem constant byte address 0x4 - core index']
  #allocation1 [shape = 'u32[144,128]{1,0:T(1,128)}', space=vmem, size = 0x12000, scoped, tag = 'internal scratch']
  %s0 = inlined_call_operand.vmem [shape: bf16[512,64], index: 0, kind: input, shape index: {}]
  %s1 = inlined_call_operand.vmem [shape: bf16[64,256], index: 1, kind: input, shape index: {}]
  %s2 = inlined_call_operand.vmem [shape: f32[1,256], index: 2, kind: input, shape index: {}]
  %s3 = inlined_call_operand.vmem [shape: bf16[512,256], index: 3, kind: input, shape index: {}]
  %s4 = inlined_call_operand.hbm [shape: f32[512,256], index: 4, kind: output, shape index: {}]
  %s5 = sld [smem:[#allocation0]]
  $region49: #{bottleneck_forward.7} parent=0
    _
  %s7 = ssub.s32 1, %s5
  %s8 = scalar_select 0, %s7, %s5
  $region1: #{bottleneck_forward.7} parent=0
    #allocation2 [shape = 'u8[524288]{0}', space=vmem, size = 0x80000, scoped, tag = 'output window, operand 0']
    #allocation3 [shape = 's32[2]{0}', space=sflag, size = 0x8, scoped, tag = 'scoped memory for bottleneck_forward.7']
    %9 = vsyncpa [#allocation3], 0
    %s10 = scalar_lea.sflag [#allocation3], 1
    %11 = vsyncpa %s10, 0
    loop: start=0, step=1, limit=4
    $region2: #{bottleneck_forward.7} parent=1 // loop_pre_header
      _
    $region3: #{bottleneck_forward.7} parent=1 // loop_header
      %s13 = sphi 0, %s17
      %p14 = scmp.ge.s32.totalorder %s13, 4
      %s20 = sphi 0, %s32
      %s21 = sphi 0, %s28
      %s22 = sphi 0, %s20
      %s23 = sphi 0, %s21
      %s24 = sphi 0, %s22
      %s25 = sphi 0, %s23
      %s35 = sphi 0, %s37
      %s38 = sphi 0, %s35
      %s39 = sphi 0, %s38
      %s55 = sphi 0, %s39
      %s61 = sphi 0, %s63
      %s64 = sphi 0, %s61
      %s65 = sphi 0, %s64
      %s81 = sphi 0, %s65
      %s87 = sphi 0, %s89
      %s90 = sphi 0, %s87
      %s91 = sphi 0, %s90
      %s107 = sphi 0, %s91
      %s115 = sphi 0, %s117
      %s118 = sphi 0, %s115
      %s119 = sphi 0, %s118
      %s135 = sphi 0, %s119
      %s143 = sphi 0, %s145
      %s146 = sphi 0, %s143
      %s147 = sphi 0, %s146
      %s163 = sphi 0, %s147
    $region4: #{bottleneck_forward.7} parent=1 // loop_header_branch
      %16 = sbr.rel (%p14) target = $region8
    $region5: #{bottleneck_forward.7} parent=1 // loop_body
      %s18 = ssub.s32 %s13, 1
      %s19 = ssub.s32 %s13, 2
      %s26 = sadd.s32 1, %s21
      %p27 = scmp.ge.s32.totalorder %s26, 1
      %s28 = scalar_select %p27, 0, %s26
      %s29 = sadd.s32 1, %s20
      %s30 = scalar_select %p27, %s29, %s20
      %p31 = scmp.ge.s32.totalorder %s30, 2
      %s32 = scalar_select %p31, 0, %s30
      %s33 = ssub.s32 %s20, %s32
      %p34 = scmp.eq.s32.totalorder %s33, 0
      %s36 = sadd.s32 %s35, 1
      %s37 = scalar_select %p34, %s35, %s36
      %p40 = pneg %p34
      %p41 = scmp.eq.s32.totalorder %s13, 1
      %p42 = por %p40, %p41
      %p43 = scmp.ne.s32.totalorder %s35, %s38
      %p44 = scmp.eq.s32.totalorder %s13, 0
      %p45 = por %p43, %p44
      %p46 = scmp.ne.s32.totalorder %s35, %s38
      %p47 = scmp.eq.s32.totalorder %s18, 1
      %p48 = por %p46, %p47
      %p49 = scmp.ne.s32.totalorder %s38, %s39
      %p50 = scmp.eq.s32.totalorder %s18, 0
      %p51 = por %p49, %p50
      %p52 = scmp.ne.s32.totalorder %s38, %s39
      %p53 = scmp.eq.s32.totalorder %s19, 1
      %p54 = por %p52, %p53
      %p56 = scmp.ne.s32.totalorder %s39, %s55
      %p57 = scmp.eq.s32.totalorder %s19, 0
      %p58 = por %p56, %p57
      %s59 = ssub.s32 %s21, %s28
      %p60 = scmp.eq.s32.totalorder %s59, 0
      %s62 = sadd.s32 %s61, 1
      %s63 = scalar_select %p60, %s61, %s62
      %p66 = pneg %p60
      %p67 = scmp.eq.s32.totalorder %s13, 1
      %p68 = por %p66, %p67
      %p69 = scmp.ne.s32.totalorder %s61, %s64
      %p70 = scmp.eq.s32.totalorder %s13, 0
      %p71 = por %p69, %p70
      %p72 = scmp.ne.s32.totalorder %s61, %s64
      %p73 = scmp.eq.s32.totalorder %s18, 1
      %p74 = por %p72, %p73
      %p75 = scmp.ne.s32.totalorder %s64, %s65
      %p76 = scmp.eq.s32.totalorder %s18, 0
      %p77 = por %p75, %p76
      %p78 = scmp.ne.s32.totalorder %s64, %s65
      %p79 = scmp.eq.s32.totalorder %s19, 1
      %p80 = por %p78, %p79
      %p82 = scmp.ne.s32.totalorder %s65, %s81
      %p83 = scmp.eq.s32.totalorder %s19, 0
      %p84 = por %p82, %p83
      %s85 = ssub.s32 %s21, %s28
      %p86 = scmp.eq.s32.totalorder %s85, 0
      %s88 = sadd.s32 %s87, 1
      %s89 = scalar_select %p86, %s87, %s88
      %p92 = pneg %p86
      %p93 = scmp.eq.s32.totalorder %s13, 1
      %p94 = por %p92, %p93
      %p95 = scmp.ne.s32.totalorder %s87, %s90
      %p96 = scmp.eq.s32.totalorder %s13, 0
      %p97 = por %p95, %p96
      %p98 = scmp.ne.s32.totalorder %s87, %s90
      %p99 = scmp.eq.s32.totalorder %s18, 1
      %p100 = por %p98, %p99
      %p101 = scmp.ne.s32.totalorder %s90, %s91
      %p102 = scmp.eq.s32.totalorder %s18, 0
      %p103 = por %p101, %p102
      %p104 = scmp.ne.s32.totalorder %s90, %s91
      %p105 = scmp.eq.s32.totalorder %s19, 1
      %p106 = por %p104, %p105
      %p108 = scmp.ne.s32.totalorder %s91, %s107
      %p109 = scmp.eq.s32.totalorder %s19, 0
      %p110 = por %p108, %p109
      %s111 = ssub.s32 %s20, %s32
      %s112 = ssub.s32 %s21, %s28
      %s113 = sor.u32 %s111, %s112
      %p114 = scmp.eq.s32.totalorder %s113, 0
      %s116 = sadd.s32 %s115, 1
      %s117 = scalar_select %p114, %s115, %s116
      %p120 = pneg %p114
      %p121 = scmp.eq.s32.totalorder %s13, 1
      %p122 = por %p120, %p121
      %p123 = scmp.ne.s32.totalorder %s115, %s118
      %p124 = scmp.eq.s32.totalorder %s13, 0
      %p125 = por %p123, %p124
      %p126 = scmp.ne.s32.totalorder %s115, %s118
      %p127 = scmp.eq.s32.totalorder %s18, 1
      %p128 = por %p126, %p127
      %p129 = scmp.ne.s32.totalorder %s118, %s119
      %p130 = scmp.eq.s32.totalorder %s18, 0
      %p131 = por %p129, %p130
      %p132 = scmp.ne.s32.totalorder %s118, %s119
      %p133 = scmp.eq.s32.totalorder %s19, 1
      %p134 = por %p132, %p133
      %p136 = scmp.ne.s32.totalorder %s119, %s135
      %p137 = scmp.eq.s32.totalorder %s19, 0
      %p138 = por %p136, %p137
      %s139 = ssub.s32 %s20, %s32
      %s140 = ssub.s32 %s21, %s28
      %s141 = sor.u32 %s139, %s140
      %p142 = scmp.eq.s32.totalorder %s141, 0
      %s144 = sadd.s32 %s143, 1
      %s145 = scalar_select %p142, %s143, %s144
      %p148 = pneg %p142
      %p149 = scmp.eq.s32.totalorder %s13, 1
      %p150 = por %p148, %p149
      %p151 = scmp.ne.s32.totalorder %s143, %s146
      %p152 = scmp.eq.s32.totalorder %s13, 0
      %p153 = por %p151, %p152
      %p154 = scmp.ne.s32.totalorder %s143, %s146
      %p155 = scmp.eq.s32.totalorder %s18, 1
      %p156 = por %p154, %p155
      %p157 = scmp.ne.s32.totalorder %s146, %s147
      %p158 = scmp.eq.s32.totalorder %s18, 0
      %p159 = por %p157, %p158
      %p160 = scmp.ne.s32.totalorder %s146, %s147
      %p161 = scmp.eq.s32.totalorder %s19, 1
      %p162 = por %p160, %p161
      %p164 = scmp.ne.s32.totalorder %s147, %s163
      %p165 = scmp.eq.s32.totalorder %s19, 0
      %p166 = por %p164, %p165
      %p167 = scmp.le.s32.totalorder 1, %s13
      %p168 = scmp.lt.s32.totalorder %s13, 3
      %p169 = pnand %p167, %p168
      %p170 = pneg %p169
      // Predicated region
      $region9: #{bottleneck_forward.7} parent=5 // pred_check
        _
      $region10: #{bottleneck_forward.7} parent=5 // pred_check_branch
        %172 = sbr.rel (%p169) target = $region12
      $region11: #{bottleneck_forward.7} parent=5 // pred_region
        %s173 = ssub.s32 %s13, 1
        // Predicated region
        $region13: #{bottleneck_forward.7} parent=11 // pred_check
          %p174 = pneg %p77
        $region14: #{bottleneck_forward.7} parent=11 // pred_check_branch
          %176 = sbr.rel (%p174) target = $region16
        $region15: #{bottleneck_forward.7} parent=11 // pred_region
          %s177 = smul.u32 2, %s23
          %p178 = scmp.lt.s32.totalorder %s177, 1
          %s179 = scalar_select %p178, %s177, 1
          %s180 = smul.addr %s179, 4
          %s181 = scalar_lea.vmem %s1, %s180
          %s182 = smul.u32 2, %s23
        $region16: #{bottleneck_forward.7} parent=11 // pred_fallthru
          _
        // Predicated region
        $region17: #{bottleneck_forward.7} parent=11 // pred_check
          %p183 = pneg %p103
        $region18: #{bottleneck_forward.7} parent=11 // pred_check_branch
          %185 = sbr.rel (%p183) target = $region20
        $region19: #{bottleneck_forward.7} parent=11 // pred_region
          %s186 = smul.u32 2, %s23
          %p187 = scmp.lt.s32.totalorder %s186, 1
          %s188 = scalar_select %p187, %s186, 1
          %s189 = scalar_lea.vmem %s2, %s188
          %s190 = smul.u32 2, %s23
        $region20: #{bottleneck_forward.7} parent=11 // pred_fallthru
          _
      $region12: #{bottleneck_forward.7} parent=5 // pred_fallthru
        _
      %p191 = scmp.lt.s32.totalorder %s13, 2
      // Predicated region
      $region21: #{bottleneck_forward.7} parent=5 // pred_check
        %p192 = pneg %p191
      $region22: #{bottleneck_forward.7} parent=5 // pred_check_branch
        %194 = sbr.rel (%p192) target = $region24
      $region23: #{bottleneck_forward.7} parent=5 // pred_region
        // Predicated region
        $region25: #{bottleneck_forward.7} parent=23 // pred_check
          %p195 = pneg %p45
        $region26: #{bottleneck_forward.7} parent=23 // pred_check_branch
          %197 = sbr.rel (%p195) target = $region28
        $region27: #{bottleneck_forward.7} parent=23 // pred_region
          %s198 = smul.u32 32, %s20
          %p199 = scmp.lt.s32.totalorder %s198, 63
          %s200 = scalar_select %p199, %s198, 63
          %s201 = smul.addr %s200, 4
          %s202 = scalar_lea.vmem %s0, %s201
          %s203 = smul.u32 32, %s20
        $region28: #{bottleneck_forward.7} parent=23 // pred_fallthru
          _
        // Predicated region
        $region29: #{bottleneck_forward.7} parent=23 // pred_check
          %p204 = pneg %p125
        $region30: #{bottleneck_forward.7} parent=23 // pred_check_branch
          %206 = sbr.rel (%p204) target = $region32
        $region31: #{bottleneck_forward.7} parent=23 // pred_region
          %s207 = smul.u32 32, %s20
          %s208 = smul.u32 2, %s21
          %p209 = scmp.lt.s32.totalorder %s207, 63
          %s210 = scalar_select %p209, %s207, 63
          %p211 = scmp.lt.s32.totalorder %s208, 1
          %s212 = scalar_select %p211, %s208, 1
          %s213 = smul.addr %s210, 2
          %s214 = sadd.s32 %s212, %s213
          %s215 = smul.addr %s214, 4
          %s216 = scalar_lea.vmem %s3, %s215
          %s217 = smul.u32 32, %s20
          %s218 = smul.u32 2, %s21
        $region32: #{bottleneck_forward.7} parent=23 // pred_fallthru
          _
      $region24: #{bottleneck_forward.7} parent=5 // pred_fallthru
        _
      %p219 = scmp.le.s32.totalorder 1, %s13
      %p220 = scmp.lt.s32.totalorder %s13, 3
      %p221 = pnand %p219, %p220
      %p222 = pneg %p221
      // Predicated region
      $region33: #{bottleneck_forward.7} parent=5 // pred_check
        _
      $region34: #{bottleneck_forward.7} parent=5 // pred_check_branch
        %224 = sbr.rel (%p221) target = $region36
      $region35: #{bottleneck_forward.7} parent=5 // pred_region
        %s225 = ssub.s32 %s13, 1
        %s226 = smul.u32 32, %s22
        %p227 = scmp.lt.s32.totalorder %s226, 63
        %s228 = scalar_select %p227, %s226, 63
        %s229 = smul.addr %s228, 4
        %s230 = scalar_lea.vmem %s0, %s229
        %p231 = pneg %p51
        %p232 = pneg %p48
        %s233 = smul.u32 2, %s23
        %p234 = scmp.lt.s32.totalorder %s233, 1
        %s235 = scalar_select %p234, %s233, 1
        %s236 = smul.addr %s235, 4
        %s237 = scalar_lea.vmem %s1, %s236
        %p238 = pneg %p77
        %p239 = pneg %p74
        %s240 = smul.u32 2, %s23
        %p241 = scmp.lt.s32.totalorder %s240, 1
        %s242 = scalar_select %p241, %s240, 1
        %s243 = scalar_lea.vmem %s2, %s242
        %p244 = pneg %p103
        %p245 = pneg %p100
        %s246 = smul.u32 32, %s22
        %s247 = smul.u32 2, %s23
        %p248 = scmp.lt.s32.totalorder %s246, 63
        %s249 = scalar_select %p248, %s246, 63
        %p250 = scmp.lt.s32.totalorder %s247, 1
        %s251 = scalar_select %p250, %s247, 1
        %s252 = smul.addr %s249, 2
        %s253 = sadd.s32 %s251, %s252
        %s254 = smul.addr %s253, 4
        %s255 = scalar_lea.vmem %s3, %s254
        %p256 = pneg %p131
        %p257 = pneg %p128
        %p258 = pneg %p159
        %p259 = pneg %p156
        %s260 = sand.u32 %s146, 1
        %s261 = scalar_lea.sflag [#allocation3], %s260
        %s262 = sand.u32 %s146, 1
        %s263 = smul.addr %s262, 512
        %s264 = scalar_lea.vmem [#allocation2], %s263
        %s265 = smul.u32 32, %s22
        %p266 = scmp.lt.s32.totalorder %s265, 63
        %s267 = scalar_select %p266, %s265, 63
        %s268 = smul.addr %s267, 4
        %s269 = scalar_lea.vmem %s0, %s268
        %s270 = smul.u32 32, %s22
        %s271 = smul.u32 2, %s23
        %p272 = scmp.lt.s32.totalorder %s271, 1
        %s273 = scalar_select %p272, %s271, 1
        %s274 = smul.addr %s273, 4
        %s275 = scalar_lea.vmem %s1, %s274
        %s276 = smul.u32 2, %s23
        %s277 = smul.u32 2, %s23
        %p278 = scmp.lt.s32.totalorder %s277, 1
        %s279 = scalar_select %p278, %s277, 1
        %s280 = scalar_lea.vmem %s2, %s279
        %s281 = smul.u32 2, %s23
        %s282 = smul.u32 32, %s22
        %s283 = smul.u32 2, %s23
        %p284 = scmp.lt.s32.totalorder %s282, 63
        %s285 = scalar_select %p284, %s282, 63
        %p286 = scmp.lt.s32.totalorder %s283, 1
        %s287 = scalar_select %p286, %s283, 1
        %s288 = smul.addr %s285, 2
        %s289 = sadd.s32 %s287, %s288
        %s290 = smul.addr %s289, 4
        %s291 = scalar_lea.vmem %s3, %s290
        %s292 = smul.u32 32, %s22
        %s293 = smul.u32 2, %s23
        %s294 = smul.u32 32, %s22
        %s295 = smul.u32 2, %s23
        %v297 = vld [vmem:[%s269] sm:$0xf]
        %v298 = vld [vmem:[%s269 + $0x4] sm:$0xf]
        %v299 = vld [vmem:[%s269 + $0x8] sm:$0xf]
        %v300 = vld [vmem:[%s269 + $0xc] sm:$0xf]
        %v301 = vld [vmem:[%s269 + $0x10] sm:$0xf]
        %v302 = vld [vmem:[%s269 + $0x14] sm:$0xf]
        %v303 = vld [vmem:[%s269 + $0x18] sm:$0xf]
        %v304 = vld [vmem:[%s269 + $0x1c] sm:$0xf]
        %v305 = vld [vmem:[%s269 + $0x20] sm:$0xf]
        %v306 = vld [vmem:[%s269 + $0x24] sm:$0xf]
        %v307 = vld [vmem:[%s269 + $0x28] sm:$0xf]
        %v308 = vld [vmem:[%s269 + $0x2c] sm:$0xf]
        %v309 = vld [vmem:[%s269 + $0x30] sm:$0xf]
        %v310 = vld [vmem:[%s269 + $0x34] sm:$0xf]
        %v311 = vld [vmem:[%s269 + $0x38] sm:$0xf]
        %v312 = vld [vmem:[%s269 + $0x3c] sm:$0xf]
        %v313 = vld [vmem:[%s269 + $0x40] sm:$0xf]
        %v314 = vld [vmem:[%s269 + $0x44] sm:$0xf]
        %v315 = vld [vmem:[%s269 + $0x48] sm:$0xf]
        %v316 = vld [vmem:[%s269 + $0x4c] sm:$0xf]
        %v317 = vld [vmem:[%s269 + $0x50] sm:$0xf]
        %v318 = vld [vmem:[%s269 + $0x54] sm:$0xf]
        %v319 = vld [vmem:[%s269 + $0x58] sm:$0xf]
        %v320 = vld [vmem:[%s269 + $0x5c] sm:$0xf]
        %v321 = vld [vmem:[%s269 + $0x60] sm:$0xf]
        %v322 = vld [vmem:[%s269 + $0x64] sm:$0xf]
        %v323 = vld [vmem:[%s269 + $0x68] sm:$0xf]
        %v324 = vld [vmem:[%s269 + $0x6c] sm:$0xf]
        %v325 = vld [vmem:[%s269 + $0x70] sm:$0xf]
        %v326 = vld [vmem:[%s269 + $0x74] sm:$0xf]
        %v327 = vld [vmem:[%s269 + $0x78] sm:$0xf]
        %v328 = vld [vmem:[%s269 + $0x7c] sm:$0xf]
        %v329 = vld [vmem:[%s275] sm:$0xff]
        %v330 = vld [vmem:[%s275 + $0x8] sm:$0xff]
        %v331 = vld [vmem:[%s275 + $0x10] sm:$0xff]
        %v332 = vld [vmem:[%s275 + $0x18] sm:$0xff]
        %v333 = vld [vmem:[%s275 + $0x20] sm:$0xff]
        %v334 = vld [vmem:[%s275 + $0x28] sm:$0xff]
        %v335 = vld [vmem:[%s275 + $0x30] sm:$0xff]
        %v336 = vld [vmem:[%s275 + $0x38] sm:$0xff]
        %v337 = vld [vmem:[%s280] sm:$0x3]
        %v339 = vlaneseq
        %v340 = vshrl.u32 %v339, 7
        %v341 = vsub.s32 0, %v340
        %v342 = vrot.slane %v337, %v341
        %v343 = vlaneseq
        %v344 = vshrl.u32 %v343, 7
        %v345 = vsub.s32 1, %v344
        %v346 = vrot.slane %v337, %v345
        %v381 = vunpack.c.l.b16 %v297
        %v382 = vunpack.c.l.b16 %v298
        %v383 = vunpack.c.l.b16 %v299
        %v384 = vunpack.c.l.b16 %v300
        %v385 = vunpack.c.l.b16 %v301
        %v386 = vunpack.c.l.b16 %v302
        %v387 = vunpack.c.l.b16 %v303
        %v388 = vunpack.c.l.b16 %v304
        %v389 = vunpack.c.l.b16 %v305
        %v390 = vunpack.c.l.b16 %v306
        %v391 = vunpack.c.l.b16 %v307
        %v392 = vunpack.c.l.b16 %v308
        %v393 = vunpack.c.l.b16 %v309
        %v394 = vunpack.c.l.b16 %v310
        %v395 = vunpack.c.l.b16 %v311
        %v396 = vunpack.c.l.b16 %v312
        %v397 = vunpack.c.l.b16 %v313
        %v398 = vunpack.c.l.b16 %v314
        %v399 = vunpack.c.l.b16 %v315
        %v400 = vunpack.c.l.b16 %v316
        %v401 = vunpack.c.l.b16 %v317
        %v402 = vunpack.c.l.b16 %v318
        %v403 = vunpack.c.l.b16 %v319
        %v404 = vunpack.c.l.b16 %v320
        %v405 = vunpack.c.l.b16 %v321
        %v406 = vunpack.c.l.b16 %v322
        %v407 = vunpack.c.l.b16 %v323
        %v408 = vunpack.c.l.b16 %v324
        %v409 = vunpack.c.l.b16 %v325
        %v410 = vunpack.c.l.b16 %v326
        %v411 = vunpack.c.l.b16 %v327
        %v412 = vunpack.c.l.b16 %v328
        %v413 = vpack.c.b16 %v382, %v381
        %v414 = vpack.c.b16 %v384, %v383
        %v415 = vpack.c.b16 %v386, %v385
        %v416 = vpack.c.b16 %v388, %v387
        %v417 = vpack.c.b16 %v390, %v389
        %v418 = vpack.c.b16 %v392, %v391
        %v419 = vpack.c.b16 %v394, %v393
        %v420 = vpack.c.b16 %v396, %v395
        %v421 = vpack.c.b16 %v398, %v397
        %v422 = vpack.c.b16 %v400, %v399
        %v423 = vpack.c.b16 %v402, %v401
        %v424 = vpack.c.b16 %v404, %v403
        %v425 = vpack.c.b16 %v406, %v405
        %v426 = vpack.c.b16 %v408, %v407
        %v427 = vpack.c.b16 %v410, %v409
        %v428 = vpack.c.b16 %v412, %v411
        %v437 = vunpack.c.l.b16 %v329
        %v438 = vunpack.c.h.b16 %v329
        %v439 = vunpack.c.l.b16 %v330
        %v440 = vunpack.c.h.b16 %v330
        %v441 = vunpack.c.l.b16 %v331
        %v442 = vunpack.c.h.b16 %v331
        %v443 = vunpack.c.l.b16 %v332
        %v444 = vunpack.c.h.b16 %v332
        %v445 = vunpack.c.l.b16 %v333
        %v446 = vunpack.c.h.b16 %v333
        %v447 = vunpack.c.l.b16 %v334
        %v448 = vunpack.c.h.b16 %v334
        %v449 = vunpack.c.l.b16 %v335
        %v450 = vunpack.c.h.b16 %v335
        %v451 = vunpack.c.l.b16 %v336
        %v452 = vunpack.c.h.b16 %v336
        %v453 = vpack.c.b16 %v439, %v437
        %v454 = vpack.c.b16 %v440, %v438
        %v455 = vpack.c.b16 %v443, %v441
        %v456 = vpack.c.b16 %v444, %v442
        %v457 = vpack.c.b16 %v447, %v445
        %v458 = vpack.c.b16 %v448, %v446
        %v459 = vpack.c.b16 %v451, %v449
        %v460 = vpack.c.b16 %v452, %v450
        %vm469 = vcmask 523264
        %v471 = vsel %vm469, %v413, 0
        %v474 = vsel %vm469, %v414, 0
        %v477 = vsel %vm469, %v415, 0
        %v480 = vsel %vm469, %v416, 0
        %v483 = vsel %vm469, %v417, 0
        %v486 = vsel %vm469, %v418, 0
        %v489 = vsel %vm469, %v419, 0
        %v492 = vsel %vm469, %v420, 0
        %v495 = vsel %vm469, %v421, 0
        %v498 = vsel %vm469, %v422, 0
        %v501 = vsel %vm469, %v423, 0
        %v504 = vsel %vm469, %v424, 0
        %v507 = vsel %vm469, %v425, 0
        %v510 = vsel %vm469, %v426, 0
        %v513 = vsel %vm469, %v427, 0
        %v516 = vsel %vm469, %v428, 0
        %518 = vmatprep.subr.bf16.mxu0 %v454
        %519 = vmatpush1.bf16.msra.mxu0 %v453
        %520 = vmatprep.subr.bf16.mxu0 %v456
        %521 = vmatpush1.bf16.msra.mxu0 %v455
        %522 = vmatprep.subr.bf16.mxu0 %v458
        %523 = vmatpush1.bf16.msra.mxu0 %v457
        %524 = vmatprep.subr.bf16.mxu0 %v460
        %525 = vmatpush1.bf16.msra.mxu0 %v459
        %526 = vmatprep.subr.bf16.mxu0 0
        %527 = vmatpush1.bf16.msra.mxu0 0
        %528 = vmatprep.subr.bf16.mxu0 0
        %529 = vmatpush1.bf16.msra.mxu0 0
        %530 = vmatprep.subr.bf16.mxu0 0
        %531 = vmatpush1.bf16.msra.mxu0 0
        %532 = vmatprep.subr.bf16.mxu0 0
        %533 = vmatpush1.bf16.msra.mxu0 0
        %534 = vmatprep.subr.bf16.mxu0 0
        %535 = vmatpush1.bf16.msra.mxu0 0
        %536 = vmatprep.subr.bf16.mxu0 0
        %537 = vmatpush1.bf16.msra.mxu0 0
        %538 = vmatprep.subr.bf16.mxu0 0
        %539 = vmatpush1.bf16.msra.mxu0 0
        %540 = vmatprep.subr.bf16.mxu0 0
        %541 = vmatpush1.bf16.msra.mxu0 0
        %542 = vmatprep.subr.bf16.mxu0 0
        %543 = vmatpush1.bf16.msra.mxu0 0
        %544 = vmatprep.subr.bf16.mxu0 0
        %545 = vmatpush1.bf16.msra.mxu0 0
        %546 = vmatprep.subr.bf16.mxu0 0
        %547 = vmatpush1.bf16.msra.mxu0 0
        %548 = vmatprep.subr.bf16.mxu0 0
        %549 = vmatpush1.bf16.msra.mxu0 0
        %550 = vmatprep.mubr.bf16.mxu0 0
        %551 = vmatmul.mubr.bf16.gmra.mrb[0].mxu0 %v471
        %v552 = vpop.f32.mrb[0].mxu0
        %v553 = vadd.f32 %v342, %v552
        %v554 = vpop.f32.mrb[0].mxu0
        %v555 = vadd.f32 %v346, %v554
        %v556 = vpop.f32.mrb[0].mxu0
        %v557 = vadd.f32 %v342, %v556
        %v558 = vpop.f32.mrb[0].mxu0
        %v559 = vadd.f32 %v346, %v558
        %560 = vmatprep.mubr.bf16.mxu0 0
        %561 = vmatmul.mubr.bf16.gmra.mrb[0].mxu0 %v474
        %v562 = vpop.f32.mrb[0].mxu0
        %v563 = vadd.f32 %v342, %v562
        %v564 = vpop.f32.mrb[0].mxu0
        %v565 = vadd.f32 %v346, %v564
        %v566 = vpop.f32.mrb[0].mxu0
        %v567 = vadd.f32 %v342, %v566
        %v568 = vpop.f32.mrb[0].mxu0
        %v569 = vadd.f32 %v346, %v568
        %570 = vmatprep.mubr.bf16.mxu0 0
        %571 = vmatmul.mubr.bf16.gmra.mrb[0].mxu0 %v477
        %v572 = vpop.f32.mrb[0].mxu0
        %v573 = vadd.f32 %v342, %v572
        %v574 = vpop.f32.mrb[0].mxu0
        %v575 = vadd.f32 %v346, %v574
        %v576 = vpop.f32.mrb[0].mxu0
        %v577 = vadd.f32 %v342, %v576
        %v578 = vpop.f32.mrb[0].mxu0
        %v579 = vadd.f32 %v346, %v578
        %580 = vmatprep.mubr.bf16.mxu0 0
        %581 = vmatmul.mubr.bf16.gmra.mrb[0].mxu0 %v480
        %v582 = vpop.f32.mrb[0].mxu0
        %v583 = vadd.f32 %v342, %v582
        %v584 = vpop.f32.mrb[0].mxu0
        %v585 = vadd.f32 %v346, %v584
        %v586 = vpop.f32.mrb[0].mxu0
        %v587 = vadd.f32 %v342, %v586
        %v588 = vpop.f32.mrb[0].mxu0
        %v589 = vadd.f32 %v346, %v588
        %590 = vmatprep.mubr.bf16.mxu0 0
        %591 = vmatmul.mubr.bf16.gmra.mrb[0].mxu0 %v483
        %v592 = vpop.f32.mrb[0].mxu0
        %v593 = vadd.f32 %v342, %v592
        %v594 = vpop.f32.mrb[0].mxu0
        %v595 = vadd.f32 %v346, %v594
        %v596 = vpop.f32.mrb[0].mxu0
        %v597 = vadd.f32 %v342, %v596
        %v598 = vpop.f32.mrb[0].mxu0
        %v599 = vadd.f32 %v346, %v598
        %600 = vmatprep.mubr.bf16.mxu0 0
        %601 = vmatmul.mubr.bf16.gmra.mrb[0].mxu0 %v486
        %v602 = vpop.f32.mrb[0].mxu0
        %v603 = vadd.f32 %v342, %v602
        %v604 = vpop.f32.mrb[0].mxu0
        %v605 = vadd.f32 %v346, %v604
        %v606 = vpop.f32.mrb[0].mxu0
        %v607 = vadd.f32 %v342, %v606
        %v608 = vpop.f32.mrb[0].mxu0
        %v609 = vadd.f32 %v346, %v608
        %610 = vmatprep.mubr.bf16.mxu0 0
        %611 = vmatmul.mubr.bf16.gmra.mrb[0].mxu0 %v489
        %v612 = vpop.f32.mrb[0].mxu0
        %v613 = vadd.f32 %v342, %v612
        %v614 = vpop.f32.mrb[0].mxu0
        %v615 = vadd.f32 %v346, %v614
        %v616 = vpop.f32.mrb[0].mxu0
        %v617 = vadd.f32 %v342, %v616
        %v618 = vpop.f32.mrb[0].mxu0
        %v619 = vadd.f32 %v346, %v618
        %620 = vmatprep.mubr.bf16.mxu0 0
        %621 = vmatmul.mubr.bf16.gmra.mrb[0].mxu0 %v492
        %v622 = vpop.f32.mrb[0].mxu0
        %v623 = vadd.f32 %v342, %v622
        %v624 = vpop.f32.mrb[0].mxu0
        %v625 = vadd.f32 %v346, %v624
        %v626 = vpop.f32.mrb[0].mxu0
        %v627 = vadd.f32 %v342, %v626
        %v628 = vpop.f32.mrb[0].mxu0
        %v629 = vadd.f32 %v346, %v628
        %630 = vmatprep.mubr.bf16.mxu0 0
        %631 = vmatmul.mubr.bf16.gmra.mrb[0].mxu0 %v495
        %v632 = vpop.f32.mrb[0].mxu0
        %v633 = vadd.f32 %v342, %v632
        %v634 = vpop.f32.mrb[0].mxu0
        %v635 = vadd.f32 %v346, %v634
        %v636 = vpop.f32.mrb[0].mxu0
        %v637 = vadd.f32 %v342, %v636
        %v638 = vpop.f32.mrb[0].mxu0
        %v639 = vadd.f32 %v346, %v638
        %640 = vmatprep.mubr.bf16.mxu0 0
        %641 = vmatmul.mubr.bf16.gmra.mrb[0].mxu0 %v498
        %v642 = vpop.f32.mrb[0].mxu0
        %v643 = vadd.f32 %v342, %v642
        %v644 = vpop.f32.mrb[0].mxu0
        %v645 = vadd.f32 %v346, %v644
        %v646 = vpop.f32.mrb[0].mxu0
        %v647 = vadd.f32 %v342, %v646
        %v648 = vpop.f32.mrb[0].mxu0
        %v649 = vadd.f32 %v346, %v648
        %650 = vmatprep.mubr.bf16.mxu0 0
        %651 = vmatmul.mubr.bf16.gmra.mrb[0].mxu0 %v501
        %v652 = vpop.f32.mrb[0].mxu0
        %v653 = vadd.f32 %v342, %v652
        %v654 = vpop.f32.mrb[0].mxu0
        %v655 = vadd.f32 %v346, %v654
        %v656 = vpop.f32.mrb[0].mxu0
        %v657 = vadd.f32 %v342, %v656
        %v658 = vpop.f32.mrb[0].mxu0
        %v659 = vadd.f32 %v346, %v658
        %660 = vmatprep.mubr.bf16.mxu0 0
        %661 = vmatmul.mubr.bf16.gmra.mrb[0].mxu0 %v504
        %v662 = vpop.f32.mrb[0].mxu0
        %v663 = vadd.f32 %v342, %v662
        %v664 = vpop.f32.mrb[0].mxu0
        %v665 = vadd.f32 %v346, %v664
        %v666 = vpop.f32.mrb[0].mxu0
        %v667 = vadd.f32 %v342, %v666
        %v668 = vpop.f32.mrb[0].mxu0
        %v669 = vadd.f32 %v346, %v668
        %670 = vmatprep.mubr.bf16.mxu0 0
        %671 = vmatmul.mubr.bf16.gmra.mrb[0].mxu0 %v507
        %v672 = vpop.f32.mrb[0].mxu0
        %v673 = vadd.f32 %v342, %v672
        %v674 = vpop.f32.mrb[0].mxu0
        %v675 = vadd.f32 %v346, %v674
        %v676 = vpop.f32.mrb[0].mxu0
        %v677 = vadd.f32 %v342, %v676
        %v678 = vpop.f32.mrb[0].mxu0
        %v679 = vadd.f32 %v346, %v678
        %680 = vmatprep.mubr.bf16.mxu0 0
        %681 = vmatmul.mubr.bf16.gmra.mrb[0].mxu0 %v510
        %v682 = vpop.f32.mrb[0].mxu0
        %v683 = vadd.f32 %v342, %v682
        %v684 = vpop.f32.mrb[0].mxu0
        %v685 = vadd.f32 %v346, %v684
        %v686 = vpop.f32.mrb[0].mxu0
        %v687 = vadd.f32 %v342, %v686
        %v688 = vpop.f32.mrb[0].mxu0
        %v689 = vadd.f32 %v346, %v688
        %690 = vmatprep.mubr.bf16.mxu0 0
        %691 = vmatmul.mubr.bf16.gmra.mrb[0].mxu0 %v513
        %v692 = vpop.f32.mrb[0].mxu0
        %v693 = vadd.f32 %v342, %v692
        %v694 = vpop.f32.mrb[0].mxu0
        %v695 = vadd.f32 %v346, %v694
        %v696 = vpop.f32.mrb[0].mxu0
        %v697 = vadd.f32 %v342, %v696
        %v698 = vpop.f32.mrb[0].mxu0
        %v699 = vadd.f32 %v346, %v698
        %700 = vmatprep.mubr.bf16.mxu0 0
        %701 = vmatmul.mubr.bf16.gmra.mrb[0].mxu0 %v516
        %v702 = vpop.f32.mrb[0].mxu0
        %v703 = vadd.f32 %v342, %v702
        %v704 = vpop.f32.mrb[0].mxu0
        %v705 = vadd.f32 %v346, %v704
        %v706 = vpop.f32.mrb[0].mxu0
        %v707 = vadd.f32 %v342, %v706
        %v708 = vpop.f32.mrb[0].mxu0
        %v709 = vadd.f32 %v346, %v708
        %710 = vdwg.mxu0
        %v711 = vld [vmem:[%s291] sm:$0xff]
        %v712 = vld [vmem:[%s291 + $0x8] sm:$0xff]
        %v713 = vld [vmem:[%s291 + $0x10] sm:$0xff]
        %v714 = vld [vmem:[%s291 + $0x18] sm:$0xff]
        %v715 = vld [vmem:[%s291 + $0x20] sm:$0xff]
        %v716 = vld [vmem:[%s291 + $0x28] sm:$0xff]
        %v717 = vld [vmem:[%s291 + $0x30] sm:$0xff]
        %v718 = vld [vmem:[%s291 + $0x38] sm:$0xff]
        %v719 = vld [vmem:[%s291 + $0x40] sm:$0xff]
        %v720 = vld [vmem:[%s291 + $0x48] sm:$0xff]
        %v721 = vld [vmem:[%s291 + $0x50] sm:$0xff]
        %v722 = vld [vmem:[%s291 + $0x58] sm:$0xff]
        %v723 = vld [vmem:[%s291 + $0x60] sm:$0xff]
        %v724 = vld [vmem:[%s291 + $0x68] sm:$0xff]
        %v725 = vld [vmem:[%s291 + $0x70] sm:$0xff]
        %v726 = vld [vmem:[%s291 + $0x78] sm:$0xff]
        %v727 = vld [vmem:[%s291 + $0x80] sm:$0xff]
        %v728 = vld [vmem:[%s291 + $0x88] sm:$0xff]
        %v729 = vld [vmem:[%s291 + $0x90] sm:$0xff]
        %v730 = vld [vmem:[%s291 + $0x98] sm:$0xff]
        %v731 = vld [vmem:[%s291 + $0xa0] sm:$0xff]
        %v732 = vld [vmem:[%s291 + $0xa8] sm:$0xff]
        %v733 = vld [vmem:[%s291 + $0xb0] sm:$0xff]
        %v734 = vld [vmem:[%s291 + $0xb8] sm:$0xff]
        %v735 = vld [vmem:[%s291 + $0xc0] sm:$0xff]
        %v736 = vld [vmem:[%s291 + $0xc8] sm:$0xff]
        %v737 = vld [vmem:[%s291 + $0xd0] sm:$0xff]
        %v738 = vld [vmem:[%s291 + $0xd8] sm:$0xff]
        %v739 = vld [vmem:[%s291 + $0xe0] sm:$0xff]
        %v740 = vld [vmem:[%s291 + $0xe8] sm:$0xff]
        %v741 = vld [vmem:[%s291 + $0xf0] sm:$0xff]
        %v742 = vld [vmem:[%s291 + $0xf8] sm:$0xff]
        %v743 = vunpack.c.l.bf16 %v711
        %v744 = vunpack.c.h.bf16 %v711
        %v745 = vunpack.c.l.bf16 %v712
        %v746 = vunpack.c.h.bf16 %v712
        %v747 = vunpack.c.l.bf16 %v713
        %v748 = vunpack.c.h.bf16 %v713
        %v749 = vunpack.c.l.bf16 %v714
        %v750 = vunpack.c.h.bf16 %v714
        %v751 = vunpack.c.l.bf16 %v715
        %v752 = vunpack.c.h.bf16 %v715
        %v753 = vunpack.c.l.bf16 %v716
        %v754 = vunpack.c.h.bf16 %v716
        %v755 = vunpack.c.l.bf16 %v717
        %v756 = vunpack.c.h.bf16 %v717
        %v757 = vunpack.c.l.bf16 %v718
        %v758 = vunpack.c.h.bf16 %v718
        %v759 = vunpack.c.l.bf16 %v719
        %v760 = vunpack.c.h.bf16 %v719
        %v761 = vunpack.c.l.bf16 %v720
        %v762 = vunpack.c.h.bf16 %v720
        %v763 = vunpack.c.l.bf16 %v721
        %v764 = vunpack.c.h.bf16 %v721
        %v765 = vunpack.c.l.bf16 %v722
        %v766 = vunpack.c.h.bf16 %v722
        %v767 = vunpack.c.l.bf16 %v723
        %v768 = vunpack.c.h.bf16 %v723
        %v769 = vunpack.c.l.bf16 %v724
        %v770 = vunpack.c.h.bf16 %v724
        %v771 = vunpack.c.l.bf16 %v725
        %v772 = vunpack.c.h.bf16 %v725
        %v773 = vunpack.c.l.bf16 %v726
        %v774 = vunpack.c.h.bf16 %v726
        %v775 = vunpack.c.l.bf16 %v727
        %v776 = vunpack.c.h.bf16 %v727
        %v777 = vunpack.c.l.bf16 %v728
        %v778 = vunpack.c.h.bf16 %v728
        %v779 = vunpack.c.l.bf16 %v729
        %v780 = vunpack.c.h.bf16 %v729
        %v781 = vunpack.c.l.bf16 %v730
        %v782 = vunpack.c.h.bf16 %v730
        %v783 = vunpack.c.l.bf16 %v731
        %v784 = vunpack.c.h.bf16 %v731
        %v785 = vunpack.c.l.bf16 %v732
        %v786 = vunpack.c.h.bf16 %v732
        %v787 = vunpack.c.l.bf16 %v733
        %v788 = vunpack.c.h.bf16 %v733
        %v789 = vunpack.c.l.bf16 %v734
        %v790 = vunpack.c.h.bf16 %v734
        %v791 = vunpack.c.l.bf16 %v735
        %v792 = vunpack.c.h.bf16 %v735
        %v793 = vunpack.c.l.bf16 %v736
        %v794 = vunpack.c.h.bf16 %v736
        %v795 = vunpack.c.l.bf16 %v737
        %v796 = vunpack.c.h.bf16 %v737
        %v797 = vunpack.c.l.bf16 %v738
        %v798 = vunpack.c.h.bf16 %v738
        %v799 = vunpack.c.l.bf16 %v739
        %v800 = vunpack.c.h.bf16 %v739
        %v801 = vunpack.c.l.bf16 %v740
        %v802 = vunpack.c.h.bf16 %v740
        %v803 = vunpack.c.l.bf16 %v741
        %v804 = vunpack.c.h.bf16 %v741
        %v805 = vunpack.c.l.bf16 %v742
        %v806 = vunpack.c.h.bf16 %v742
        %v807 = vadd.f32 %v553, %v743
        %v808 = vadd.f32 %v555, %v744
        %v809 = vadd.f32 %v557, %v745
        %v810 = vadd.f32 %v559, %v746
        %v811 = vadd.f32 %v563, %v747
        %v812 = vadd.f32 %v565, %v748
        %v813 = vadd.f32 %v567, %v749
        %v814 = vadd.f32 %v569, %v750
        %v815 = vadd.f32 %v573, %v751
        %v816 = vadd.f32 %v575, %v752
        %v817 = vadd.f32 %v577, %v753
        %v818 = vadd.f32 %v579, %v754
        %v819 = vadd.f32 %v583, %v755
        %v820 = vadd.f32 %v585, %v756
        %v821 = vadd.f32 %v587, %v757
        %v822 = vadd.f32 %v589, %v758
        %v823 = vadd.f32 %v593, %v759
        %v824 = vadd.f32 %v595, %v760
        %v825 = vadd.f32 %v597, %v761
        %v826 = vadd.f32 %v599, %v762
        %v827 = vadd.f32 %v603, %v763
        %v828 = vadd.f32 %v605, %v764
        %v829 = vadd.f32 %v607, %v765
        %v830 = vadd.f32 %v609, %v766
        %v831 = vadd.f32 %v613, %v767
        %v832 = vadd.f32 %v615, %v768
        %v833 = vadd.f32 %v617, %v769
        %v834 = vadd.f32 %v619, %v770
        %v835 = vadd.f32 %v623, %v771
        %v836 = vadd.f32 %v625, %v772
        %v837 = vadd.f32 %v627, %v773
        %v838 = vadd.f32 %v629, %v774
        %v839 = vadd.f32 %v633, %v775
        %v840 = vadd.f32 %v635, %v776
        %v841 = vadd.f32 %v637, %v777
        %v842 = vadd.f32 %v639, %v778
        %v843 = vadd.f32 %v643, %v779
        %v844 = vadd.f32 %v645, %v780
        %v845 = vadd.f32 %v647, %v781
        %v846 = vadd.f32 %v649, %v782
        %v847 = vadd.f32 %v653, %v783
        %v848 = vadd.f32 %v655, %v784
        %v849 = vadd.f32 %v657, %v785
        %v850 = vadd.f32 %v659, %v786
        %v851 = vadd.f32 %v663, %v787
        %v852 = vadd.f32 %v665, %v788
        %v853 = vadd.f32 %v667, %v789
        %v854 = vadd.f32 %v669, %v790
        %v855 = vadd.f32 %v673, %v791
        %v856 = vadd.f32 %v675, %v792
        %v857 = vadd.f32 %v677, %v793
        %v858 = vadd.f32 %v679, %v794
        %v859 = vadd.f32 %v683, %v795
        %v860 = vadd.f32 %v685, %v796
        %v861 = vadd.f32 %v687, %v797
        %v862 = vadd.f32 %v689, %v798
        %v863 = vadd.f32 %v693, %v799
        %v864 = vadd.f32 %v695, %v800
        %v865 = vadd.f32 %v697, %v801
        %v866 = vadd.f32 %v699, %v802
        %v867 = vadd.f32 %v703, %v803
        %v868 = vadd.f32 %v705, %v804
        %v869 = vadd.f32 %v707, %v805
        %v870 = vadd.f32 %v709, %v806
        %v871 = vmax.f32 %v807, 0.0
        %v872 = vmax.f32 %v808, 0.0
        %v873 = vmax.f32 %v809, 0.0
        %v874 = vmax.f32 %v810, 0.0
        %v875 = vmax.f32 %v811, 0.0
        %v876 = vmax.f32 %v812, 0.0
        %v877 = vmax.f32 %v813, 0.0
        %v878 = vmax.f32 %v814, 0.0
        %v879 = vmax.f32 %v815, 0.0
        %v880 = vmax.f32 %v816, 0.0
        %v881 = vmax.f32 %v817, 0.0
        %v882 = vmax.f32 %v818, 0.0
        %v883 = vmax.f32 %v819, 0.0
        %v884 = vmax.f32 %v820, 0.0
        %v885 = vmax.f32 %v821, 0.0
        %v886 = vmax.f32 %v822, 0.0
        %v887 = vmax.f32 %v823, 0.0
        %v888 = vmax.f32 %v824, 0.0
        %v889 = vmax.f32 %v825, 0.0
        %v890 = vmax.f32 %v826, 0.0
        %v891 = vmax.f32 %v827, 0.0
        %v892 = vmax.f32 %v828, 0.0
        %v893 = vmax.f32 %v829, 0.0
        %v894 = vmax.f32 %v830, 0.0
        %v895 = vmax.f32 %v831, 0.0
        %v896 = vmax.f32 %v832, 0.0
        %v897 = vmax.f32 %v833, 0.0
        %v898 = vmax.f32 %v834, 0.0
        %v899 = vmax.f32 %v835, 0.0
        %v900 = vmax.f32 %v836, 0.0
        %v901 = vmax.f32 %v837, 0.0
        %v902 = vmax.f32 %v838, 0.0
        %v903 = vmax.f32 %v839, 0.0
        %v904 = vmax.f32 %v840, 0.0
        %v905 = vmax.f32 %v841, 0.0
        %v906 = vmax.f32 %v842, 0.0
        %v907 = vmax.f32 %v843, 0.0
        %v908 = vmax.f32 %v844, 0.0
        %v909 = vmax.f32 %v845, 0.0
        %v910 = vmax.f32 %v846, 0.0
        %v911 = vmax.f32 %v847, 0.0
        %v912 = vmax.f32 %v848, 0.0
        %v913 = vmax.f32 %v849, 0.0
        %v914 = vmax.f32 %v850, 0.0
        %v915 = vmax.f32 %v851, 0.0
        %v916 = vmax.f32 %v852, 0.0
        %v917 = vmax.f32 %v853, 0.0
        %v918 = vmax.f32 %v854, 0.0
        %v919 = vmax.f32 %v855, 0.0
        %v920 = vmax.f32 %v856, 0.0
        %v921 = vmax.f32 %v857, 0.0
        %v922 = vmax.f32 %v858, 0.0
        %v923 = vmax.f32 %v859, 0.0
        %v924 = vmax.f32 %v860, 0.0
        %v925 = vmax.f32 %v861, 0.0
        %v926 = vmax.f32 %v862, 0.0
        %v927 = vmax.f32 %v863, 0.0
        %v928 = vmax.f32 %v864, 0.0
        %v929 = vmax.f32 %v865, 0.0
        %v930 = vmax.f32 %v866, 0.0
        %v931 = vmax.f32 %v867, 0.0
        %v932 = vmax.f32 %v868, 0.0
        %v933 = vmax.f32 %v869, 0.0
        %v934 = vmax.f32 %v870, 0.0
        %935 = vst [vmem:[%s264] sm:$0xff] %v871
        %936 = vst [vmem:[%s264 + $0x8] sm:$0xff] %v872
        %937 = vst [vmem:[%s264 + $0x10] sm:$0xff] %v873
        %938 = vst [vmem:[%s264 + $0x18] sm:$0xff] %v874
        %939 = vst [vmem:[%s264 + $0x20] sm:$0xff] %v875
        %940 = vst [vmem:[%s264 + $0x28] sm:$0xff] %v876
        %941 = vst [vmem:[%s264 + $0x30] sm:$0xff] %v877
        %942 = vst [vmem:[%s264 + $0x38] sm:$0xff] %v878
        %943 = vst [vmem:[%s264 + $0x40] sm:$0xff] %v879
        %944 = vst [vmem:[%s264 + $0x48] sm:$0xff] %v880
        %945 = vst [vmem:[%s264 + $0x50] sm:$0xff] %v881
        %946 = vst [vmem:[%s264 + $0x58] sm:$0xff] %v882
        %947 = vst [vmem:[%s264 + $0x60] sm:$0xff] %v883
        %948 = vst [vmem:[%s264 + $0x68] sm:$0xff] %v884
        %949 = vst [vmem:[%s264 + $0x70] sm:$0xff] %v885
        %950 = vst [vmem:[%s264 + $0x78] sm:$0xff] %v886
        %951 = vst [vmem:[%s264 + $0x80] sm:$0xff] %v887
        %952 = vst [vmem:[%s264 + $0x88] sm:$0xff] %v888
        %953 = vst [vmem:[%s264 + $0x90] sm:$0xff] %v889
        %954 = vst [vmem:[%s264 + $0x98] sm:$0xff] %v890
        %955 = vst [vmem:[%s264 + $0xa0] sm:$0xff] %v891
        %956 = vst [vmem:[%s264 + $0xa8] sm:$0xff] %v892
        %957 = vst [vmem:[%s264 + $0xb0] sm:$0xff] %v893
        %958 = vst [vmem:[%s264 + $0xb8] sm:$0xff] %v894
        %959 = vst [vmem:[%s264 + $0xc0] sm:$0xff] %v895
        %960 = vst [vmem:[%s264 + $0xc8] sm:$0xff] %v896
        %961 = vst [vmem:[%s264 + $0xd0] sm:$0xff] %v897
        %962 = vst [vmem:[%s264 + $0xd8] sm:$0xff] %v898
        %963 = vst [vmem:[%s264 + $0xe0] sm:$0xff] %v899
        %964 = vst [vmem:[%s264 + $0xe8] sm:$0xff] %v900
        %965 = vst [vmem:[%s264 + $0xf0] sm:$0xff] %v901
        %966 = vst [vmem:[%s264 + $0xf8] sm:$0xff] %v902
        %967 = vst [vmem:[%s264 + $0x100] sm:$0xff] %v903
        %968 = vst [vmem:[%s264 + $0x108] sm:$0xff] %v904
        %969 = vst [vmem:[%s264 + $0x110] sm:$0xff] %v905
        %970 = vst [vmem:[%s264 + $0x118] sm:$0xff] %v906
        %971 = vst [vmem:[%s264 + $0x120] sm:$0xff] %v907
        %972 = vst [vmem:[%s264 + $0x128] sm:$0xff] %v908
        %973 = vst [vmem:[%s264 + $0x130] sm:$0xff] %v909
        %974 = vst [vmem:[%s264 + $0x138] sm:$0xff] %v910
        %975 = vst [vmem:[%s264 + $0x140] sm:$0xff] %v911
        %976 = vst [vmem:[%s264 + $0x148] sm:$0xff] %v912
        %977 = vst [vmem:[%s264 + $0x150] sm:$0xff] %v913
        %978 = vst [vmem:[%s264 + $0x158] sm:$0xff] %v914
        %979 = vst [vmem:[%s264 + $0x160] sm:$0xff] %v915
        %980 = vst [vmem:[%s264 + $0x168] sm:$0xff] %v916
        %981 = vst [vmem:[%s264 + $0x170] sm:$0xff] %v917
        %982 = vst [vmem:[%s264 + $0x178] sm:$0xff] %v918
        %983 = vst [vmem:[%s264 + $0x180] sm:$0xff] %v919
        %984 = vst [vmem:[%s264 + $0x188] sm:$0xff] %v920
        %985 = vst [vmem:[%s264 + $0x190] sm:$0xff] %v921
        %986 = vst [vmem:[%s264 + $0x198] sm:$0xff] %v922
        %987 = vst [vmem:[%s264 + $0x1a0] sm:$0xff] %v923
        %988 = vst [vmem:[%s264 + $0x1a8] sm:$0xff] %v924
        %989 = vst [vmem:[%s264 + $0x1b0] sm:$0xff] %v925
        %990 = vst [vmem:[%s264 + $0x1b8] sm:$0xff] %v926
        %991 = vst [vmem:[%s264 + $0x1c0] sm:$0xff] %v927
        %992 = vst [vmem:[%s264 + $0x1c8] sm:$0xff] %v928
        %993 = vst [vmem:[%s264 + $0x1d0] sm:$0xff] %v929
        %994 = vst [vmem:[%s264 + $0x1d8] sm:$0xff] %v930
        %995 = vst [vmem:[%s264 + $0x1e0] sm:$0xff] %v931
        %996 = vst [vmem:[%s264 + $0x1e8] sm:$0xff] %v932
        %997 = vst [vmem:[%s264 + $0x1f0] sm:$0xff] %v933
        %998 = vst [vmem:[%s264 + $0x1f8] sm:$0xff] %v934
        %s999 = sand.u32 %s146, 1
        %s1000 = scalar_lea.sflag [#allocation3], %s999
        %s1001 = sand.u32 %s146, 1
        %s1002 = smul.addr %s1001, 512
        %s1003 = scalar_lea.vmem [#allocation2], %s1002
        // Predicated region
        $region37: #{bottleneck_forward.7} parent=35 // pred_check
          %p1004 = pneg %p156
        $region38: #{bottleneck_forward.7} parent=35 // pred_check_branch
          %1006 = sbr.rel (%p1004) target = $region40
        $region39: #{bottleneck_forward.7} parent=35 // pred_region
          %s1007 = smul.u32 32, %s22
          %s1008 = smul.u32 2, %s23
          %s1010 = ssub.s32 8192, 8192
          %1011 = vsyncadd %s1000, %s1010
          %s1012 = smul.addr %s1007, 2
          %s1013 = sadd.s32 %s1008, %s1012
          %s1014 = smul.addr %s1013, 128
          %s1015 = scalar_lea.hbm %s4, %s1014
          %s1016 = sshll.u32 %s1003, 4
          %s1017 = int_to_ptr.vmem [resolvable:$true] %s1016
          %1022 = dma.vmem_to_hbm [thread:$0]  %s1017, 8192, %s1015, %s1000, 256, 256, 16
        $region40: #{bottleneck_forward.7} parent=35 // pred_fallthru
          _
      $region36: #{bottleneck_forward.7} parent=5 // pred_fallthru
        _
      %p1023 = scmp.le.s32.totalorder 2, %s13
      // Predicated region
      $region41: #{bottleneck_forward.7} parent=5 // pred_check
        %p1024 = pneg %p1023
      $region42: #{bottleneck_forward.7} parent=5 // pred_check_branch
        %1026 = sbr.rel (%p1024) target = $region44
      $region43: #{bottleneck_forward.7} parent=5 // pred_region
        %s1027 = ssub.s32 %s13, 2
        // Predicated region
        $region45: #{bottleneck_forward.7} parent=43 // pred_check
          %p1028 = pneg %p162
        $region46: #{bottleneck_forward.7} parent=43 // pred_check_branch
          %1030 = sbr.rel (%p1028) target = $region48
        $region47: #{bottleneck_forward.7} parent=43 // pred_region
          %s1031 = sand.u32 %s147, 1
          %s1032 = scalar_lea.sflag [#allocation3], %s1031
          %s1033 = sand.u32 %s147, 1
          %s1034 = smul.addr %s1033, 512
          %s1035 = scalar_lea.vmem [#allocation2], %s1034
          %1036 = dma.done %s1032, 8192
        $region48: #{bottleneck_forward.7} parent=43 // pred_fallthru
          _
      $region44: #{bottleneck_forward.7} parent=5 // pred_fallthru
        _
    $region6: #{bottleneck_forward.7} parent=1 // loop_footer
      %s17 = sadd.s32 1, %s13
    $region7: #{bottleneck_forward.7} parent=1 // loop_footer_branch
      %12 = sbr.rel target = $region3
    $region8: #{bottleneck_forward.7} parent=1 // loop_exit
      _
    %1037 = vsyncpa [#allocation3], 1
    %s1038 = scalar_lea.sflag [#allocation3], 1
    %1039 = vsyncpa %s1038, 1

</llo_original>
